<compile_context>
chip_gen: v5e
topology: v5e:2x2
jax: 0.10.0
libtpu: 0.0.40
codegen_flags: <defaults>
</compile_context>

<pallas_src>
import functools

import jax
import jax.numpy as jnp
from jax.experimental import pallas as pl
from jax.experimental.pallas import tpu as pltpu

INPUT_DIM = 784
HIDDEN_DIM = 400
LATENT_DIM = 20
MLP_HIDDEN = LATENT_DIM // 2   # 10
NUM_CLASSES = 10
PACKED_DIM = 128               # lane-dense slab for {mu, logvar, cls}


def vae_kernel(
    x_ref, eps_ref,
    w1_ref, b1_ref,            # fc1   (784,400) bf16 / (1,400) f32
    wml_ref, bml_ref,          # fused fc21|fc22 (400,40) bf16 / (1,40) f32
    w3_ref, b3_ref,            # fc3   (20,400)  bf16 / (1,400) f32
    w4_ref, b4_ref,            # fc4   (400,784) bf16 / (1,784) f32
    wm1_ref, bm1_ref,          # mlp.fc1 (20,10) bf16 / (1,10) f32
    wm2_ref, bm2_ref,          # mlp.out (10,10) bf16 / (1,10) f32
    recon_ref, packed_ref,
):
    x = x_ref[...]                                            # (tb, 784) bf16

    # ---- encode: fc1 (bf16 inputs, f32 accumulate) + relu ----
    h1 = jnp.dot(x, w1_ref[...],
                 preferred_element_type=jnp.float32) + b1_ref[...]
    h1 = jnp.maximum(h1, 0.0)                                 # (tb, 400) f32
    h1b = h1.astype(jnp.bfloat16)

    # ---- fused fc21 | fc22 -> one MXU pass, slice mu / logvar ----
    mu_lv = jnp.dot(h1b, wml_ref[...],
                    preferred_element_type=jnp.float32) + bml_ref[...]  # (tb, 40)
    mu = mu_lv[:, :LATENT_DIM]
    logvar = mu_lv[:, LATENT_DIM:2 * LATENT_DIM]

    # ---- reparameterize (eps supplied from outside) ----
    std = jnp.exp(0.5 * logvar)
    z = mu + eps_ref[...] * std                               # (tb, 20) f32
    zb = z.astype(jnp.bfloat16)

    # ---- classifier MLP on z (detach() is a no-op in forward) ----
    hm = jnp.maximum(
        jnp.dot(zb, wm1_ref[...], preferred_element_type=jnp.float32)
        + bm1_ref[...], 0.0)                                  # (tb, 10)
    cls = jnp.dot(hm.astype(jnp.bfloat16), wm2_ref[...],
                  preferred_element_type=jnp.float32) + bm2_ref[...]    # (tb, 10)

    # ---- decode: fc3 + relu, fc4, sigmoid ----
    h3 = jnp.maximum(
        jnp.dot(zb, w3_ref[...], preferred_element_type=jnp.float32)
        + b3_ref[...], 0.0)                                   # (tb, 400)
    logits = jnp.dot(h3.astype(jnp.bfloat16), w4_ref[...],
                     preferred_element_type=jnp.float32) + b4_ref[...]  # (tb, 784)
    # sigmoid via a single EUP tanh; robust for very negative logits
    recon = 0.5 * jnp.tanh(0.5 * logits) + 0.5

    recon_ref[...] = recon.astype(recon_ref.dtype)
    # one lane-dense 128-wide store for the three narrow outputs
    tb = mu_lv.shape[0]
    pad = jnp.zeros((tb, PACKED_DIM - 2 * LATENT_DIM - NUM_CLASSES), jnp.float32)
    packed_ref[...] = jnp.concatenate([mu_lv, cls, pad], axis=-1)


def init_linear(key, fan_in, fan_out):
    """torch.nn.Linear default init: U(-1/sqrt(fan_in), 1/sqrt(fan_in)).
    Weight returned as (in, out) (transpose of torch layout)."""
    kw, kb = jax.random.split(key)
    bound = 1.0 / jnp.sqrt(jnp.float32(fan_in))
    w = jax.random.uniform(kw, (fan_in, fan_out), jnp.float32, -bound, bound)
    b = jax.random.uniform(kb, (1, fan_out), jnp.float32, -bound, bound)
    return w, b


def make_params(key):
    keys = jax.random.split(key, 7)
    p = {}
    p["fc1"] = init_linear(keys[0], INPUT_DIM, HIDDEN_DIM)
    p["fc21"] = init_linear(keys[1], HIDDEN_DIM, LATENT_DIM)
    p["fc22"] = init_linear(keys[2], HIDDEN_DIM, LATENT_DIM)
    p["fc3"] = init_linear(keys[3], LATENT_DIM, HIDDEN_DIM)
    p["fc4"] = init_linear(keys[4], HIDDEN_DIM, INPUT_DIM)
    p["mlp_fc1"] = init_linear(keys[5], LATENT_DIM, MLP_HIDDEN)
    p["mlp_out"] = init_linear(keys[6], MLP_HIDDEN, NUM_CLASSES)
    return p


def prepare_weights(params):
    """Fuse fc21/fc22 and cast all weights to bf16 (MXU input); biases stay f32."""
    w1, b1 = params["fc1"]
    w21, b21 = params["fc21"]
    w22, b22 = params["fc22"]
    w3, b3 = params["fc3"]
    w4, b4 = params["fc4"]
    wm1, bm1 = params["mlp_fc1"]
    wm2, bm2 = params["mlp_out"]
    w_mulv = jnp.concatenate([w21, w22], axis=1)              # (400, 40)
    b_mulv = jnp.concatenate([b21, b22], axis=1)              # (1, 40)
    bf = jnp.bfloat16
    return [
        w1.astype(bf), b1,
        w_mulv.astype(bf), b_mulv,
        w3.astype(bf), b3,
        w4.astype(bf), b4,
        wm1.astype(bf), bm1,
        wm2.astype(bf), bm2,
    ]


def _round_up(n, m):
    return ((n + m - 1) // m) * m


def _choose_tile(batch, tile_b):
    """Sublane-aligned batch tile; ensure >=2 grid steps for mid-size batches
    so both v7x TensorCores get work under dimension_semantics=('parallel',)."""
    if batch <= tile_b:
        return _round_up(batch, 8)
    if batch <= 2 * tile_b:
        return _round_up(-(-batch // 2), 8)
    return tile_b


@functools.partial(jax.jit, static_argnames=("tile_b", "recon_dtype"))
def _vae_forward_padded(x2d, eps, weights, tile_b, recon_dtype):
    Bp = x2d.shape[0]
    grid = (Bp // tile_b,)

    batch_map = lambda i: (i, 0)
    const_map = lambda i: (0, 0)          # weights resident across grid steps

    in_specs = [
        pl.BlockSpec((tile_b, INPUT_DIM), batch_map),         # x (bf16)
        pl.BlockSpec((tile_b, LATENT_DIM), batch_map),        # eps (f32)
    ] + [pl.BlockSpec(w.shape, const_map) for w in weights]

    out_specs = (
        pl.BlockSpec((tile_b, INPUT_DIM), batch_map),         # recon
        pl.BlockSpec((tile_b, PACKED_DIM), batch_map),        # packed {mu,logvar,cls}
    )
    out_shape = (
        jax.ShapeDtypeStruct((Bp, INPUT_DIM), recon_dtype),
        jax.ShapeDtypeStruct((Bp, PACKED_DIM), jnp.float32),
    )

    return pl.pallas_call(
        vae_kernel,
        out_shape=out_shape,
        grid=grid,
        in_specs=in_specs,
        out_specs=out_specs,
        compiler_params=pltpu.CompilerParams(
            dimension_semantics=("parallel",),                # 2 TCs on v7x
            vmem_limit_bytes=32 * 1024 * 1024,                # tb=512 safe on v5e too
        ),
    )(x2d, eps, *weights)


def vae_forward(x, eps, params, tile_b=512, recon_dtype=jnp.bfloat16):
    """x: (B, 1, 28, 28) or (B, 784) float; eps: (B, latent) float32.
    Returns (recon, mu, logvar, cls_out) like VAE.forward.
    recon is bf16 by default (set recon_dtype=jnp.float32 for exact parity)."""
    x2d = x.reshape(-1, INPUT_DIM).astype(jnp.bfloat16)       # x.view(-1, 784), bf16 DMA
    B = x2d.shape[0]

    tb = _choose_tile(B, tile_b)
    Bp = _round_up(B, tb)
    eps = eps.astype(jnp.float32)
    if Bp != B:
        x2d = jnp.pad(x2d, ((0, Bp - B), (0, 0)))
        eps = jnp.pad(eps, ((0, Bp - B), (0, 0)))

    weights = prepare_weights(params)
    recon, packed = _vae_forward_padded(x2d, eps, weights, tb, recon_dtype)

    recon = recon[:B]
    mu = packed[:B, :LATENT_DIM]
    logvar = packed[:B, LATENT_DIM:2 * LATENT_DIM]
    cls_out = packed[:B, 2 * LATENT_DIM:2 * LATENT_DIM + NUM_CLASSES]
    return recon, mu, logvar, cls_out


def vae_forward_ref(x, eps, params):
    """Plain-JAX reference with the same bf16-input / f32-accumulate matmuls."""
    bf = jnp.bfloat16
    x2d = x.reshape(-1, INPUT_DIM).astype(bf)
    w1, b1 = params["fc1"]
    w21, b21 = params["fc21"]
    w22, b22 = params["fc22"]
    w3, b3 = params["fc3"]
    w4, b4 = params["fc4"]
    wm1, bm1 = params["mlp_fc1"]
    wm2, bm2 = params["mlp_out"]
    h1 = jnp.maximum(
        jnp.dot(x2d, w1.astype(bf), preferred_element_type=jnp.float32) + b1, 0.0)
    h1b = h1.astype(bf)
    mu = jnp.dot(h1b, w21.astype(bf), preferred_element_type=jnp.float32) + b21
    logvar = jnp.dot(h1b, w22.astype(bf), preferred_element_type=jnp.float32) + b22
    z = mu + eps * jnp.exp(0.5 * logvar)
    zb = z.astype(bf)
    hm = jnp.maximum(
        jnp.dot(zb, wm1.astype(bf), preferred_element_type=jnp.float32) + bm1, 0.0)
    cls = jnp.dot(hm.astype(bf), wm2.astype(bf),
                  preferred_element_type=jnp.float32) + bm2
    h3 = jnp.maximum(
        jnp.dot(zb, w3.astype(bf), preferred_element_type=jnp.float32) + b3, 0.0)
    logits = jnp.dot(h3.astype(bf), w4.astype(bf),
                     preferred_element_type=jnp.float32) + b4
    recon = jax.nn.sigmoid(logits)
    return recon, mu, logvar, cls


if __name__ == "__main__":
    key = jax.random.PRNGKey(0)
    k_param, k_x, k_eps = jax.random.split(key, 3)

    params = make_params(k_param)

    B = 8
    x = jax.random.uniform(k_x, (B, 1, 28, 28), jnp.float32)      # MNIST-like input
    eps = jax.random.normal(k_eps, (B, LATENT_DIM), jnp.float32)  # torch.randn_like(std)

    recon, mu, logvar, cls_out = jax.block_until_ready(vae_forward(x, eps, params))

    # sanity check against plain-JAX reference (bf16 matmul inputs + bf16 recon
    # storage in the kernel -> slightly loosened tolerances)
    r_ref, mu_ref, lv_ref, c_ref = vae_forward_ref(x, eps, params)
    assert recon.shape == (B, INPUT_DIM)
    assert mu.shape == (B, LATENT_DIM) and logvar.shape == (B, LATENT_DIM)
    assert cls_out.shape == (B, NUM_CLASSES)
    assert jnp.allclose(recon.astype(jnp.float32), r_ref, atol=1e-2, rtol=1e-2)
    assert jnp.allclose(mu, mu_ref, atol=2e-3, rtol=2e-3)
    assert jnp.allclose(logvar, lv_ref, atol=2e-3, rtol=2e-3)
    assert jnp.allclose(cls_out, c_ref, atol=2e-3, rtol=2e-3)

    print("KERNEL_OK")
</pallas_src>

<mosaic_0001>
module attributes {stable_mosaic.version = 11 : i64} {
  func.func @vae_kernel(%arg0: i32, %arg1: memref<8x784xbf16, #tpu.memory_space<vmem>>, %arg2: memref<8x20xf32, #tpu.memory_space<vmem>>, %arg3: memref<784x400xbf16, #tpu.memory_space<vmem>>, %arg4: memref<1x400xf32, #tpu.memory_space<vmem>>, %arg5: memref<400x40xbf16, #tpu.memory_space<vmem>>, %arg6: memref<1x40xf32, #tpu.memory_space<vmem>>, %arg7: memref<20x400xbf16, #tpu.memory_space<vmem>>, %arg8: memref<1x400xf32, #tpu.memory_space<vmem>>, %arg9: memref<400x784xbf16, #tpu.memory_space<vmem>>, %arg10: memref<1x784xf32, #tpu.memory_space<vmem>>, %arg11: memref<20x10xbf16, #tpu.memory_space<vmem>>, %arg12: memref<1x10xf32, #tpu.memory_space<vmem>>, %arg13: memref<10x10xbf16, #tpu.memory_space<vmem>>, %arg14: memref<1x10xf32, #tpu.memory_space<vmem>>, %arg15: memref<8x784xbf16, #tpu.memory_space<vmem>>, %arg16: memref<8x128xf32, #tpu.memory_space<vmem>>) attributes {dimension_semantics = [#tpu.dimension_semantics<parallel>], iteration_bounds = array<i64: 1>, scalar_prefetch = 0 : i64, scratch_operands = 0 : i64, tpu.core_type = #tpu.core_type<tc>, window_params = [{transform_indices = @transform_0, window_bounds = array<i64: 8, 784>}, {transform_indices = @transform_1, window_bounds = array<i64: 8, 20>}, {pipeline_mode = #tpu.pipeline_mode<synchronous>, transform_indices = @transform_2, window_bounds = array<i64: 784, 400>}, {pipeline_mode = #tpu.pipeline_mode<synchronous>, transform_indices = @transform_3, window_bounds = array<i64: 1, 400>}, {pipeline_mode = #tpu.pipeline_mode<synchronous>, transform_indices = @transform_4, window_bounds = array<i64: 400, 40>}, {pipeline_mode = #tpu.pipeline_mode<synchronous>, transform_indices = @transform_5, window_bounds = array<i64: 1, 40>}, {pipeline_mode = #tpu.pipeline_mode<synchronous>, transform_indices = @transform_6, window_bounds = array<i64: 20, 400>}, {pipeline_mode = #tpu.pipeline_mode<synchronous>, transform_indices = @transform_7, window_bounds = array<i64: 1, 400>}, {pipeline_mode = #tpu.pipeline_mode<synchronous>, transform_indices = @transform_8, window_bounds = array<i64: 400, 784>}, {pipeline_mode = #tpu.pipeline_mode<synchronous>, transform_indices = @transform_9, window_bounds = array<i64: 1, 784>}, {pipeline_mode = #tpu.pipeline_mode<synchronous>, transform_indices = @transform_10, window_bounds = array<i64: 20, 10>}, {pipeline_mode = #tpu.pipeline_mode<synchronous>, transform_indices = @transform_11, window_bounds = array<i64: 1, 10>}, {pipeline_mode = #tpu.pipeline_mode<synchronous>, transform_indices = @transform_12, window_bounds = array<i64: 10, 10>}, {pipeline_mode = #tpu.pipeline_mode<synchronous>, transform_indices = @transform_13, window_bounds = array<i64: 1, 10>}, {transform_indices = @transform_14, window_bounds = array<i64: 8, 784>}, {transform_indices = @transform_15, window_bounds = array<i64: 8, 128>}]} {
    %c0 = arith.constant 0 : index
    %c0_0 = arith.constant 0 : index
    %0 = vector.load %arg1[%c0, %c0_0] : memref<8x784xbf16, #tpu.memory_space<vmem>>, vector<8x784xbf16>
    %c0_1 = arith.constant 0 : index
    %c0_2 = arith.constant 0 : index
    %1 = vector.load %arg3[%c0_1, %c0_2] : memref<784x400xbf16, #tpu.memory_space<vmem>>, vector<784x400xbf16>
    %cst = arith.constant dense<0.000000e+00> : vector<8x400xf32>
    %2 = tpu.matmul %0, %1, %cst {dimension_numbers = #tpu.dot_dimension_numbers<[1], [0], [0], [1], [0, 0, 1, 1], [], []>} : vector<8x784xbf16>, vector<784x400xbf16>, vector<8x400xf32> -> vector<8x400xf32>
    %c0_3 = arith.constant 0 : index
    %c0_4 = arith.constant 0 : index
    %3 = vector.load %arg4[%c0_3, %c0_4] : memref<1x400xf32, #tpu.memory_space<vmem>>, vector<1x400xf32>
    %4 = vector.broadcast %3 : vector<1x400xf32> to vector<8x400xf32>
    %5 = arith.addf %2, %4 : vector<8x400xf32>
    %cst_5 = arith.constant 0.000000e+00 : f32
    %6 = vector.broadcast %cst_5 : f32 to vector<8x400xf32>
    %7 = arith.maximumf %5, %6 : vector<8x400xf32>
    %8 = arith.truncf %7 : vector<8x400xf32> to vector<8x400xbf16>
    %c0_6 = arith.constant 0 : index
    %c0_7 = arith.constant 0 : index
    %9 = vector.load %arg5[%c0_6, %c0_7] : memref<400x40xbf16, #tpu.memory_space<vmem>>, vector<400x40xbf16>
    %cst_8 = arith.constant dense<0.000000e+00> : vector<8x40xf32>
    %10 = tpu.matmul %8, %9, %cst_8 {dimension_numbers = #tpu.dot_dimension_numbers<[1], [0], [0], [1], [0, 0, 1, 1], [], []>} : vector<8x400xbf16>, vector<400x40xbf16>, vector<8x40xf32> -> vector<8x40xf32>
    %c0_9 = arith.constant 0 : index
    %c0_10 = arith.constant 0 : index
    %11 = vector.load %arg6[%c0_9, %c0_10] : memref<1x40xf32, #tpu.memory_space<vmem>>, vector<1x40xf32>
    %12 = vector.broadcast %11 : vector<1x40xf32> to vector<8x40xf32>
    %13 = arith.addf %10, %12 : vector<8x40xf32>
    %14 = vector.extract_strided_slice %13 {offsets = [0, 0], sizes = [8, 20], strides = [1, 1]} : vector<8x40xf32> to vector<8x20xf32>
    %15 = vector.extract_strided_slice %13 {offsets = [0, 20], sizes = [8, 20], strides = [1, 1]} : vector<8x40xf32> to vector<8x20xf32>
    %cst_11 = arith.constant 5.000000e-01 : f32
    %16 = vector.broadcast %cst_11 : f32 to vector<8x20xf32>
    %17 = arith.mulf %16, %15 : vector<8x20xf32>
    %18 = math.exp %17 : vector<8x20xf32>
    %c0_12 = arith.constant 0 : index
    %c0_13 = arith.constant 0 : index
    %19 = vector.load %arg2[%c0_12, %c0_13] : memref<8x20xf32, #tpu.memory_space<vmem>>, vector<8x20xf32>
    %20 = arith.mulf %19, %18 : vector<8x20xf32>
    %21 = arith.addf %14, %20 : vector<8x20xf32>
    %22 = arith.truncf %21 : vector<8x20xf32> to vector<8x20xbf16>
    %c0_14 = arith.constant 0 : index
    %c0_15 = arith.constant 0 : index
    %23 = vector.load %arg11[%c0_14, %c0_15] : memref<20x10xbf16, #tpu.memory_space<vmem>>, vector<20x10xbf16>
    %cst_16 = arith.constant dense<0.000000e+00> : vector<8x10xf32>
    %24 = tpu.matmul %22, %23, %cst_16 {dimension_numbers = #tpu.dot_dimension_numbers<[1], [0], [0], [1], [0, 0, 1, 1], [], []>} : vector<8x20xbf16>, vector<20x10xbf16>, vector<8x10xf32> -> vector<8x10xf32>
    %c0_17 = arith.constant 0 : index
    %c0_18 = arith.constant 0 : index
    %25 = vector.load %arg12[%c0_17, %c0_18] : memref<1x10xf32, #tpu.memory_space<vmem>>, vector<1x10xf32>
    %26 = vector.broadcast %25 : vector<1x10xf32> to vector<8x10xf32>
    %27 = arith.addf %24, %26 : vector<8x10xf32>
    %cst_19 = arith.constant 0.000000e+00 : f32
    %28 = vector.broadcast %cst_19 : f32 to vector<8x10xf32>
    %29 = arith.maximumf %27, %28 : vector<8x10xf32>
    %30 = arith.truncf %29 : vector<8x10xf32> to vector<8x10xbf16>
    %c0_20 = arith.constant 0 : index
    %c0_21 = arith.constant 0 : index
    %31 = vector.load %arg13[%c0_20, %c0_21] : memref<10x10xbf16, #tpu.memory_space<vmem>>, vector<10x10xbf16>
    %cst_22 = arith.constant dense<0.000000e+00> : vector<8x10xf32>
    %32 = tpu.matmul %30, %31, %cst_22 {dimension_numbers = #tpu.dot_dimension_numbers<[1], [0], [0], [1], [0, 0, 1, 1], [], []>} : vector<8x10xbf16>, vector<10x10xbf16>, vector<8x10xf32> -> vector<8x10xf32>
    %c0_23 = arith.constant 0 : index
    %c0_24 = arith.constant 0 : index
    %33 = vector.load %arg14[%c0_23, %c0_24] : memref<1x10xf32, #tpu.memory_space<vmem>>, vector<1x10xf32>
    %34 = vector.broadcast %33 : vector<1x10xf32> to vector<8x10xf32>
    %35 = arith.addf %32, %34 : vector<8x10xf32>
    %c0_25 = arith.constant 0 : index
    %c0_26 = arith.constant 0 : index
    %36 = vector.load %arg7[%c0_25, %c0_26] : memref<20x400xbf16, #tpu.memory_space<vmem>>, vector<20x400xbf16>
    %cst_27 = arith.constant dense<0.000000e+00> : vector<8x400xf32>
    %37 = tpu.matmul %22, %36, %cst_27 {dimension_numbers = #tpu.dot_dimension_numbers<[1], [0], [0], [1], [0, 0, 1, 1], [], []>} : vector<8x20xbf16>, vector<20x400xbf16>, vector<8x400xf32> -> vector<8x400xf32>
    %c0_28 = arith.constant 0 : index
    %c0_29 = arith.constant 0 : index
    %38 = vector.load %arg8[%c0_28, %c0_29] : memref<1x400xf32, #tpu.memory_space<vmem>>, vector<1x400xf32>
    %39 = vector.broadcast %38 : vector<1x400xf32> to vector<8x400xf32>
    %40 = arith.addf %37, %39 : vector<8x400xf32>
    %cst_30 = arith.constant 0.000000e+00 : f32
    %41 = vector.broadcast %cst_30 : f32 to vector<8x400xf32>
    %42 = arith.maximumf %40, %41 : vector<8x400xf32>
    %43 = arith.truncf %42 : vector<8x400xf32> to vector<8x400xbf16>
    %c0_31 = arith.constant 0 : index
    %c0_32 = arith.constant 0 : index
    %44 = vector.load %arg9[%c0_31, %c0_32] : memref<400x784xbf16, #tpu.memory_space<vmem>>, vector<400x784xbf16>
    %cst_33 = arith.constant dense<0.000000e+00> : vector<8x784xf32>
    %45 = tpu.matmul %43, %44, %cst_33 {dimension_numbers = #tpu.dot_dimension_numbers<[1], [0], [0], [1], [0, 0, 1, 1], [], []>} : vector<8x400xbf16>, vector<400x784xbf16>, vector<8x784xf32> -> vector<8x784xf32>
    %c0_34 = arith.constant 0 : index
    %c0_35 = arith.constant 0 : index
    %46 = vector.load %arg10[%c0_34, %c0_35] : memref<1x784xf32, #tpu.memory_space<vmem>>, vector<1x784xf32>
    %47 = vector.broadcast %46 : vector<1x784xf32> to vector<8x784xf32>
    %48 = arith.addf %45, %47 : vector<8x784xf32>
    %cst_36 = arith.constant 5.000000e-01 : f32
    %49 = vector.broadcast %cst_36 : f32 to vector<8x784xf32>
    %50 = arith.mulf %49, %48 : vector<8x784xf32>
    %51 = math.tanh %50 : vector<8x784xf32>
    %cst_37 = arith.constant 5.000000e-01 : f32
    %52 = vector.broadcast %cst_37 : f32 to vector<8x784xf32>
    %53 = arith.mulf %52, %51 : vector<8x784xf32>
    %cst_38 = arith.constant 5.000000e-01 : f32
    %54 = vector.broadcast %cst_38 : f32 to vector<8x784xf32>
    %55 = arith.addf %53, %54 : vector<8x784xf32>
    %56 = arith.truncf %55 : vector<8x784xf32> to vector<8x784xbf16>
    %c0_39 = arith.constant 0 : index
    %c0_40 = arith.constant 0 : index
    %57 = vector.load %arg15[%c0_39, %c0_40] : memref<8x784xbf16, #tpu.memory_space<vmem>>, vector<8x784xbf16>
    tpu.vector_store %arg15[%c0_39, %c0_40], %56 {strides = array<i32>} : memref<8x784xbf16, #tpu.memory_space<vmem>>, vector<8x784xbf16>,
    %cst_41 = arith.constant 0.000000e+00 : f32
    %58 = vector.broadcast %cst_41 : f32 to vector<8x78xf32>
    %59 = tpu.concatenate %13, %35, %58 in 1 : vector<8x40xf32>, vector<8x10xf32>, vector<8x78xf32> -> vector<8x128xf32>
    %c0_42 = arith.constant 0 : index
    %c0_43 = arith.constant 0 : index
    %60 = vector.load %arg16[%c0_42, %c0_43] : memref<8x128xf32, #tpu.memory_space<vmem>>, vector<8x128xf32>
    tpu.vector_store %arg16[%c0_42, %c0_43], %59 {strides = array<i32>} : memref<8x128xf32, #tpu.memory_space<vmem>>, vector<8x128xf32>,
    return
  }
  func.func @transform_0(%arg0: i32) -> (i32, i32) {
    %c0_i32 = arith.constant 0 : i32
    %c0_i32_0 = arith.constant 0 : i32
    return %arg0, %c0_i32 : i32, i32
  }
  func.func @transform_1(%arg0: i32) -> (i32, i32) {
    %c0_i32 = arith.constant 0 : i32
    %c0_i32_0 = arith.constant 0 : i32
    return %arg0, %c0_i32 : i32, i32
  }
  func.func @transform_2(%arg0: i32) -> (i32, i32) {
    %c0_i32 = arith.constant 0 : i32
    %c0_i32_0 = arith.constant 0 : i32
    %c0_i32_1 = arith.constant 0 : i32
    return %c0_i32, %c0_i32_0 : i32, i32
  }
  func.func @transform_3(%arg0: i32) -> (i32, i32) {
    %c0_i32 = arith.constant 0 : i32
    %c0_i32_0 = arith.constant 0 : i32
    %c0_i32_1 = arith.constant 0 : i32
    return %c0_i32, %c0_i32_0 : i32, i32
  }
  func.func @transform_4(%arg0: i32) -> (i32, i32) {
    %c0_i32 = arith.constant 0 : i32
    %c0_i32_0 = arith.constant 0 : i32
    %c0_i32_1 = arith.constant 0 : i32
    return %c0_i32, %c0_i32_0 : i32, i32
  }
  func.func @transform_5(%arg0: i32) -> (i32, i32) {
    %c0_i32 = arith.constant 0 : i32
    %c0_i32_0 = arith.constant 0 : i32
    %c0_i32_1 = arith.constant 0 : i32
    return %c0_i32, %c0_i32_0 : i32, i32
  }
  func.func @transform_6(%arg0: i32) -> (i32, i32) {
    %c0_i32 = arith.constant 0 : i32
    %c0_i32_0 = arith.constant 0 : i32
    %c0_i32_1 = arith.constant 0 : i32
    return %c0_i32, %c0_i32_0 : i32, i32
  }
  func.func @transform_7(%arg0: i32) -> (i32, i32) {
    %c0_i32 = arith.constant 0 : i32
    %c0_i32_0 = arith.constant 0 : i32
    %c0_i32_1 = arith.constant 0 : i32
    return %c0_i32, %c0_i32_0 : i32, i32
  }
  func.func @transform_8(%arg0: i32) -> (i32, i32) {
    %c0_i32 = arith.constant 0 : i32
    %c0_i32_0 = arith.constant 0 : i32
    %c0_i32_1 = arith.constant 0 : i32
    return %c0_i32, %c0_i32_0 : i32, i32
  }
  func.func @transform_9(%arg0: i32) -> (i32, i32) {
    %c0_i32 = arith.constant 0 : i32
    %c0_i32_0 = arith.constant 0 : i32
    %c0_i32_1 = arith.constant 0 : i32
    return %c0_i32, %c0_i32_0 : i32, i32
  }
  func.func @transform_10(%arg0: i32) -> (i32, i32) {
    %c0_i32 = arith.constant 0 : i32
    %c0_i32_0 = arith.constant 0 : i32
    %c0_i32_1 = arith.constant 0 : i32
    return %c0_i32, %c0_i32_0 : i32, i32
  }
  func.func @transform_11(%arg0: i32) -> (i32, i32) {
    %c0_i32 = arith.constant 0 : i32
    %c0_i32_0 = arith.constant 0 : i32
    %c0_i32_1 = arith.constant 0 : i32
    return %c0_i32, %c0_i32_0 : i32, i32
  }
  func.func @transform_12(%arg0: i32) -> (i32, i32) {
    %c0_i32 = arith.constant 0 : i32
    %c0_i32_0 = arith.constant 0 : i32
    %c0_i32_1 = arith.constant 0 : i32
    return %c0_i32, %c0_i32_0 : i32, i32
  }
  func.func @transform_13(%arg0: i32) -> (i32, i32) {
    %c0_i32 = arith.constant 0 : i32
    %c0_i32_0 = arith.constant 0 : i32
    %c0_i32_1 = arith.constant 0 : i32
    return %c0_i32, %c0_i32_0 : i32, i32
  }
  func.func @transform_14(%arg0: i32) -> (i32, i32) {
    %c0_i32 = arith.constant 0 : i32
    %c0_i32_0 = arith.constant 0 : i32
    return %arg0, %c0_i32 : i32, i32
  }
  func.func @transform_15(%arg0: i32) -> (i32, i32) {
    %c0_i32 = arith.constant 0 : i32
    %c0_i32_0 = arith.constant 0 : i32
    return %arg0, %c0_i32 : i32, i32
  }
}

</mosaic_0001>

<llo_original>
// kernel: _vae_forward_padded.1
$region0: #{_vae_forward_padded.1}
  #allocation0 [shape = 'u32[]', space=smem, size = 0x4, offset = 0x4, fixed_abs, tag = 'smem constant byte address 0x4 - core index']
  #allocation1 [shape = 'u32[72,128]{1,0:T(1,128)}', space=vmem, size = 0x9000, scoped, tag = 'internal scratch']
  %s0 = inlined_call_operand.vmem [shape: bf16[8,784], index: 0, kind: input, shape index: {}]
  %s1 = inlined_call_operand.vmem [shape: f32[8,20], index: 1, kind: input, shape index: {}]
  %s2 = inlined_call_operand.vmem [shape: bf16[784,400], index: 2, kind: input, shape index: {}]
  %s3 = inlined_call_operand.vmem [shape: f32[1,400], index: 3, kind: input, shape index: {}]
  %s4 = inlined_call_operand.vmem [shape: bf16[400,40], index: 4, kind: input, shape index: {}]
  %s5 = inlined_call_operand.vmem [shape: f32[1,40], index: 5, kind: input, shape index: {}]
  %s6 = inlined_call_operand.vmem [shape: bf16[20,400], index: 6, kind: input, shape index: {}]
  %s7 = inlined_call_operand.vmem [shape: f32[1,400], index: 7, kind: input, shape index: {}]
  %s8 = inlined_call_operand.vmem [shape: bf16[400,784], index: 8, kind: input, shape index: {}]
  %s9 = inlined_call_operand.vmem [shape: f32[1,784], index: 9, kind: input, shape index: {}]
  %s10 = inlined_call_operand.vmem [shape: bf16[20,10], index: 10, kind: input, shape index: {}]
  %s11 = inlined_call_operand.vmem [shape: f32[1,10], index: 11, kind: input, shape index: {}]
  %s12 = inlined_call_operand.vmem [shape: bf16[10,10], index: 12, kind: input, shape index: {}]
  %s13 = inlined_call_operand.vmem [shape: f32[1,10], index: 13, kind: input, shape index: {}]
  %s14 = inlined_call_operand.hbm [shape: bf16[8,784], index: 14, kind: output, shape index: {0}]
  %s15 = inlined_call_operand.hbm [shape: f32[8,128], index: 15, kind: output, shape index: {1}]
  %16 = xla_tuple %s14, %s15
  %s17 = sld [smem:[#allocation0]]
  $region74: #{_vae_forward_padded.1} parent=0
    _
  %s19 = ssub.s32 1, %s17
  %s20 = scalar_select 0, %s19, %s17
  $region1: #{_vae_forward_padded.1} parent=0
    #allocation2 [shape = 'u8[14336]{0}', space=vmem, size = 0x3800, scoped, tag = 'output window, operand 0, single buffered']
    #allocation3 [shape = 's32[1]{0}', space=sflag, size = 0x4, scoped, tag = 'scoped memory for _vae_forward_padded.1']
    #allocation4 [shape = 'u8[4096]{0}', space=vmem, size = 0x1000, scoped, tag = 'output window, operand 1, single buffered']
    #allocation5 [shape = 's32[1]{0}', space=sflag, size = 0x4, scoped, tag = 'scoped memory for _vae_forward_padded.1']
    %21 = vsyncpa [#allocation3], 0
    %22 = vsyncpa [#allocation5], 0
    // Predicated region
    $region2: #{_vae_forward_padded.1} parent=1 // pred_check
      _
    $region3: #{_vae_forward_padded.1} parent=1 // pred_check_branch
      %24 = sbr.rel (0) target = $region5
    $region4: #{_vae_forward_padded.1} parent=1 // pred_region
      _
    $region5: #{_vae_forward_padded.1} parent=1 // pred_fallthru
      _
    // Predicated region
    $region6: #{_vae_forward_padded.1} parent=1 // pred_check
      _
    $region7: #{_vae_forward_padded.1} parent=1 // pred_check_branch
      %26 = sbr.rel (0) target = $region9
    $region8: #{_vae_forward_padded.1} parent=1 // pred_region
      _
    $region9: #{_vae_forward_padded.1} parent=1 // pred_fallthru
      _
    // Predicated region
    $region10: #{_vae_forward_padded.1} parent=1 // pred_check
      _
    $region11: #{_vae_forward_padded.1} parent=1 // pred_check_branch
      %28 = sbr.rel (0) target = $region13
    $region12: #{_vae_forward_padded.1} parent=1 // pred_region
      _
    $region13: #{_vae_forward_padded.1} parent=1 // pred_fallthru
      _
    // Predicated region
    $region14: #{_vae_forward_padded.1} parent=1 // pred_check
      _
    $region15: #{_vae_forward_padded.1} parent=1 // pred_check_branch
      %30 = sbr.rel (0) target = $region17
    $region16: #{_vae_forward_padded.1} parent=1 // pred_region
      _
    $region17: #{_vae_forward_padded.1} parent=1 // pred_fallthru
      _
    // Predicated region
    $region18: #{_vae_forward_padded.1} parent=1 // pred_check
      _
    $region19: #{_vae_forward_padded.1} parent=1 // pred_check_branch
      %32 = sbr.rel (0) target = $region21
    $region20: #{_vae_forward_padded.1} parent=1 // pred_region
      _
    $region21: #{_vae_forward_padded.1} parent=1 // pred_fallthru
      _
    // Predicated region
    $region22: #{_vae_forward_padded.1} parent=1 // pred_check
      _
    $region23: #{_vae_forward_padded.1} parent=1 // pred_check_branch
      %34 = sbr.rel (0) target = $region25
    $region24: #{_vae_forward_padded.1} parent=1 // pred_region
      _
    $region25: #{_vae_forward_padded.1} parent=1 // pred_fallthru
      _
    // Predicated region
    $region26: #{_vae_forward_padded.1} parent=1 // pred_check
      _
    $region27: #{_vae_forward_padded.1} parent=1 // pred_check_branch
      %36 = sbr.rel (0) target = $region29
    $region28: #{_vae_forward_padded.1} parent=1 // pred_region
      _
    $region29: #{_vae_forward_padded.1} parent=1 // pred_fallthru
      _
    // Predicated region
    $region30: #{_vae_forward_padded.1} parent=1 // pred_check
      _
    $region31: #{_vae_forward_padded.1} parent=1 // pred_check_branch
      %38 = sbr.rel (0) target = $region33
    $region32: #{_vae_forward_padded.1} parent=1 // pred_region
      _
    $region33: #{_vae_forward_padded.1} parent=1 // pred_fallthru
      _
    // Predicated region
    $region34: #{_vae_forward_padded.1} parent=1 // pred_check
      _
    $region35: #{_vae_forward_padded.1} parent=1 // pred_check_branch
      %40 = sbr.rel (0) target = $region37
    $region36: #{_vae_forward_padded.1} parent=1 // pred_region
      _
    $region37: #{_vae_forward_padded.1} parent=1 // pred_fallthru
      _
    // Predicated region
    $region38: #{_vae_forward_padded.1} parent=1 // pred_check
      _
    $region39: #{_vae_forward_padded.1} parent=1 // pred_check_branch
      %42 = sbr.rel (0) target = $region41
    $region40: #{_vae_forward_padded.1} parent=1 // pred_region
      _
    $region41: #{_vae_forward_padded.1} parent=1 // pred_fallthru
      _
    // Predicated region
    $region42: #{_vae_forward_padded.1} parent=1 // pred_check
      _
    $region43: #{_vae_forward_padded.1} parent=1 // pred_check_branch
      %44 = sbr.rel (0) target = $region45
    $region44: #{_vae_forward_padded.1} parent=1 // pred_region
      _
    $region45: #{_vae_forward_padded.1} parent=1 // pred_fallthru
      _
    // Predicated region
    $region46: #{_vae_forward_padded.1} parent=1 // pred_check
      _
    $region47: #{_vae_forward_padded.1} parent=1 // pred_check_branch
      %46 = sbr.rel (0) target = $region49
    $region48: #{_vae_forward_padded.1} parent=1 // pred_region
      _
    $region49: #{_vae_forward_padded.1} parent=1 // pred_fallthru
      _
    // Predicated region
    $region50: #{_vae_forward_padded.1} parent=1 // pred_check
      _
    $region51: #{_vae_forward_padded.1} parent=1 // pred_check_branch
      %48 = sbr.rel (0) target = $region53
    $region52: #{_vae_forward_padded.1} parent=1 // pred_region
      _
    $region53: #{_vae_forward_padded.1} parent=1 // pred_fallthru
      _
    // Predicated region
    $region54: #{_vae_forward_padded.1} parent=1 // pred_check
      _
    $region55: #{_vae_forward_padded.1} parent=1 // pred_check_branch
      %50 = sbr.rel (0) target = $region57
    $region56: #{_vae_forward_padded.1} parent=1 // pred_region
      _
    $region57: #{_vae_forward_padded.1} parent=1 // pred_fallthru
      _
    %v52 = vld [vmem:[%s0] sm:$0xff]
    %v53 = vld [vmem:[%s0 + $0x8] sm:$0xff]
    %v54 = vld [vmem:[%s0 + $0x10] sm:$0xff]
    %v55 = vld [vmem:[%s0 + $0x18] sm:$0xf]
    %v56 = vld [vmem:[%s2] sm:$0xff]
    %v57 = vld [vmem:[%s2 + $0x8] sm:$0xff]
    %v58 = vld [vmem:[%s2 + $0x10] sm:$0xff]
    %v59 = vld [vmem:[%s2 + $0x18] sm:$0xff]
    %v60 = vld [vmem:[%s2 + $0x20] sm:$0xff]
    %v61 = vld [vmem:[%s2 + $0x28] sm:$0xff]
    %v62 = vld [vmem:[%s2 + $0x30] sm:$0xff]
    %v63 = vld [vmem:[%s2 + $0x38] sm:$0xff]
    %v64 = vld [vmem:[%s2 + $0x40] sm:$0xff]
    %v65 = vld [vmem:[%s2 + $0x48] sm:$0xff]
    %v66 = vld [vmem:[%s2 + $0x50] sm:$0xff]
    %v67 = vld [vmem:[%s2 + $0x58] sm:$0xff]
    %v68 = vld [vmem:[%s2 + $0x60] sm:$0xff]
    %v69 = vld [vmem:[%s2 + $0x68] sm:$0xff]
    %v70 = vld [vmem:[%s2 + $0x70] sm:$0xff]
    %v71 = vld [vmem:[%s2 + $0x78] sm:$0xff]
    %v72 = vld [vmem:[%s2 + $0x80] sm:$0xff]
    %v73 = vld [vmem:[%s2 + $0x88] sm:$0xff]
    %v74 = vld [vmem:[%s2 + $0x90] sm:$0xff]
    %v75 = vld [vmem:[%s2 + $0x98] sm:$0xff]
    %v76 = vld [vmem:[%s2 + $0xa0] sm:$0xff]
    %v77 = vld [vmem:[%s2 + $0xa8] sm:$0xff]
    %v78 = vld [vmem:[%s2 + $0xb0] sm:$0xff]
    %v79 = vld [vmem:[%s2 + $0xb8] sm:$0xff]
    %v80 = vld [vmem:[%s2 + $0xc0] sm:$0xff]
    %v81 = vld [vmem:[%s2 + $0xc8] sm:$0xff]
    %v82 = vld [vmem:[%s2 + $0xd0] sm:$0xff]
    %v83 = vld [vmem:[%s2 + $0xd8] sm:$0xff]
    %v84 = vld [vmem:[%s2 + $0xe0] sm:$0xff]
    %v85 = vld [vmem:[%s2 + $0xe8] sm:$0xff]
    %v86 = vld [vmem:[%s2 + $0xf0] sm:$0xff]
    %v87 = vld [vmem:[%s2 + $0xf8] sm:$0xff]
    %v88 = vld [vmem:[%s2 + $0x100] sm:$0xff]
    %v89 = vld [vmem:[%s2 + $0x108] sm:$0xff]
    %v90 = vld [vmem:[%s2 + $0x110] sm:$0xff]
    %v91 = vld [vmem:[%s2 + $0x118] sm:$0xff]
    %v92 = vld [vmem:[%s2 + $0x120] sm:$0xff]
    %v93 = vld [vmem:[%s2 + $0x128] sm:$0xff]
    %v94 = vld [vmem:[%s2 + $0x130] sm:$0xff]
    %v95 = vld [vmem:[%s2 + $0x138] sm:$0xff]
    %v96 = vld [vmem:[%s2 + $0x140] sm:$0xff]
    %v97 = vld [vmem:[%s2 + $0x148] sm:$0xff]
    %v98 = vld [vmem:[%s2 + $0x150] sm:$0xff]
    %v99 = vld [vmem:[%s2 + $0x158] sm:$0xff]
    %v100 = vld [vmem:[%s2 + $0x160] sm:$0xff]
    %v101 = vld [vmem:[%s2 + $0x168] sm:$0xff]
    %v102 = vld [vmem:[%s2 + $0x170] sm:$0xff]
    %v103 = vld [vmem:[%s2 + $0x178] sm:$0xff]
    %v104 = vld [vmem:[%s2 + $0x180] sm:$0xff]
    %v105 = vld [vmem:[%s2 + $0x188] sm:$0xff]
    %v106 = vld [vmem:[%s2 + $0x190] sm:$0xff]
    %v107 = vld [vmem:[%s2 + $0x198] sm:$0xff]
    %v108 = vld [vmem:[%s2 + $0x1a0] sm:$0xff]
    %v109 = vld [vmem:[%s2 + $0x1a8] sm:$0xff]
    %v110 = vld [vmem:[%s2 + $0x1b0] sm:$0xff]
    %v111 = vld [vmem:[%s2 + $0x1b8] sm:$0xff]
    %v112 = vld [vmem:[%s2 + $0x1c0] sm:$0xff]
    %v113 = vld [vmem:[%s2 + $0x1c8] sm:$0xff]
    %v114 = vld [vmem:[%s2 + $0x1d0] sm:$0xff]
    %v115 = vld [vmem:[%s2 + $0x1d8] sm:$0xff]
    %v116 = vld [vmem:[%s2 + $0x1e0] sm:$0xff]
    %v117 = vld [vmem:[%s2 + $0x1e8] sm:$0xff]
    %v118 = vld [vmem:[%s2 + $0x1f0] sm:$0xff]
    %v119 = vld [vmem:[%s2 + $0x1f8] sm:$0xff]
    %v120 = vld [vmem:[%s2 + $0x200] sm:$0xff]
    %v121 = vld [vmem:[%s2 + $0x208] sm:$0xff]
    %v122 = vld [vmem:[%s2 + $0x210] sm:$0xff]
    %v123 = vld [vmem:[%s2 + $0x218] sm:$0xff]
    %v124 = vld [vmem:[%s2 + $0x220] sm:$0xff]
    %v125 = vld [vmem:[%s2 + $0x228] sm:$0xff]
    %v126 = vld [vmem:[%s2 + $0x230] sm:$0xff]
    %v127 = vld [vmem:[%s2 + $0x238] sm:$0xff]
    %v128 = vld [vmem:[%s2 + $0x240] sm:$0xff]
    %v129 = vld [vmem:[%s2 + $0x248] sm:$0xff]
    %v130 = vld [vmem:[%s2 + $0x250] sm:$0xff]
    %v131 = vld [vmem:[%s2 + $0x258] sm:$0xff]
    %v132 = vld [vmem:[%s2 + $0x260] sm:$0xff]
    %v133 = vld [vmem:[%s2 + $0x268] sm:$0xff]
    %v134 = vld [vmem:[%s2 + $0x270] sm:$0xff]
    %v135 = vld [vmem:[%s2 + $0x278] sm:$0xff]
    %v136 = vld [vmem:[%s2 + $0x280] sm:$0xff]
    %v137 = vld [vmem:[%s2 + $0x288] sm:$0xff]
    %v138 = vld [vmem:[%s2 + $0x290] sm:$0xff]
    %v139 = vld [vmem:[%s2 + $0x298] sm:$0xff]
    %v140 = vld [vmem:[%s2 + $0x2a0] sm:$0xff]
    %v141 = vld [vmem:[%s2 + $0x2a8] sm:$0xff]
    %v142 = vld [vmem:[%s2 + $0x2b0] sm:$0xff]
    %v143 = vld [vmem:[%s2 + $0x2b8] sm:$0xff]
    %v144 = vld [vmem:[%s2 + $0x2c0] sm:$0xff]
    %v145 = vld [vmem:[%s2 + $0x2c8] sm:$0xff]
    %v146 = vld [vmem:[%s2 + $0x2d0] sm:$0xff]
    %v147 = vld [vmem:[%s2 + $0x2d8] sm:$0xff]
    %v148 = vld [vmem:[%s2 + $0x2e0] sm:$0xff]
    %v149 = vld [vmem:[%s2 + $0x2e8] sm:$0xff]
    %v150 = vld [vmem:[%s2 + $0x2f0] sm:$0xff]
    %v151 = vld [vmem:[%s2 + $0x2f8] sm:$0xff]
    %v152 = vld [vmem:[%s2 + $0x300] sm:$0xff]
    %v153 = vld [vmem:[%s2 + $0x308] sm:$0xff]
    %v154 = vld [vmem:[%s2 + $0x310] sm:$0xff]
    %v155 = vld [vmem:[%s2 + $0x318] sm:$0xff]
    %v156 = vld [vmem:[%s2 + $0x320] sm:$0xff]
    %v157 = vld [vmem:[%s2 + $0x328] sm:$0xff]
    %v158 = vld [vmem:[%s2 + $0x330] sm:$0xff]
    %v159 = vld [vmem:[%s2 + $0x338] sm:$0xff]
    %v160 = vld [vmem:[%s2 + $0x340] sm:$0xff]
    %v161 = vld [vmem:[%s2 + $0x348] sm:$0xff]
    %v162 = vld [vmem:[%s2 + $0x350] sm:$0xff]
    %v163 = vld [vmem:[%s2 + $0x358] sm:$0xff]
    %v164 = vld [vmem:[%s2 + $0x360] sm:$0xff]
    %v165 = vld [vmem:[%s2 + $0x368] sm:$0xff]
    %v166 = vld [vmem:[%s2 + $0x370] sm:$0xff]
    %v167 = vld [vmem:[%s2 + $0x378] sm:$0xff]
    %v168 = vld [vmem:[%s2 + $0x380] sm:$0xff]
    %v169 = vld [vmem:[%s2 + $0x388] sm:$0xff]
    %v170 = vld [vmem:[%s2 + $0x390] sm:$0xff]
    %v171 = vld [vmem:[%s2 + $0x398] sm:$0xff]
    %v172 = vld [vmem:[%s2 + $0x3a0] sm:$0xff]
    %v173 = vld [vmem:[%s2 + $0x3a8] sm:$0xff]
    %v174 = vld [vmem:[%s2 + $0x3b0] sm:$0xff]
    %v175 = vld [vmem:[%s2 + $0x3b8] sm:$0xff]
    %v176 = vld [vmem:[%s2 + $0x3c0] sm:$0xff]
    %v177 = vld [vmem:[%s2 + $0x3c8] sm:$0xff]
    %v178 = vld [vmem:[%s2 + $0x3d0] sm:$0xff]
    %v179 = vld [vmem:[%s2 + $0x3d8] sm:$0xff]
    %v180 = vld [vmem:[%s2 + $0x3e0] sm:$0xff]
    %v181 = vld [vmem:[%s2 + $0x3e8] sm:$0xff]
    %v182 = vld [vmem:[%s2 + $0x3f0] sm:$0xff]
    %v183 = vld [vmem:[%s2 + $0x3f8] sm:$0xff]
    %v184 = vld [vmem:[%s2 + $0x400] sm:$0xff]
    %v185 = vld [vmem:[%s2 + $0x408] sm:$0xff]
    %v186 = vld [vmem:[%s2 + $0x410] sm:$0xff]
    %v187 = vld [vmem:[%s2 + $0x418] sm:$0xff]
    %v188 = vld [vmem:[%s2 + $0x420] sm:$0xff]
    %v189 = vld [vmem:[%s2 + $0x428] sm:$0xff]
    %v190 = vld [vmem:[%s2 + $0x430] sm:$0xff]
    %v191 = vld [vmem:[%s2 + $0x438] sm:$0xff]
    %v192 = vld [vmem:[%s2 + $0x440] sm:$0xff]
    %v193 = vld [vmem:[%s2 + $0x448] sm:$0xff]
    %v194 = vld [vmem:[%s2 + $0x450] sm:$0xff]
    %v195 = vld [vmem:[%s2 + $0x458] sm:$0xff]
    %v196 = vld [vmem:[%s2 + $0x460] sm:$0xff]
    %v197 = vld [vmem:[%s2 + $0x468] sm:$0xff]
    %v198 = vld [vmem:[%s2 + $0x470] sm:$0xff]
    %v199 = vld [vmem:[%s2 + $0x478] sm:$0xff]
    %v200 = vld [vmem:[%s2 + $0x480] sm:$0xff]
    %v201 = vld [vmem:[%s2 + $0x488] sm:$0xff]
    %v202 = vld [vmem:[%s2 + $0x490] sm:$0xff]
    %v203 = vld [vmem:[%s2 + $0x498] sm:$0xff]
    %v204 = vld [vmem:[%s2 + $0x4a0] sm:$0xff]
    %v205 = vld [vmem:[%s2 + $0x4a8] sm:$0xff]
    %v206 = vld [vmem:[%s2 + $0x4b0] sm:$0xff]
    %v207 = vld [vmem:[%s2 + $0x4b8] sm:$0xff]
    %v208 = vld [vmem:[%s2 + $0x4c0] sm:$0xff]
    %v209 = vld [vmem:[%s2 + $0x4c8] sm:$0xff]
    %v210 = vld [vmem:[%s2 + $0x4d0] sm:$0xff]
    %v211 = vld [vmem:[%s2 + $0x4d8] sm:$0xff]
    %v212 = vld [vmem:[%s2 + $0x4e0] sm:$0xff]
    %v213 = vld [vmem:[%s2 + $0x4e8] sm:$0xff]
    %v214 = vld [vmem:[%s2 + $0x4f0] sm:$0xff]
    %v215 = vld [vmem:[%s2 + $0x4f8] sm:$0xff]
    %v216 = vld [vmem:[%s2 + $0x500] sm:$0xff]
    %v217 = vld [vmem:[%s2 + $0x508] sm:$0xff]
    %v218 = vld [vmem:[%s2 + $0x510] sm:$0xff]
    %v219 = vld [vmem:[%s2 + $0x518] sm:$0xff]
    %v220 = vld [vmem:[%s2 + $0x520] sm:$0xff]
    %v221 = vld [vmem:[%s2 + $0x528] sm:$0xff]
    %v222 = vld [vmem:[%s2 + $0x530] sm:$0xff]
    %v223 = vld [vmem:[%s2 + $0x538] sm:$0xff]
    %v224 = vld [vmem:[%s2 + $0x540] sm:$0xff]
    %v225 = vld [vmem:[%s2 + $0x548] sm:$0xff]
    %v226 = vld [vmem:[%s2 + $0x550] sm:$0xff]
    %v227 = vld [vmem:[%s2 + $0x558] sm:$0xff]
    %v228 = vld [vmem:[%s2 + $0x560] sm:$0xff]
    %v229 = vld [vmem:[%s2 + $0x568] sm:$0xff]
    %v230 = vld [vmem:[%s2 + $0x570] sm:$0xff]
    %v231 = vld [vmem:[%s2 + $0x578] sm:$0xff]
    %v232 = vld [vmem:[%s2 + $0x580] sm:$0xff]
    %v233 = vld [vmem:[%s2 + $0x588] sm:$0xff]
    %v234 = vld [vmem:[%s2 + $0x590] sm:$0xff]
    %v235 = vld [vmem:[%s2 + $0x598] sm:$0xff]
    %v236 = vld [vmem:[%s2 + $0x5a0] sm:$0xff]
    %v237 = vld [vmem:[%s2 + $0x5a8] sm:$0xff]
    %v238 = vld [vmem:[%s2 + $0x5b0] sm:$0xff]
    %v239 = vld [vmem:[%s2 + $0x5b8] sm:$0xff]
    %v240 = vld [vmem:[%s2 + $0x5c0] sm:$0xff]
    %v241 = vld [vmem:[%s2 + $0x5c8] sm:$0xff]
    %v242 = vld [vmem:[%s2 + $0x5d0] sm:$0xff]
    %v243 = vld [vmem:[%s2 + $0x5d8] sm:$0xff]
    %v244 = vld [vmem:[%s2 + $0x5e0] sm:$0xff]
    %v245 = vld [vmem:[%s2 + $0x5e8] sm:$0xff]
    %v246 = vld [vmem:[%s2 + $0x5f0] sm:$0xff]
    %v247 = vld [vmem:[%s2 + $0x5f8] sm:$0xff]
    %v248 = vld [vmem:[%s2 + $0x600] sm:$0xff]
    %v249 = vld [vmem:[%s2 + $0x608] sm:$0xff]
    %v250 = vld [vmem:[%s2 + $0x610] sm:$0xff]
    %v251 = vld [vmem:[%s2 + $0x618] sm:$0xff]
    %v252 = vld [vmem:[%s3] sm:$0xf]
    %v254 = vperm.slane %v252, 0
    %v255 = vperm.slane %v252, 1
    %v256 = vperm.slane %v252, 2
    %v257 = vperm.slane %v252, 3
    %v266 = vunpack.c.l.b16 %v52
    %v267 = vunpack.c.h.b16 %v52
    %v268 = vunpack.c.l.b16 %v53
    %v269 = vunpack.c.h.b16 %v53
    %v270 = vunpack.c.l.b16 %v54
    %v271 = vunpack.c.h.b16 %v54
    %v272 = vunpack.c.l.b16 %v55
    %v273 = vpack.c.b16 %v266, %v266
    %v274 = vpack.c.b16 %v267, %v267
    %v275 = vpack.c.b16 %v268, %v268
    %v276 = vpack.c.b16 %v269, %v269
    %v277 = vpack.c.b16 %v270, %v270
    %v278 = vpack.c.b16 %v271, %v271
    %v279 = vpack.c.b16 %v272, %v272
    %v482 = vunpack.c.l.b16 %v56
    %v483 = vunpack.c.h.b16 %v56
    %v484 = vunpack.c.l.b16 %v57
    %v485 = vunpack.c.h.b16 %v57
    %v486 = vunpack.c.l.b16 %v58
    %v487 = vunpack.c.h.b16 %v58
    %v488 = vunpack.c.l.b16 %v59
    %v489 = vunpack.c.h.b16 %v59
    %v490 = vunpack.c.l.b16 %v60
    %v491 = vunpack.c.h.b16 %v60
    %v492 = vunpack.c.l.b16 %v61
    %v493 = vunpack.c.h.b16 %v61
    %v494 = vunpack.c.l.b16 %v62
    %v495 = vunpack.c.h.b16 %v62
    %v496 = vunpack.c.l.b16 %v63
    %v497 = vunpack.c.h.b16 %v63
    %v498 = vunpack.c.l.b16 %v64
    %v499 = vunpack.c.h.b16 %v64
    %v500 = vunpack.c.l.b16 %v65
    %v501 = vunpack.c.h.b16 %v65
    %v502 = vunpack.c.l.b16 %v66
    %v503 = vunpack.c.h.b16 %v66
    %v504 = vunpack.c.l.b16 %v67
    %v505 = vunpack.c.h.b16 %v67
    %v506 = vunpack.c.l.b16 %v68
    %v507 = vunpack.c.h.b16 %v68
    %v508 = vunpack.c.l.b16 %v69
    %v509 = vunpack.c.h.b16 %v69
    %v510 = vunpack.c.l.b16 %v70
    %v511 = vunpack.c.h.b16 %v70
    %v512 = vunpack.c.l.b16 %v71
    %v513 = vunpack.c.h.b16 %v71
    %v514 = vunpack.c.l.b16 %v72
    %v515 = vunpack.c.h.b16 %v72
    %v516 = vunpack.c.l.b16 %v73
    %v517 = vunpack.c.h.b16 %v73
    %v518 = vunpack.c.l.b16 %v74
    %v519 = vunpack.c.h.b16 %v74
    %v520 = vunpack.c.l.b16 %v75
    %v521 = vunpack.c.h.b16 %v75
    %v522 = vunpack.c.l.b16 %v76
    %v523 = vunpack.c.h.b16 %v76
    %v524 = vunpack.c.l.b16 %v77
    %v525 = vunpack.c.h.b16 %v77
    %v526 = vunpack.c.l.b16 %v78
    %v527 = vunpack.c.h.b16 %v78
    %v528 = vunpack.c.l.b16 %v79
    %v529 = vunpack.c.h.b16 %v79
    %v530 = vunpack.c.l.b16 %v80
    %v531 = vunpack.c.h.b16 %v80
    %v532 = vunpack.c.l.b16 %v81
    %v533 = vunpack.c.h.b16 %v81
    %v534 = vunpack.c.l.b16 %v82
    %v535 = vunpack.c.h.b16 %v82
    %v536 = vunpack.c.l.b16 %v83
    %v537 = vunpack.c.h.b16 %v83
    %v538 = vunpack.c.l.b16 %v84
    %v539 = vunpack.c.h.b16 %v84
    %v540 = vunpack.c.l.b16 %v85
    %v541 = vunpack.c.h.b16 %v85
    %v542 = vunpack.c.l.b16 %v86
    %v543 = vunpack.c.h.b16 %v86
    %v544 = vunpack.c.l.b16 %v87
    %v545 = vunpack.c.h.b16 %v87
    %v546 = vunpack.c.l.b16 %v88
    %v547 = vunpack.c.h.b16 %v88
    %v548 = vunpack.c.l.b16 %v89
    %v549 = vunpack.c.h.b16 %v89
    %v550 = vunpack.c.l.b16 %v90
    %v551 = vunpack.c.h.b16 %v90
    %v552 = vunpack.c.l.b16 %v91
    %v553 = vunpack.c.h.b16 %v91
    %v554 = vunpack.c.l.b16 %v92
    %v555 = vunpack.c.h.b16 %v92
    %v556 = vunpack.c.l.b16 %v93
    %v557 = vunpack.c.h.b16 %v93
    %v558 = vunpack.c.l.b16 %v94
    %v559 = vunpack.c.h.b16 %v94
    %v560 = vunpack.c.l.b16 %v95
    %v561 = vunpack.c.h.b16 %v95
    %v562 = vunpack.c.l.b16 %v96
    %v563 = vunpack.c.h.b16 %v96
    %v564 = vunpack.c.l.b16 %v97
    %v565 = vunpack.c.h.b16 %v97
    %v566 = vunpack.c.l.b16 %v98
    %v567 = vunpack.c.h.b16 %v98
    %v568 = vunpack.c.l.b16 %v99
    %v569 = vunpack.c.h.b16 %v99
    %v570 = vunpack.c.l.b16 %v100
    %v571 = vunpack.c.h.b16 %v100
    %v572 = vunpack.c.l.b16 %v101
    %v573 = vunpack.c.h.b16 %v101
    %v574 = vunpack.c.l.b16 %v102
    %v575 = vunpack.c.h.b16 %v102
    %v576 = vunpack.c.l.b16 %v103
    %v577 = vunpack.c.h.b16 %v103
    %v578 = vunpack.c.l.b16 %v104
    %v579 = vunpack.c.h.b16 %v104
    %v580 = vunpack.c.l.b16 %v105
    %v581 = vunpack.c.h.b16 %v105
    %v582 = vunpack.c.l.b16 %v106
    %v583 = vunpack.c.h.b16 %v106
    %v584 = vunpack.c.l.b16 %v107
    %v585 = vunpack.c.h.b16 %v107
    %v586 = vunpack.c.l.b16 %v108
    %v587 = vunpack.c.h.b16 %v108
    %v588 = vunpack.c.l.b16 %v109
    %v589 = vunpack.c.h.b16 %v109
    %v590 = vunpack.c.l.b16 %v110
    %v591 = vunpack.c.h.b16 %v110
    %v592 = vunpack.c.l.b16 %v111
    %v593 = vunpack.c.h.b16 %v111
    %v594 = vunpack.c.l.b16 %v112
    %v595 = vunpack.c.h.b16 %v112
    %v596 = vunpack.c.l.b16 %v113
    %v597 = vunpack.c.h.b16 %v113
    %v598 = vunpack.c.l.b16 %v114
    %v599 = vunpack.c.h.b16 %v114
    %v600 = vunpack.c.l.b16 %v115
    %v601 = vunpack.c.h.b16 %v115
    %v602 = vunpack.c.l.b16 %v116
    %v603 = vunpack.c.h.b16 %v116
    %v604 = vunpack.c.l.b16 %v117
    %v605 = vunpack.c.h.b16 %v117
    %v606 = vunpack.c.l.b16 %v118
    %v607 = vunpack.c.h.b16 %v118
    %v608 = vunpack.c.l.b16 %v119
    %v609 = vunpack.c.h.b16 %v119
    %v610 = vunpack.c.l.b16 %v120
    %v611 = vunpack.c.h.b16 %v120
    %v612 = vunpack.c.l.b16 %v121
    %v613 = vunpack.c.h.b16 %v121
    %v614 = vunpack.c.l.b16 %v122
    %v615 = vunpack.c.h.b16 %v122
    %v616 = vunpack.c.l.b16 %v123
    %v617 = vunpack.c.h.b16 %v123
    %v618 = vunpack.c.l.b16 %v124
    %v619 = vunpack.c.h.b16 %v124
    %v620 = vunpack.c.l.b16 %v125
    %v621 = vunpack.c.h.b16 %v125
    %v622 = vunpack.c.l.b16 %v126
    %v623 = vunpack.c.h.b16 %v126
    %v624 = vunpack.c.l.b16 %v127
    %v625 = vunpack.c.h.b16 %v127
    %v626 = vunpack.c.l.b16 %v128
    %v627 = vunpack.c.h.b16 %v128
    %v628 = vunpack.c.l.b16 %v129
    %v629 = vunpack.c.h.b16 %v129
    %v630 = vunpack.c.l.b16 %v130
    %v631 = vunpack.c.h.b16 %v130
    %v632 = vunpack.c.l.b16 %v131
    %v633 = vunpack.c.h.b16 %v131
    %v634 = vunpack.c.l.b16 %v132
    %v635 = vunpack.c.h.b16 %v132
    %v636 = vunpack.c.l.b16 %v133
    %v637 = vunpack.c.h.b16 %v133
    %v638 = vunpack.c.l.b16 %v134
    %v639 = vunpack.c.h.b16 %v134
    %v640 = vunpack.c.l.b16 %v135
    %v641 = vunpack.c.h.b16 %v135
    %v642 = vunpack.c.l.b16 %v136
    %v643 = vunpack.c.h.b16 %v136
    %v644 = vunpack.c.l.b16 %v137
    %v645 = vunpack.c.h.b16 %v137
    %v646 = vunpack.c.l.b16 %v138
    %v647 = vunpack.c.h.b16 %v138
    %v648 = vunpack.c.l.b16 %v139
    %v649 = vunpack.c.h.b16 %v139
    %v650 = vunpack.c.l.b16 %v140
    %v651 = vunpack.c.h.b16 %v140
    %v652 = vunpack.c.l.b16 %v141
    %v653 = vunpack.c.h.b16 %v141
    %v654 = vunpack.c.l.b16 %v142
    %v655 = vunpack.c.h.b16 %v142
    %v656 = vunpack.c.l.b16 %v143
    %v657 = vunpack.c.h.b16 %v143
    %v658 = vunpack.c.l.b16 %v144
    %v659 = vunpack.c.h.b16 %v144
    %v660 = vunpack.c.l.b16 %v145
    %v661 = vunpack.c.h.b16 %v145
    %v662 = vunpack.c.l.b16 %v146
    %v663 = vunpack.c.h.b16 %v146
    %v664 = vunpack.c.l.b16 %v147
    %v665 = vunpack.c.h.b16 %v147
    %v666 = vunpack.c.l.b16 %v148
    %v667 = vunpack.c.h.b16 %v148
    %v668 = vunpack.c.l.b16 %v149
    %v669 = vunpack.c.h.b16 %v149
    %v670 = vunpack.c.l.b16 %v150
    %v671 = vunpack.c.h.b16 %v150
    %v672 = vunpack.c.l.b16 %v151
    %v673 = vunpack.c.h.b16 %v151
    %v674 = vunpack.c.l.b16 %v152
    %v675 = vunpack.c.h.b16 %v152
    %v676 = vunpack.c.l.b16 %v153
    %v677 = vunpack.c.h.b16 %v153
    %v678 = vunpack.c.l.b16 %v154
    %v679 = vunpack.c.h.b16 %v154
    %v680 = vunpack.c.l.b16 %v155
    %v681 = vunpack.c.h.b16 %v155
    %v682 = vunpack.c.l.b16 %v156
    %v683 = vunpack.c.h.b16 %v156
    %v684 = vunpack.c.l.b16 %v157
    %v685 = vunpack.c.h.b16 %v157
    %v686 = vunpack.c.l.b16 %v158
    %v687 = vunpack.c.h.b16 %v158
    %v688 = vunpack.c.l.b16 %v159
    %v689 = vunpack.c.h.b16 %v159
    %v690 = vunpack.c.l.b16 %v160
    %v691 = vunpack.c.h.b16 %v160
    %v692 = vunpack.c.l.b16 %v161
    %v693 = vunpack.c.h.b16 %v161
    %v694 = vunpack.c.l.b16 %v162
    %v695 = vunpack.c.h.b16 %v162
    %v696 = vunpack.c.l.b16 %v163
    %v697 = vunpack.c.h.b16 %v163
    %v698 = vunpack.c.l.b16 %v164
    %v699 = vunpack.c.h.b16 %v164
    %v700 = vunpack.c.l.b16 %v165
    %v701 = vunpack.c.h.b16 %v165
    %v702 = vunpack.c.l.b16 %v166
    %v703 = vunpack.c.h.b16 %v166
    %v704 = vunpack.c.l.b16 %v167
    %v705 = vunpack.c.h.b16 %v167
    %v706 = vunpack.c.l.b16 %v168
    %v707 = vunpack.c.h.b16 %v168
    %v708 = vunpack.c.l.b16 %v169
    %v709 = vunpack.c.h.b16 %v169
    %v710 = vunpack.c.l.b16 %v170
    %v711 = vunpack.c.h.b16 %v170
    %v712 = vunpack.c.l.b16 %v171
    %v713 = vunpack.c.h.b16 %v171
    %v714 = vunpack.c.l.b16 %v172
    %v715 = vunpack.c.h.b16 %v172
    %v716 = vunpack.c.l.b16 %v173
    %v717 = vunpack.c.h.b16 %v173
    %v718 = vunpack.c.l.b16 %v174
    %v719 = vunpack.c.h.b16 %v174
    %v720 = vunpack.c.l.b16 %v175
    %v721 = vunpack.c.h.b16 %v175
    %v722 = vunpack.c.l.b16 %v176
    %v723 = vunpack.c.h.b16 %v176
    %v724 = vunpack.c.l.b16 %v177
    %v725 = vunpack.c.h.b16 %v177
    %v726 = vunpack.c.l.b16 %v178
    %v727 = vunpack.c.h.b16 %v178
    %v728 = vunpack.c.l.b16 %v179
    %v729 = vunpack.c.h.b16 %v179
    %v730 = vunpack.c.l.b16 %v180
    %v731 = vunpack.c.h.b16 %v180
    %v732 = vunpack.c.l.b16 %v181
    %v733 = vunpack.c.h.b16 %v181
    %v734 = vunpack.c.l.b16 %v182
    %v735 = vunpack.c.h.b16 %v182
    %v736 = vunpack.c.l.b16 %v183
    %v737 = vunpack.c.h.b16 %v183
    %v738 = vunpack.c.l.b16 %v184
    %v739 = vunpack.c.h.b16 %v184
    %v740 = vunpack.c.l.b16 %v185
    %v741 = vunpack.c.h.b16 %v185
    %v742 = vunpack.c.l.b16 %v186
    %v743 = vunpack.c.h.b16 %v186
    %v744 = vunpack.c.l.b16 %v187
    %v745 = vunpack.c.h.b16 %v187
    %v746 = vunpack.c.l.b16 %v188
    %v747 = vunpack.c.h.b16 %v188
    %v748 = vunpack.c.l.b16 %v189
    %v749 = vunpack.c.h.b16 %v189
    %v750 = vunpack.c.l.b16 %v190
    %v751 = vunpack.c.h.b16 %v190
    %v752 = vunpack.c.l.b16 %v191
    %v753 = vunpack.c.h.b16 %v191
    %v754 = vunpack.c.l.b16 %v192
    %v755 = vunpack.c.h.b16 %v192
    %v756 = vunpack.c.l.b16 %v193
    %v757 = vunpack.c.h.b16 %v193
    %v758 = vunpack.c.l.b16 %v194
    %v759 = vunpack.c.h.b16 %v194
    %v760 = vunpack.c.l.b16 %v195
    %v761 = vunpack.c.h.b16 %v195
    %v762 = vunpack.c.l.b16 %v196
    %v763 = vunpack.c.h.b16 %v196
    %v764 = vunpack.c.l.b16 %v197
    %v765 = vunpack.c.h.b16 %v197
    %v766 = vunpack.c.l.b16 %v198
    %v767 = vunpack.c.h.b16 %v198
    %v768 = vunpack.c.l.b16 %v199
    %v769 = vunpack.c.h.b16 %v199
    %v770 = vunpack.c.l.b16 %v200
    %v771 = vunpack.c.h.b16 %v200
    %v772 = vunpack.c.l.b16 %v201
    %v773 = vunpack.c.h.b16 %v201
    %v774 = vunpack.c.l.b16 %v202
    %v775 = vunpack.c.h.b16 %v202
    %v776 = vunpack.c.l.b16 %v203
    %v777 = vunpack.c.h.b16 %v203
    %v778 = vunpack.c.l.b16 %v204
    %v779 = vunpack.c.h.b16 %v204
    %v780 = vunpack.c.l.b16 %v205
    %v781 = vunpack.c.h.b16 %v205
    %v782 = vunpack.c.l.b16 %v206
    %v783 = vunpack.c.h.b16 %v206
    %v784 = vunpack.c.l.b16 %v207
    %v785 = vunpack.c.h.b16 %v207
    %v786 = vunpack.c.l.b16 %v208
    %v787 = vunpack.c.h.b16 %v208
    %v788 = vunpack.c.l.b16 %v209
    %v789 = vunpack.c.h.b16 %v209
    %v790 = vunpack.c.l.b16 %v210
    %v791 = vunpack.c.h.b16 %v210
    %v792 = vunpack.c.l.b16 %v211
    %v793 = vunpack.c.h.b16 %v211
    %v794 = vunpack.c.l.b16 %v212
    %v795 = vunpack.c.h.b16 %v212
    %v796 = vunpack.c.l.b16 %v213
    %v797 = vunpack.c.h.b16 %v213
    %v798 = vunpack.c.l.b16 %v214
    %v799 = vunpack.c.h.b16 %v214
    %v800 = vunpack.c.l.b16 %v215
    %v801 = vunpack.c.h.b16 %v215
    %v802 = vunpack.c.l.b16 %v216
    %v803 = vunpack.c.h.b16 %v216
    %v804 = vunpack.c.l.b16 %v217
    %v805 = vunpack.c.h.b16 %v217
    %v806 = vunpack.c.l.b16 %v218
    %v807 = vunpack.c.h.b16 %v218
    %v808 = vunpack.c.l.b16 %v219
    %v809 = vunpack.c.h.b16 %v219
    %v810 = vunpack.c.l.b16 %v220
    %v811 = vunpack.c.h.b16 %v220
    %v812 = vunpack.c.l.b16 %v221
    %v813 = vunpack.c.h.b16 %v221
    %v814 = vunpack.c.l.b16 %v222
    %v815 = vunpack.c.h.b16 %v222
    %v816 = vunpack.c.l.b16 %v223
    %v817 = vunpack.c.h.b16 %v223
    %v818 = vunpack.c.l.b16 %v224
    %v819 = vunpack.c.h.b16 %v224
    %v820 = vunpack.c.l.b16 %v225
    %v821 = vunpack.c.h.b16 %v225
    %v822 = vunpack.c.l.b16 %v226
    %v823 = vunpack.c.h.b16 %v226
    %v824 = vunpack.c.l.b16 %v227
    %v825 = vunpack.c.h.b16 %v227
    %v826 = vunpack.c.l.b16 %v228
    %v827 = vunpack.c.h.b16 %v228
    %v828 = vunpack.c.l.b16 %v229
    %v829 = vunpack.c.h.b16 %v229
    %v830 = vunpack.c.l.b16 %v230
    %v831 = vunpack.c.h.b16 %v230
    %v832 = vunpack.c.l.b16 %v231
    %v833 = vunpack.c.h.b16 %v231
    %v834 = vunpack.c.l.b16 %v232
    %v835 = vunpack.c.h.b16 %v232
    %v836 = vunpack.c.l.b16 %v233
    %v837 = vunpack.c.h.b16 %v233
    %v838 = vunpack.c.l.b16 %v234
    %v839 = vunpack.c.h.b16 %v234
    %v840 = vunpack.c.l.b16 %v235
    %v841 = vunpack.c.h.b16 %v235
    %v842 = vunpack.c.l.b16 %v236
    %v843 = vunpack.c.h.b16 %v236
    %v844 = vunpack.c.l.b16 %v237
    %v845 = vunpack.c.h.b16 %v237
    %v846 = vunpack.c.l.b16 %v238
    %v847 = vunpack.c.h.b16 %v238
    %v848 = vunpack.c.l.b16 %v239
    %v849 = vunpack.c.h.b16 %v239
    %v850 = vunpack.c.l.b16 %v240
    %v851 = vunpack.c.h.b16 %v240
    %v852 = vunpack.c.l.b16 %v241
    %v853 = vunpack.c.h.b16 %v241
    %v854 = vunpack.c.l.b16 %v242
    %v855 = vunpack.c.h.b16 %v242
    %v856 = vunpack.c.l.b16 %v243
    %v857 = vunpack.c.h.b16 %v243
    %v858 = vunpack.c.l.b16 %v244
    %v859 = vunpack.c.h.b16 %v244
    %v860 = vunpack.c.l.b16 %v245
    %v861 = vunpack.c.h.b16 %v245
    %v862 = vunpack.c.l.b16 %v246
    %v863 = vunpack.c.h.b16 %v246
    %v864 = vunpack.c.l.b16 %v247
    %v865 = vunpack.c.h.b16 %v247
    %v866 = vunpack.c.l.b16 %v248
    %v867 = vunpack.c.h.b16 %v248
    %v868 = vunpack.c.l.b16 %v249
    %v869 = vunpack.c.h.b16 %v249
    %v870 = vunpack.c.l.b16 %v250
    %v871 = vunpack.c.h.b16 %v250
    %v872 = vunpack.c.l.b16 %v251
    %v873 = vunpack.c.h.b16 %v251
    %v874 = vpack.c.b16 %v486, %v482
    %v875 = vpack.c.b16 %v487, %v483
    %v876 = vpack.c.b16 %v488, %v484
    %v877 = vpack.c.b16 %v489, %v485
    %v878 = vpack.c.b16 %v494, %v490
    %v879 = vpack.c.b16 %v495, %v491
    %v880 = vpack.c.b16 %v496, %v492
    %v881 = vpack.c.b16 %v497, %v493
    %v882 = vpack.c.b16 %v502, %v498
    %v883 = vpack.c.b16 %v503, %v499
    %v884 = vpack.c.b16 %v504, %v500
    %v885 = vpack.c.b16 %v505, %v501
    %v886 = vpack.c.b16 %v510, %v506
    %v887 = vpack.c.b16 %v511, %v507
    %v888 = vpack.c.b16 %v512, %v508
    %v889 = vpack.c.b16 %v513, %v509
    %v890 = vpack.c.b16 %v518, %v514
    %v891 = vpack.c.b16 %v519, %v515
    %v892 = vpack.c.b16 %v520, %v516
    %v893 = vpack.c.b16 %v521, %v517
    %v894 = vpack.c.b16 %v526, %v522
    %v895 = vpack.c.b16 %v527, %v523
    %v896 = vpack.c.b16 %v528, %v524
    %v897 = vpack.c.b16 %v529, %v525
    %v898 = vpack.c.b16 %v534, %v530
    %v899 = vpack.c.b16 %v535, %v531
    %v900 = vpack.c.b16 %v536, %v532
    %v901 = vpack.c.b16 %v537, %v533
    %v902 = vpack.c.b16 %v542, %v538
    %v903 = vpack.c.b16 %v543, %v539
    %v904 = vpack.c.b16 %v544, %v540
    %v905 = vpack.c.b16 %v545, %v541
    %v906 = vpack.c.b16 %v550, %v546
    %v907 = vpack.c.b16 %v551, %v547
    %v908 = vpack.c.b16 %v552, %v548
    %v909 = vpack.c.b16 %v553, %v549
    %v910 = vpack.c.b16 %v558, %v554
    %v911 = vpack.c.b16 %v559, %v555
    %v912 = vpack.c.b16 %v560, %v556
    %v913 = vpack.c.b16 %v561, %v557
    %v914 = vpack.c.b16 %v566, %v562
    %v915 = vpack.c.b16 %v567, %v563
    %v916 = vpack.c.b16 %v568, %v564
    %v917 = vpack.c.b16 %v569, %v565
    %v918 = vpack.c.b16 %v574, %v570
    %v919 = vpack.c.b16 %v575, %v571
    %v920 = vpack.c.b16 %v576, %v572
    %v921 = vpack.c.b16 %v577, %v573
    %v922 = vpack.c.b16 %v582, %v578
    %v923 = vpack.c.b16 %v583, %v579
    %v924 = vpack.c.b16 %v584, %v580
    %v925 = vpack.c.b16 %v585, %v581
    %v926 = vpack.c.b16 %v590, %v586
    %v927 = vpack.c.b16 %v591, %v587
    %v928 = vpack.c.b16 %v592, %v588
    %v929 = vpack.c.b16 %v593, %v589
    %v930 = vpack.c.b16 %v598, %v594
    %v931 = vpack.c.b16 %v599, %v595
    %v932 = vpack.c.b16 %v600, %v596
    %v933 = vpack.c.b16 %v601, %v597
    %v934 = vpack.c.b16 %v606, %v602
    %v935 = vpack.c.b16 %v607, %v603
    %v936 = vpack.c.b16 %v608, %v604
    %v937 = vpack.c.b16 %v609, %v605
    %v938 = vpack.c.b16 %v614, %v610
    %v939 = vpack.c.b16 %v615, %v611
    %v940 = vpack.c.b16 %v616, %v612
    %v941 = vpack.c.b16 %v617, %v613
    %v942 = vpack.c.b16 %v622, %v618
    %v943 = vpack.c.b16 %v623, %v619
    %v944 = vpack.c.b16 %v624, %v620
    %v945 = vpack.c.b16 %v625, %v621
    %v946 = vpack.c.b16 %v630, %v626
    %v947 = vpack.c.b16 %v631, %v627
    %v948 = vpack.c.b16 %v632, %v628
    %v949 = vpack.c.b16 %v633, %v629
    %v950 = vpack.c.b16 %v638, %v634
    %v951 = vpack.c.b16 %v639, %v635
    %v952 = vpack.c.b16 %v640, %v636
    %v953 = vpack.c.b16 %v641, %v637
    %v954 = vpack.c.b16 %v646, %v642
    %v955 = vpack.c.b16 %v647, %v643
    %v956 = vpack.c.b16 %v648, %v644
    %v957 = vpack.c.b16 %v649, %v645
    %v958 = vpack.c.b16 %v654, %v650
    %v959 = vpack.c.b16 %v655, %v651
    %v960 = vpack.c.b16 %v656, %v652
    %v961 = vpack.c.b16 %v657, %v653
    %v962 = vpack.c.b16 %v662, %v658
    %v963 = vpack.c.b16 %v663, %v659
    %v964 = vpack.c.b16 %v664, %v660
    %v965 = vpack.c.b16 %v665, %v661
    %v966 = vpack.c.b16 %v670, %v666
    %v967 = vpack.c.b16 %v671, %v667
    %v968 = vpack.c.b16 %v672, %v668
    %v969 = vpack.c.b16 %v673, %v669
    %v970 = vpack.c.b16 %v678, %v674
    %v971 = vpack.c.b16 %v679, %v675
    %v972 = vpack.c.b16 %v680, %v676
    %v973 = vpack.c.b16 %v681, %v677
    %v974 = vpack.c.b16 %v686, %v682
    %v975 = vpack.c.b16 %v687, %v683
    %v976 = vpack.c.b16 %v688, %v684
    %v977 = vpack.c.b16 %v689, %v685
    %v978 = vpack.c.b16 %v694, %v690
    %v979 = vpack.c.b16 %v695, %v691
    %v980 = vpack.c.b16 %v696, %v692
    %v981 = vpack.c.b16 %v697, %v693
    %v982 = vpack.c.b16 %v702, %v698
    %v983 = vpack.c.b16 %v703, %v699
    %v984 = vpack.c.b16 %v704, %v700
    %v985 = vpack.c.b16 %v705, %v701
    %v986 = vpack.c.b16 %v710, %v706
    %v987 = vpack.c.b16 %v711, %v707
    %v988 = vpack.c.b16 %v712, %v708
    %v989 = vpack.c.b16 %v713, %v709
    %v990 = vpack.c.b16 %v718, %v714
    %v991 = vpack.c.b16 %v719, %v715
    %v992 = vpack.c.b16 %v720, %v716
    %v993 = vpack.c.b16 %v721, %v717
    %v994 = vpack.c.b16 %v726, %v722
    %v995 = vpack.c.b16 %v727, %v723
    %v996 = vpack.c.b16 %v728, %v724
    %v997 = vpack.c.b16 %v729, %v725
    %v998 = vpack.c.b16 %v734, %v730
    %v999 = vpack.c.b16 %v735, %v731
    %v1000 = vpack.c.b16 %v736, %v732
    %v1001 = vpack.c.b16 %v737, %v733
    %v1002 = vpack.c.b16 %v742, %v738
    %v1003 = vpack.c.b16 %v743, %v739
    %v1004 = vpack.c.b16 %v744, %v740
    %v1005 = vpack.c.b16 %v745, %v741
    %v1006 = vpack.c.b16 %v750, %v746
    %v1007 = vpack.c.b16 %v751, %v747
    %v1008 = vpack.c.b16 %v752, %v748
    %v1009 = vpack.c.b16 %v753, %v749
    %v1010 = vpack.c.b16 %v758, %v754
    %v1011 = vpack.c.b16 %v759, %v755
    %v1012 = vpack.c.b16 %v760, %v756
    %v1013 = vpack.c.b16 %v761, %v757
    %v1014 = vpack.c.b16 %v766, %v762
    %v1015 = vpack.c.b16 %v767, %v763
    %v1016 = vpack.c.b16 %v768, %v764
    %v1017 = vpack.c.b16 %v769, %v765
    %v1018 = vpack.c.b16 %v774, %v770
    %v1019 = vpack.c.b16 %v775, %v771
    %v1020 = vpack.c.b16 %v776, %v772
    %v1021 = vpack.c.b16 %v777, %v773
    %v1022 = vpack.c.b16 %v782, %v778
    %v1023 = vpack.c.b16 %v783, %v779
    %v1024 = vpack.c.b16 %v784, %v780
    %v1025 = vpack.c.b16 %v785, %v781
    %v1026 = vpack.c.b16 %v790, %v786
    %v1027 = vpack.c.b16 %v791, %v787
    %v1028 = vpack.c.b16 %v792, %v788
    %v1029 = vpack.c.b16 %v793, %v789
    %v1030 = vpack.c.b16 %v798, %v794
    %v1031 = vpack.c.b16 %v799, %v795
    %v1032 = vpack.c.b16 %v800, %v796
    %v1033 = vpack.c.b16 %v801, %v797
    %v1034 = vpack.c.b16 %v806, %v802
    %v1035 = vpack.c.b16 %v807, %v803
    %v1036 = vpack.c.b16 %v808, %v804
    %v1037 = vpack.c.b16 %v809, %v805
    %v1038 = vpack.c.b16 %v814, %v810
    %v1039 = vpack.c.b16 %v815, %v811
    %v1040 = vpack.c.b16 %v816, %v812
    %v1041 = vpack.c.b16 %v817, %v813
    %v1042 = vpack.c.b16 %v822, %v818
    %v1043 = vpack.c.b16 %v823, %v819
    %v1044 = vpack.c.b16 %v824, %v820
    %v1045 = vpack.c.b16 %v825, %v821
    %v1046 = vpack.c.b16 %v830, %v826
    %v1047 = vpack.c.b16 %v831, %v827
    %v1048 = vpack.c.b16 %v832, %v828
    %v1049 = vpack.c.b16 %v833, %v829
    %v1050 = vpack.c.b16 %v838, %v834
    %v1051 = vpack.c.b16 %v839, %v835
    %v1052 = vpack.c.b16 %v840, %v836
    %v1053 = vpack.c.b16 %v841, %v837
    %v1054 = vpack.c.b16 %v846, %v842
    %v1055 = vpack.c.b16 %v847, %v843
    %v1056 = vpack.c.b16 %v848, %v844
    %v1057 = vpack.c.b16 %v849, %v845
    %v1058 = vpack.c.b16 %v854, %v850
    %v1059 = vpack.c.b16 %v855, %v851
    %v1060 = vpack.c.b16 %v856, %v852
    %v1061 = vpack.c.b16 %v857, %v853
    %v1062 = vpack.c.b16 %v862, %v858
    %v1063 = vpack.c.b16 %v863, %v859
    %v1064 = vpack.c.b16 %v864, %v860
    %v1065 = vpack.c.b16 %v865, %v861
    %v1066 = vpack.c.b16 %v870, %v866
    %v1067 = vpack.c.b16 %v871, %v867
    %v1068 = vpack.c.b16 %v872, %v868
    %v1069 = vpack.c.b16 %v873, %v869
    %vm1266 = vcmask 130048
    %v1268 = vsel %vm1266, %v279, 0
    %1270 = vmatpush.bf16.msra.mxu0 %v902
    %1271 = vmatpush.bf16.msra.mxu0 %v898
    %1272 = vmatpush.bf16.msra.mxu0 %v894
    %1273 = vmatpush.bf16.msra.mxu0 %v890
    %1274 = vmatpush.bf16.msra.mxu0 %v886
    %1275 = vmatpush.bf16.msra.mxu0 %v882
    %1276 = vmatpush.bf16.msra.mxu0 %v878
    %1277 = vmatpush.bf16.msra.mxu0 %v874
    %1278 = vmatmul.bf16.gmra.mxu0 %v273
    %v1279 = vpop.f32.mrf.mxu0
    %v1280 = vadd.f32 %v254, %v1279
    %v1281 = vpop.f32.mrf.mxu0
    %1282 = vdwg.mxu0
    %1283 = vmatpush.bf16.msra.mxu0 %v934
    %1284 = vmatpush.bf16.msra.mxu0 %v930
    %1285 = vmatpush.bf16.msra.mxu0 %v926
    %1286 = vmatpush.bf16.msra.mxu0 %v922
    %1287 = vmatpush.bf16.msra.mxu0 %v918
    %1288 = vmatpush.bf16.msra.mxu0 %v914
    %1289 = vmatpush.bf16.msra.mxu0 %v910
    %1290 = vmatpush.bf16.msra.mxu0 %v906
    %1291 = vmatmul.bf16.gmra.mxu0 %v274
    %v1292 = vpop.f32.mrf.mxu0
    %v1293 = vadd.f32 %v1280, %v1292
    %v1294 = vpop.f32.mrf.mxu0
    %1295 = vdwg.mxu0
    %1296 = vmatpush.bf16.msra.mxu0 %v966
    %1297 = vmatpush.bf16.msra.mxu0 %v962
    %1298 = vmatpush.bf16.msra.mxu0 %v958
    %1299 = vmatpush.bf16.msra.mxu0 %v954
    %1300 = vmatpush.bf16.msra.mxu0 %v950
    %1301 = vmatpush.bf16.msra.mxu0 %v946
    %1302 = vmatpush.bf16.msra.mxu0 %v942
    %1303 = vmatpush.bf16.msra.mxu0 %v938
    %1304 = vmatmul.bf16.gmra.mxu0 %v275
    %v1305 = vpop.f32.mrf.mxu0
    %v1306 = vadd.f32 %v1293, %v1305
    %v1307 = vpop.f32.mrf.mxu0
    %1308 = vdwg.mxu0
    %1309 = vmatpush.bf16.msra.mxu0 %v998
    %1310 = vmatpush.bf16.msra.mxu0 %v994
    %1311 = vmatpush.bf16.msra.mxu0 %v990
    %1312 = vmatpush.bf16.msra.mxu0 %v986
    %1313 = vmatpush.bf16.msra.mxu0 %v982
    %1314 = vmatpush.bf16.msra.mxu0 %v978
    %1315 = vmatpush.bf16.msra.mxu0 %v974
    %1316 = vmatpush.bf16.msra.mxu0 %v970
    %1317 = vmatmul.bf16.gmra.mxu0 %v276
    %v1318 = vpop.f32.mrf.mxu0
    %v1319 = vadd.f32 %v1306, %v1318
    %v1320 = vpop.f32.mrf.mxu0
    %1321 = vdwg.mxu0
    %1322 = vmatpush.bf16.msra.mxu0 %v1030
    %1323 = vmatpush.bf16.msra.mxu0 %v1026
    %1324 = vmatpush.bf16.msra.mxu0 %v1022
    %1325 = vmatpush.bf16.msra.mxu0 %v1018
    %1326 = vmatpush.bf16.msra.mxu0 %v1014
    %1327 = vmatpush.bf16.msra.mxu0 %v1010
    %1328 = vmatpush.bf16.msra.mxu0 %v1006
    %1329 = vmatpush.bf16.msra.mxu0 %v1002
    %1330 = vmatmul.bf16.gmra.mxu0 %v277
    %v1331 = vpop.f32.mrf.mxu0
    %v1332 = vadd.f32 %v1319, %v1331
    %v1333 = vpop.f32.mrf.mxu0
    %1334 = vdwg.mxu0
    %1335 = vmatpush.bf16.msra.mxu0 %v1062
    %1336 = vmatpush.bf16.msra.mxu0 %v1058
    %1337 = vmatpush.bf16.msra.mxu0 %v1054
    %1338 = vmatpush.bf16.msra.mxu0 %v1050
    %1339 = vmatpush.bf16.msra.mxu0 %v1046
    %1340 = vmatpush.bf16.msra.mxu0 %v1042
    %1341 = vmatpush.bf16.msra.mxu0 %v1038
    %1342 = vmatpush.bf16.msra.mxu0 %v1034
    %1343 = vmatmul.bf16.gmra.mxu0 %v278
    %v1344 = vpop.f32.mrf.mxu0
    %v1345 = vadd.f32 %v1332, %v1344
    %v1346 = vpop.f32.mrf.mxu0
    %1347 = vdwg.mxu0
    %1348 = vmatpush.bf16.msra.mxu0 0
    %1349 = vmatpush.bf16.msra.mxu0 0
    %1350 = vmatpush.bf16.msra.mxu0 0
    %1351 = vmatpush.bf16.msra.mxu0 0
    %1352 = vmatpush.bf16.msra.mxu0 0
    %1353 = vmatpush.bf16.msra.mxu0 0
    %1354 = vmatpush.bf16.msra.mxu0 0
    %1355 = vmatpush.bf16.msra.mxu0 %v1066
    %1356 = vmatmul.bf16.gmra.mxu0 %v1268
    %v1357 = vpop.f32.mrf.mxu0
    %v1358 = vadd.f32 %v1345, %v1357
    %v1359 = vpop.f32.mrf.mxu0
    %1360 = vdwg.mxu0
    %1361 = vmatpush.bf16.msra.mxu0 %v903
    %1362 = vmatpush.bf16.msra.mxu0 %v899
    %1363 = vmatpush.bf16.msra.mxu0 %v895
    %1364 = vmatpush.bf16.msra.mxu0 %v891
    %1365 = vmatpush.bf16.msra.mxu0 %v887
    %1366 = vmatpush.bf16.msra.mxu0 %v883
    %1367 = vmatpush.bf16.msra.mxu0 %v879
    %1368 = vmatpush.bf16.msra.mxu0 %v875
    %1369 = vmatmul.bf16.gmra.mxu0 %v273
    %v1370 = vpop.f32.mrf.mxu0
    %v1371 = vadd.f32 %v255, %v1370
    %v1372 = vpop.f32.mrf.mxu0
    %1373 = vdwg.mxu0
    %1374 = vmatpush.bf16.msra.mxu0 %v935
    %1375 = vmatpush.bf16.msra.mxu0 %v931
    %1376 = vmatpush.bf16.msra.mxu0 %v927
    %1377 = vmatpush.bf16.msra.mxu0 %v923
    %1378 = vmatpush.bf16.msra.mxu0 %v919
    %1379 = vmatpush.bf16.msra.mxu0 %v915
    %1380 = vmatpush.bf16.msra.mxu0 %v911
    %1381 = vmatpush.bf16.msra.mxu0 %v907
    %1382 = vmatmul.bf16.gmra.mxu0 %v274
    %v1383 = vpop.f32.mrf.mxu0
    %v1384 = vadd.f32 %v1371, %v1383
    %v1385 = vpop.f32.mrf.mxu0
    %1386 = vdwg.mxu0
    %1387 = vmatpush.bf16.msra.mxu0 %v967
    %1388 = vmatpush.bf16.msra.mxu0 %v963
    %1389 = vmatpush.bf16.msra.mxu0 %v959
    %1390 = vmatpush.bf16.msra.mxu0 %v955
    %1391 = vmatpush.bf16.msra.mxu0 %v951
    %1392 = vmatpush.bf16.msra.mxu0 %v947
    %1393 = vmatpush.bf16.msra.mxu0 %v943
    %1394 = vmatpush.bf16.msra.mxu0 %v939
    %1395 = vmatmul.bf16.gmra.mxu0 %v275
    %v1396 = vpop.f32.mrf.mxu0
    %v1397 = vadd.f32 %v1384, %v1396
    %v1398 = vpop.f32.mrf.mxu0
    %1399 = vdwg.mxu0
    %1400 = vmatpush.bf16.msra.mxu0 %v999
    %1401 = vmatpush.bf16.msra.mxu0 %v995
    %1402 = vmatpush.bf16.msra.mxu0 %v991
    %1403 = vmatpush.bf16.msra.mxu0 %v987
    %1404 = vmatpush.bf16.msra.mxu0 %v983
    %1405 = vmatpush.bf16.msra.mxu0 %v979
    %1406 = vmatpush.bf16.msra.mxu0 %v975
    %1407 = vmatpush.bf16.msra.mxu0 %v971
    %1408 = vmatmul.bf16.gmra.mxu0 %v276
    %v1409 = vpop.f32.mrf.mxu0
    %v1410 = vadd.f32 %v1397, %v1409
    %v1411 = vpop.f32.mrf.mxu0
    %1412 = vdwg.mxu0
    %1413 = vmatpush.bf16.msra.mxu0 %v1031
    %1414 = vmatpush.bf16.msra.mxu0 %v1027
    %1415 = vmatpush.bf16.msra.mxu0 %v1023
    %1416 = vmatpush.bf16.msra.mxu0 %v1019
    %1417 = vmatpush.bf16.msra.mxu0 %v1015
    %1418 = vmatpush.bf16.msra.mxu0 %v1011
    %1419 = vmatpush.bf16.msra.mxu0 %v1007
    %1420 = vmatpush.bf16.msra.mxu0 %v1003
    %1421 = vmatmul.bf16.gmra.mxu0 %v277
    %v1422 = vpop.f32.mrf.mxu0
    %v1423 = vadd.f32 %v1410, %v1422
    %v1424 = vpop.f32.mrf.mxu0
    %1425 = vdwg.mxu0
    %1426 = vmatpush.bf16.msra.mxu0 %v1063
    %1427 = vmatpush.bf16.msra.mxu0 %v1059
    %1428 = vmatpush.bf16.msra.mxu0 %v1055
    %1429 = vmatpush.bf16.msra.mxu0 %v1051
    %1430 = vmatpush.bf16.msra.mxu0 %v1047
    %1431 = vmatpush.bf16.msra.mxu0 %v1043
    %1432 = vmatpush.bf16.msra.mxu0 %v1039
    %1433 = vmatpush.bf16.msra.mxu0 %v1035
    %1434 = vmatmul.bf16.gmra.mxu0 %v278
    %v1435 = vpop.f32.mrf.mxu0
    %v1436 = vadd.f32 %v1423, %v1435
    %v1437 = vpop.f32.mrf.mxu0
    %1438 = vdwg.mxu0
    %1439 = vmatpush.bf16.msra.mxu0 0
    %1440 = vmatpush.bf16.msra.mxu0 0
    %1441 = vmatpush.bf16.msra.mxu0 0
    %1442 = vmatpush.bf16.msra.mxu0 0
    %1443 = vmatpush.bf16.msra.mxu0 0
    %1444 = vmatpush.bf16.msra.mxu0 0
    %1445 = vmatpush.bf16.msra.mxu0 0
    %1446 = vmatpush.bf16.msra.mxu0 %v1067
    %1447 = vmatmul.bf16.gmra.mxu0 %v1268
    %v1448 = vpop.f32.mrf.mxu0
    %v1449 = vadd.f32 %v1436, %v1448
    %v1450 = vpop.f32.mrf.mxu0
    %1451 = vdwg.mxu0
    %1452 = vmatpush.bf16.msra.mxu0 %v904
    %1453 = vmatpush.bf16.msra.mxu0 %v900
    %1454 = vmatpush.bf16.msra.mxu0 %v896
    %1455 = vmatpush.bf16.msra.mxu0 %v892
    %1456 = vmatpush.bf16.msra.mxu0 %v888
    %1457 = vmatpush.bf16.msra.mxu0 %v884
    %1458 = vmatpush.bf16.msra.mxu0 %v880
    %1459 = vmatpush.bf16.msra.mxu0 %v876
    %1460 = vmatmul.bf16.gmra.mxu0 %v273
    %v1461 = vpop.f32.mrf.mxu0
    %v1462 = vadd.f32 %v256, %v1461
    %v1463 = vpop.f32.mrf.mxu0
    %1464 = vdwg.mxu0
    %1465 = vmatpush.bf16.msra.mxu0 %v936
    %1466 = vmatpush.bf16.msra.mxu0 %v932
    %1467 = vmatpush.bf16.msra.mxu0 %v928
    %1468 = vmatpush.bf16.msra.mxu0 %v924
    %1469 = vmatpush.bf16.msra.mxu0 %v920
    %1470 = vmatpush.bf16.msra.mxu0 %v916
    %1471 = vmatpush.bf16.msra.mxu0 %v912
    %1472 = vmatpush.bf16.msra.mxu0 %v908
    %1473 = vmatmul.bf16.gmra.mxu0 %v274
    %v1474 = vpop.f32.mrf.mxu0
    %v1475 = vadd.f32 %v1462, %v1474
    %v1476 = vpop.f32.mrf.mxu0
    %1477 = vdwg.mxu0
    %1478 = vmatpush.bf16.msra.mxu0 %v968
    %1479 = vmatpush.bf16.msra.mxu0 %v964
    %1480 = vmatpush.bf16.msra.mxu0 %v960
    %1481 = vmatpush.bf16.msra.mxu0 %v956
    %1482 = vmatpush.bf16.msra.mxu0 %v952
    %1483 = vmatpush.bf16.msra.mxu0 %v948
    %1484 = vmatpush.bf16.msra.mxu0 %v944
    %1485 = vmatpush.bf16.msra.mxu0 %v940
    %1486 = vmatmul.bf16.gmra.mxu0 %v275
    %v1487 = vpop.f32.mrf.mxu0
    %v1488 = vadd.f32 %v1475, %v1487
    %v1489 = vpop.f32.mrf.mxu0
    %1490 = vdwg.mxu0
    %1491 = vmatpush.bf16.msra.mxu0 %v1000
    %1492 = vmatpush.bf16.msra.mxu0 %v996
    %1493 = vmatpush.bf16.msra.mxu0 %v992
    %1494 = vmatpush.bf16.msra.mxu0 %v988
    %1495 = vmatpush.bf16.msra.mxu0 %v984
    %1496 = vmatpush.bf16.msra.mxu0 %v980
    %1497 = vmatpush.bf16.msra.mxu0 %v976
    %1498 = vmatpush.bf16.msra.mxu0 %v972
    %1499 = vmatmul.bf16.gmra.mxu0 %v276
    %v1500 = vpop.f32.mrf.mxu0
    %v1501 = vadd.f32 %v1488, %v1500
    %v1502 = vpop.f32.mrf.mxu0
    %1503 = vdwg.mxu0
    %1504 = vmatpush.bf16.msra.mxu0 %v1032
    %1505 = vmatpush.bf16.msra.mxu0 %v1028
    %1506 = vmatpush.bf16.msra.mxu0 %v1024
    %1507 = vmatpush.bf16.msra.mxu0 %v1020
    %1508 = vmatpush.bf16.msra.mxu0 %v1016
    %1509 = vmatpush.bf16.msra.mxu0 %v1012
    %1510 = vmatpush.bf16.msra.mxu0 %v1008
    %1511 = vmatpush.bf16.msra.mxu0 %v1004
    %1512 = vmatmul.bf16.gmra.mxu0 %v277
    %v1513 = vpop.f32.mrf.mxu0
    %v1514 = vadd.f32 %v1501, %v1513
    %v1515 = vpop.f32.mrf.mxu0
    %1516 = vdwg.mxu0
    %1517 = vmatpush.bf16.msra.mxu0 %v1064
    %1518 = vmatpush.bf16.msra.mxu0 %v1060
    %1519 = vmatpush.bf16.msra.mxu0 %v1056
    %1520 = vmatpush.bf16.msra.mxu0 %v1052
    %1521 = vmatpush.bf16.msra.mxu0 %v1048
    %1522 = vmatpush.bf16.msra.mxu0 %v1044
    %1523 = vmatpush.bf16.msra.mxu0 %v1040
    %1524 = vmatpush.bf16.msra.mxu0 %v1036
    %1525 = vmatmul.bf16.gmra.mxu0 %v278
    %v1526 = vpop.f32.mrf.mxu0
    %v1527 = vadd.f32 %v1514, %v1526
    %v1528 = vpop.f32.mrf.mxu0
    %1529 = vdwg.mxu0
    %1530 = vmatpush.bf16.msra.mxu0 0
    %1531 = vmatpush.bf16.msra.mxu0 0
    %1532 = vmatpush.bf16.msra.mxu0 0
    %1533 = vmatpush.bf16.msra.mxu0 0
    %1534 = vmatpush.bf16.msra.mxu0 0
    %1535 = vmatpush.bf16.msra.mxu0 0
    %1536 = vmatpush.bf16.msra.mxu0 0
    %1537 = vmatpush.bf16.msra.mxu0 %v1068
    %1538 = vmatmul.bf16.gmra.mxu0 %v1268
    %v1539 = vpop.f32.mrf.mxu0
    %v1540 = vadd.f32 %v1527, %v1539
    %v1541 = vpop.f32.mrf.mxu0
    %1542 = vdwg.mxu0
    %1543 = vmatpush.bf16.msra.mxu0 %v905
    %1544 = vmatpush.bf16.msra.mxu0 %v901
    %1545 = vmatpush.bf16.msra.mxu0 %v897
    %1546 = vmatpush.bf16.msra.mxu0 %v893
    %1547 = vmatpush.bf16.msra.mxu0 %v889
    %1548 = vmatpush.bf16.msra.mxu0 %v885
    %1549 = vmatpush.bf16.msra.mxu0 %v881
    %1550 = vmatpush.bf16.msra.mxu0 %v877
    %1551 = vmatmul.bf16.gmra.mxu0 %v273
    %v1552 = vpop.f32.mrf.mxu0
    %v1553 = vadd.f32 %v257, %v1552
    %v1554 = vpop.f32.mrf.mxu0
    %1555 = vdwg.mxu0
    %1556 = vmatpush.bf16.msra.mxu0 %v937
    %1557 = vmatpush.bf16.msra.mxu0 %v933
    %1558 = vmatpush.bf16.msra.mxu0 %v929
    %1559 = vmatpush.bf16.msra.mxu0 %v925
    %1560 = vmatpush.bf16.msra.mxu0 %v921
    %1561 = vmatpush.bf16.msra.mxu0 %v917
    %1562 = vmatpush.bf16.msra.mxu0 %v913
    %1563 = vmatpush.bf16.msra.mxu0 %v909
    %1564 = vmatmul.bf16.gmra.mxu0 %v274
    %v1565 = vpop.f32.mrf.mxu0
    %v1566 = vadd.f32 %v1553, %v1565
    %v1567 = vpop.f32.mrf.mxu0
    %1568 = vdwg.mxu0
    %1569 = vmatpush.bf16.msra.mxu0 %v969
    %1570 = vmatpush.bf16.msra.mxu0 %v965
    %1571 = vmatpush.bf16.msra.mxu0 %v961
    %1572 = vmatpush.bf16.msra.mxu0 %v957
    %1573 = vmatpush.bf16.msra.mxu0 %v953
    %1574 = vmatpush.bf16.msra.mxu0 %v949
    %1575 = vmatpush.bf16.msra.mxu0 %v945
    %1576 = vmatpush.bf16.msra.mxu0 %v941
    %1577 = vmatmul.bf16.gmra.mxu0 %v275
    %v1578 = vpop.f32.mrf.mxu0
    %v1579 = vadd.f32 %v1566, %v1578
    %v1580 = vpop.f32.mrf.mxu0
    %1581 = vdwg.mxu0
    %1582 = vmatpush.bf16.msra.mxu0 %v1001
    %1583 = vmatpush.bf16.msra.mxu0 %v997
    %1584 = vmatpush.bf16.msra.mxu0 %v993
    %1585 = vmatpush.bf16.msra.mxu0 %v989
    %1586 = vmatpush.bf16.msra.mxu0 %v985
    %1587 = vmatpush.bf16.msra.mxu0 %v981
    %1588 = vmatpush.bf16.msra.mxu0 %v977
    %1589 = vmatpush.bf16.msra.mxu0 %v973
    %1590 = vmatmul.bf16.gmra.mxu0 %v276
    %v1591 = vpop.f32.mrf.mxu0
    %v1592 = vadd.f32 %v1579, %v1591
    %v1593 = vpop.f32.mrf.mxu0
    %1594 = vdwg.mxu0
    %1595 = vmatpush.bf16.msra.mxu0 %v1033
    %1596 = vmatpush.bf16.msra.mxu0 %v1029
    %1597 = vmatpush.bf16.msra.mxu0 %v1025
    %1598 = vmatpush.bf16.msra.mxu0 %v1021
    %1599 = vmatpush.bf16.msra.mxu0 %v1017
    %1600 = vmatpush.bf16.msra.mxu0 %v1013
    %1601 = vmatpush.bf16.msra.mxu0 %v1009
    %1602 = vmatpush.bf16.msra.mxu0 %v1005
    %1603 = vmatmul.bf16.gmra.mxu0 %v277
    %v1604 = vpop.f32.mrf.mxu0
    %v1605 = vadd.f32 %v1592, %v1604
    %v1606 = vpop.f32.mrf.mxu0
    %1607 = vdwg.mxu0
    %1608 = vmatpush.bf16.msra.mxu0 %v1065
    %1609 = vmatpush.bf16.msra.mxu0 %v1061
    %1610 = vmatpush.bf16.msra.mxu0 %v1057
    %1611 = vmatpush.bf16.msra.mxu0 %v1053
    %1612 = vmatpush.bf16.msra.mxu0 %v1049
    %1613 = vmatpush.bf16.msra.mxu0 %v1045
    %1614 = vmatpush.bf16.msra.mxu0 %v1041
    %1615 = vmatpush.bf16.msra.mxu0 %v1037
    %1616 = vmatmul.bf16.gmra.mxu0 %v278
    %v1617 = vpop.f32.mrf.mxu0
    %v1618 = vadd.f32 %v1605, %v1617
    %v1619 = vpop.f32.mrf.mxu0
    %1620 = vdwg.mxu0
    %1621 = vmatpush.bf16.msra.mxu0 0
    %1622 = vmatpush.bf16.msra.mxu0 0
    %1623 = vmatpush.bf16.msra.mxu0 0
    %1624 = vmatpush.bf16.msra.mxu0 0
    %1625 = vmatpush.bf16.msra.mxu0 0
    %1626 = vmatpush.bf16.msra.mxu0 0
    %1627 = vmatpush.bf16.msra.mxu0 0
    %1628 = vmatpush.bf16.msra.mxu0 %v1069
    %1629 = vmatmul.bf16.gmra.mxu0 %v1268
    %v1630 = vpop.f32.mrf.mxu0
    %v1631 = vadd.f32 %v1618, %v1630
    %v1632 = vpop.f32.mrf.mxu0
    %1633 = vdwg.mxu0
    %v1634 = vmax.f32 %v1358, 0.0
    %v1635 = vmax.f32 %v1449, 0.0
    %v1636 = vmax.f32 %v1540, 0.0
    %v1637 = vmax.f32 %v1631, 0.0
    %v1638 = vpack.c.bf16 %v1634, %v1634
    %v1639 = vpack.c.bf16 %v1635, %v1635
    %v1640 = vpack.c.bf16 %v1636, %v1636
    %v1641 = vpack.c.bf16 %v1637, %v1637
    %v1642 = vld [vmem:[%s4] sm:$0xf]
    %v1643 = vld [vmem:[%s4 + $0x4] sm:$0xf]
    %v1644 = vld [vmem:[%s4 + $0x8] sm:$0xf]
    %v1645 = vld [vmem:[%s4 + $0xc] sm:$0xf]
    %v1646 = vld [vmem:[%s4 + $0x10] sm:$0xf]
    %v1647 = vld [vmem:[%s4 + $0x14] sm:$0xf]
    %v1648 = vld [vmem:[%s4 + $0x18] sm:$0xf]
    %v1649 = vld [vmem:[%s4 + $0x1c] sm:$0xf]
    %v1650 = vld [vmem:[%s4 + $0x20] sm:$0xf]
    %v1651 = vld [vmem:[%s4 + $0x24] sm:$0xf]
    %v1652 = vld [vmem:[%s4 + $0x28] sm:$0xf]
    %v1653 = vld [vmem:[%s4 + $0x2c] sm:$0xf]
    %v1654 = vld [vmem:[%s4 + $0x30] sm:$0xf]
    %v1655 = vld [vmem:[%s4 + $0x34] sm:$0xf]
    %v1656 = vld [vmem:[%s4 + $0x38] sm:$0xf]
    %v1657 = vld [vmem:[%s4 + $0x3c] sm:$0xf]
    %v1658 = vld [vmem:[%s4 + $0x40] sm:$0xf]
    %v1659 = vld [vmem:[%s4 + $0x44] sm:$0xf]
    %v1660 = vld [vmem:[%s4 + $0x48] sm:$0xf]
    %v1661 = vld [vmem:[%s4 + $0x4c] sm:$0xf]
    %v1662 = vld [vmem:[%s4 + $0x50] sm:$0xf]
    %v1663 = vld [vmem:[%s4 + $0x54] sm:$0xf]
    %v1664 = vld [vmem:[%s4 + $0x58] sm:$0xf]
    %v1665 = vld [vmem:[%s4 + $0x5c] sm:$0xf]
    %v1666 = vld [vmem:[%s4 + $0x60] sm:$0xf]
    %v1667 = vld [vmem:[%s4 + $0x64] sm:$0xf]
    %v1668 = vld [vmem:[%s4 + $0x68] sm:$0xf]
    %v1669 = vld [vmem:[%s4 + $0x6c] sm:$0xf]
    %v1670 = vld [vmem:[%s4 + $0x70] sm:$0xf]
    %v1671 = vld [vmem:[%s4 + $0x74] sm:$0xf]
    %v1672 = vld [vmem:[%s4 + $0x78] sm:$0xf]
    %v1673 = vld [vmem:[%s4 + $0x7c] sm:$0xf]
    %v1674 = vld [vmem:[%s4 + $0x80] sm:$0xf]
    %v1675 = vld [vmem:[%s4 + $0x84] sm:$0xf]
    %v1676 = vld [vmem:[%s4 + $0x88] sm:$0xf]
    %v1677 = vld [vmem:[%s4 + $0x8c] sm:$0xf]
    %v1678 = vld [vmem:[%s4 + $0x90] sm:$0xf]
    %v1679 = vld [vmem:[%s4 + $0x94] sm:$0xf]
    %v1680 = vld [vmem:[%s4 + $0x98] sm:$0xf]
    %v1681 = vld [vmem:[%s4 + $0x9c] sm:$0xf]
    %v1682 = vld [vmem:[%s4 + $0xa0] sm:$0xf]
    %v1683 = vld [vmem:[%s4 + $0xa4] sm:$0xf]
    %v1684 = vld [vmem:[%s4 + $0xa8] sm:$0xf]
    %v1685 = vld [vmem:[%s4 + $0xac] sm:$0xf]
    %v1686 = vld [vmem:[%s4 + $0xb0] sm:$0xf]
    %v1687 = vld [vmem:[%s4 + $0xb4] sm:$0xf]
    %v1688 = vld [vmem:[%s4 + $0xb8] sm:$0xf]
    %v1689 = vld [vmem:[%s4 + $0xbc] sm:$0xf]
    %v1690 = vld [vmem:[%s4 + $0xc0] sm:$0xf]
    %v1691 = vld [vmem:[%s4 + $0xc4] sm:$0xf]
    %v1692 = vld [vmem:[%s5] sm:$0x1]
    %v1694 = vperm.slane %v1692, 0
    %v1746 = vunpack.c.l.b16 %v1642
    %v1747 = vunpack.c.l.b16 %v1643
    %v1748 = vunpack.c.l.b16 %v1644
    %v1749 = vunpack.c.l.b16 %v1645
    %v1750 = vunpack.c.l.b16 %v1646
    %v1751 = vunpack.c.l.b16 %v1647
    %v1752 = vunpack.c.l.b16 %v1648
    %v1753 = vunpack.c.l.b16 %v1649
    %v1754 = vunpack.c.l.b16 %v1650
    %v1755 = vunpack.c.l.b16 %v1651
    %v1756 = vunpack.c.l.b16 %v1652
    %v1757 = vunpack.c.l.b16 %v1653
    %v1758 = vunpack.c.l.b16 %v1654
    %v1759 = vunpack.c.l.b16 %v1655
    %v1760 = vunpack.c.l.b16 %v1656
    %v1761 = vunpack.c.l.b16 %v1657
    %v1762 = vunpack.c.l.b16 %v1658
    %v1763 = vunpack.c.l.b16 %v1659
    %v1764 = vunpack.c.l.b16 %v1660
    %v1765 = vunpack.c.l.b16 %v1661
    %v1766 = vunpack.c.l.b16 %v1662
    %v1767 = vunpack.c.l.b16 %v1663
    %v1768 = vunpack.c.l.b16 %v1664
    %v1769 = vunpack.c.l.b16 %v1665
    %v1770 = vunpack.c.l.b16 %v1666
    %v1771 = vunpack.c.l.b16 %v1667
    %v1772 = vunpack.c.l.b16 %v1668
    %v1773 = vunpack.c.l.b16 %v1669
    %v1774 = vunpack.c.l.b16 %v1670
    %v1775 = vunpack.c.l.b16 %v1671
    %v1776 = vunpack.c.l.b16 %v1672
    %v1777 = vunpack.c.l.b16 %v1673
    %v1778 = vunpack.c.l.b16 %v1674
    %v1779 = vunpack.c.l.b16 %v1675
    %v1780 = vunpack.c.l.b16 %v1676
    %v1781 = vunpack.c.l.b16 %v1677
    %v1782 = vunpack.c.l.b16 %v1678
    %v1783 = vunpack.c.l.b16 %v1679
    %v1784 = vunpack.c.l.b16 %v1680
    %v1785 = vunpack.c.l.b16 %v1681
    %v1786 = vunpack.c.l.b16 %v1682
    %v1787 = vunpack.c.l.b16 %v1683
    %v1788 = vunpack.c.l.b16 %v1684
    %v1789 = vunpack.c.l.b16 %v1685
    %v1790 = vunpack.c.l.b16 %v1686
    %v1791 = vunpack.c.l.b16 %v1687
    %v1792 = vunpack.c.l.b16 %v1688
    %v1793 = vunpack.c.l.b16 %v1689
    %v1794 = vunpack.c.l.b16 %v1690
    %v1795 = vunpack.c.l.b16 %v1691
    %v1796 = vpack.c.b16 %v1747, %v1746
    %v1797 = vpack.c.b16 %v1749, %v1748
    %v1798 = vpack.c.b16 %v1751, %v1750
    %v1799 = vpack.c.b16 %v1753, %v1752
    %v1800 = vpack.c.b16 %v1755, %v1754
    %v1801 = vpack.c.b16 %v1757, %v1756
    %v1802 = vpack.c.b16 %v1759, %v1758
    %v1803 = vpack.c.b16 %v1761, %v1760
    %v1804 = vpack.c.b16 %v1763, %v1762
    %v1805 = vpack.c.b16 %v1765, %v1764
    %v1806 = vpack.c.b16 %v1767, %v1766
    %v1807 = vpack.c.b16 %v1769, %v1768
    %v1808 = vpack.c.b16 %v1771, %v1770
    %v1809 = vpack.c.b16 %v1773, %v1772
    %v1810 = vpack.c.b16 %v1775, %v1774
    %v1811 = vpack.c.b16 %v1777, %v1776
    %v1812 = vpack.c.b16 %v1779, %v1778
    %v1813 = vpack.c.b16 %v1781, %v1780
    %v1814 = vpack.c.b16 %v1783, %v1782
    %v1815 = vpack.c.b16 %v1785, %v1784
    %v1816 = vpack.c.b16 %v1787, %v1786
    %v1817 = vpack.c.b16 %v1789, %v1788
    %v1818 = vpack.c.b16 %v1791, %v1790
    %v1819 = vpack.c.b16 %v1793, %v1792
    %v1820 = vpack.c.b16 %v1795, %v1794
    %v1847 = vsel %vm1266, %v1641, 0
    %1849 = vmatpush.bf16.msra.mxu0 %v1803
    %1850 = vmatpush.bf16.msra.mxu0 %v1802
    %1851 = vmatpush.bf16.msra.mxu0 %v1801
    %1852 = vmatpush.bf16.msra.mxu0 %v1800
    %1853 = vmatpush.bf16.msra.mxu0 %v1799
    %1854 = vmatpush.bf16.msra.mxu0 %v1798
    %1855 = vmatpush.bf16.msra.mxu0 %v1797
    %1856 = vmatpush.bf16.msra.mxu0 %v1796
    %1857 = vmatmul.bf16.gmra.mxu0 %v1638
    %v1858 = vpop.f32.mrf.mxu0
    %v1859 = vadd.f32 %v1694, %v1858
    %v1860 = vpop.f32.mrf.mxu0
    %1861 = vdwg.mxu0
    %1862 = vmatpush.bf16.msra.mxu0 %v1811
    %1863 = vmatpush.bf16.msra.mxu0 %v1810
    %1864 = vmatpush.bf16.msra.mxu0 %v1809
    %1865 = vmatpush.bf16.msra.mxu0 %v1808
    %1866 = vmatpush.bf16.msra.mxu0 %v1807
    %1867 = vmatpush.bf16.msra.mxu0 %v1806
    %1868 = vmatpush.bf16.msra.mxu0 %v1805
    %1869 = vmatpush.bf16.msra.mxu0 %v1804
    %1870 = vmatmul.bf16.gmra.mxu0 %v1639
    %v1871 = vpop.f32.mrf.mxu0
    %v1872 = vadd.f32 %v1859, %v1871
    %v1873 = vpop.f32.mrf.mxu0
    %1874 = vdwg.mxu0
    %1875 = vmatpush.bf16.msra.mxu0 %v1819
    %1876 = vmatpush.bf16.msra.mxu0 %v1818
    %1877 = vmatpush.bf16.msra.mxu0 %v1817
    %1878 = vmatpush.bf16.msra.mxu0 %v1816
    %1879 = vmatpush.bf16.msra.mxu0 %v1815
    %1880 = vmatpush.bf16.msra.mxu0 %v1814
    %1881 = vmatpush.bf16.msra.mxu0 %v1813
    %1882 = vmatpush.bf16.msra.mxu0 %v1812
    %1883 = vmatmul.bf16.gmra.mxu0 %v1640
    %v1884 = vpop.f32.mrf.mxu0
    %v1885 = vadd.f32 %v1872, %v1884
    %v1886 = vpop.f32.mrf.mxu0
    %1887 = vdwg.mxu0
    %1888 = vmatpush.bf16.msra.mxu0 0
    %1889 = vmatpush.bf16.msra.mxu0 0
    %1890 = vmatpush.bf16.msra.mxu0 0
    %1891 = vmatpush.bf16.msra.mxu0 0
    %1892 = vmatpush.bf16.msra.mxu0 0
    %1893 = vmatpush.bf16.msra.mxu0 0
    %1894 = vmatpush.bf16.msra.mxu0 0
    %1895 = vmatpush.bf16.msra.mxu0 %v1820
    %1896 = vmatmul.bf16.gmra.mxu0 %v1847
    %v1897 = vpop.f32.mrf.mxu0
    %v1898 = vadd.f32 %v1885, %v1897
    %v1899 = vpop.f32.mrf.mxu0
    %1900 = vdwg.mxu0
    %v1901 = vmul.f32 %v1898, 0.5
    %v1902 = vmul.f32 %v1901, 1.442695
    %v1903 = vpow.pop %v1902
    %v1904 = vld [vmem:[%s1] sm:$0xff]
    %1906 = vrot.lane.b32.xlu0 %v1903, 108
    %v1907 = vpop.permute.xlu0 %1906
    %v1909 = vmul.f32 %v1904, %v1907
    %v1910 = vadd.f32 %v1898, %v1909
    %v1911 = vpack.c.bf16 %v1910, %v1910
    %v1912 = vld [vmem:[%s10] sm:$0xf]
    %v1913 = vld [vmem:[%s10 + $0x4] sm:$0xf]
    %v1914 = vld [vmem:[%s10 + $0x8] sm:$0x3]
    %v1915 = vld [vmem:[%s11] sm:$0x1]
    %v1917 = vperm.slane %v1915, 0
    %v1922 = vunpack.c.l.b16 %v1912
    %v1923 = vunpack.c.l.b16 %v1913
    %v1924 = vunpack.c.l.b16 %v1914
    %v1925 = vpack.c.b16 %v1923, %v1922
    %v1926 = vpack.c.b16 %v1924, %v1924
    %vm1928 = vcmask 162816
    %v1930 = vsel %vm1928, %v1911, 0
    %vm1932 = vcmask 1041408
    %v1934 = vsel %vm1932, %v1926, 0
    %1936 = vmatpush.bf16.msra.mxu0 0
    %1937 = vmatpush.bf16.msra.mxu0 0
    %1938 = vmatpush.bf16.msra.mxu0 0
    %1939 = vmatpush.bf16.msra.mxu0 0
    %1940 = vmatpush.bf16.msra.mxu0 0
    %1941 = vmatpush.bf16.msra.mxu0 0
    %1942 = vmatpush.bf16.msra.mxu0 %v1934
    %1943 = vmatpush.bf16.msra.mxu0 %v1925
    %1944 = vmatmul.bf16.gmra.mxu0 %v1930
    %v1945 = vpop.f32.mrf.mxu0
    %v1946 = vadd.f32 %v1917, %v1945
    %v1947 = vpop.f32.mrf.mxu0
    %1948 = vdwg.mxu0
    %v1949 = vmax.f32 %v1946, 0.0
    %v1950 = vpack.c.bf16 %v1949, %v1949
    %v1951 = vld [vmem:[%s12] sm:$0xf]
    %v1952 = vld [vmem:[%s12 + $0x4] sm:$0x1]
    %v1953 = vld [vmem:[%s13] sm:$0x1]
    %v1955 = vperm.slane %v1953, 0
    %v1959 = vunpack.c.l.b16 %v1951
    %v1960 = vunpack.c.l.b16 %v1952
    %v1961 = vpack.c.b16 %v1960, %v1959
    %vm1962 = vcmask 80896
    %v1964 = vsel %vm1962, %v1950, 0
    %vm1966 = vcmask 1044480
    %v1968 = vsel %vm1966, %v1961, 0
    %1970 = vmatpush.bf16.msra.mxu0 0
    %1971 = vmatpush.bf16.msra.mxu0 0
    %1972 = vmatpush.bf16.msra.mxu0 0
    %1973 = vmatpush.bf16.msra.mxu0 0
    %1974 = vmatpush.bf16.msra.mxu0 0
    %1975 = vmatpush.bf16.msra.mxu0 0
    %1976 = vmatpush.bf16.msra.mxu0 0
    %1977 = vmatpush.bf16.msra.mxu0 %v1968
    %1978 = vmatmul.bf16.gmra.mxu0 %v1964
    %v1979 = vpop.f32.mrf.mxu0
    %v1980 = vadd.f32 %v1955, %v1979
    %v1981 = vpop.f32.mrf.mxu0
    %1982 = vdwg.mxu0
    %v1983 = vld [vmem:[%s6] sm:$0xff]
    %v1984 = vld [vmem:[%s6 + $0x8] sm:$0xff]
    %v1985 = vld [vmem:[%s6 + $0x10] sm:$0xff]
    %v1986 = vld [vmem:[%s6 + $0x18] sm:$0xff]
    %v1987 = vld [vmem:[%s6 + $0x20] sm:$0x33]
    %v1988 = vld [vmem:[%s6 + $0x28] sm:$0x33]
    %v1989 = vld [vmem:[%s7] sm:$0xf]
    %v1991 = vperm.slane %v1989, 0
    %v1992 = vperm.slane %v1989, 1
    %v1993 = vperm.slane %v1989, 2
    %v1994 = vperm.slane %v1989, 3
    %v2005 = vunpack.c.l.b16 %v1983
    %v2006 = vunpack.c.h.b16 %v1983
    %v2007 = vunpack.c.l.b16 %v1984
    %v2008 = vunpack.c.h.b16 %v1984
    %v2009 = vunpack.c.l.b16 %v1985
    %v2010 = vunpack.c.h.b16 %v1985
    %v2011 = vunpack.c.l.b16 %v1986
    %v2012 = vunpack.c.h.b16 %v1986
    %v2013 = vunpack.c.l.b16 %v1987
    %v2014 = vunpack.c.h.b16 %v1987
    %v2015 = vunpack.c.l.b16 %v1988
    %v2016 = vunpack.c.h.b16 %v1988
    %v2017 = vpack.c.b16 %v2009, %v2005
    %v2018 = vpack.c.b16 %v2010, %v2006
    %v2019 = vpack.c.b16 %v2011, %v2007
    %v2020 = vpack.c.b16 %v2012, %v2008
    %v2021 = vpack.c.b16 %v2013, %v2013
    %v2022 = vpack.c.b16 %v2014, %v2014
    %v2023 = vpack.c.b16 %v2015, %v2015
    %v2024 = vpack.c.b16 %v2016, %v2016
    %v2030 = vsel %vm1932, %v2021, 0
    %v2033 = vsel %vm1932, %v2022, 0
    %v2036 = vsel %vm1932, %v2023, 0
    %v2039 = vsel %vm1932, %v2024, 0
    %2041 = vmatpush.bf16.msra.mxu0 0
    %2042 = vmatpush.bf16.msra.mxu0 0
    %2043 = vmatpush.bf16.msra.mxu0 0
    %2044 = vmatpush.bf16.msra.mxu0 0
    %2045 = vmatpush.bf16.msra.mxu0 0
    %2046 = vmatpush.bf16.msra.mxu0 0
    %2047 = vmatpush.bf16.msra.mxu0 %v2030
    %2048 = vmatpush.bf16.msra.mxu0 %v2017
    %2049 = vmatmul.bf16.gmra.mxu0 %v1930
    %v2050 = vpop.f32.mrf.mxu0
    %v2051 = vadd.f32 %v1991, %v2050
    %v2052 = vpop.f32.mrf.mxu0
    %2053 = vdwg.mxu0
    %2054 = vmatpush.bf16.msra.mxu0 0
    %2055 = vmatpush.bf16.msra.mxu0 0
    %2056 = vmatpush.bf16.msra.mxu0 0
    %2057 = vmatpush.bf16.msra.mxu0 0
    %2058 = vmatpush.bf16.msra.mxu0 0
    %2059 = vmatpush.bf16.msra.mxu0 0
    %2060 = vmatpush.bf16.msra.mxu0 %v2033
    %2061 = vmatpush.bf16.msra.mxu0 %v2018
    %2062 = vmatmul.bf16.gmra.mxu0 %v1930
    %v2063 = vpop.f32.mrf.mxu0
    %v2064 = vadd.f32 %v1992, %v2063
    %v2065 = vpop.f32.mrf.mxu0
    %2066 = vdwg.mxu0
    %2067 = vmatpush.bf16.msra.mxu0 0
    %2068 = vmatpush.bf16.msra.mxu0 0
    %2069 = vmatpush.bf16.msra.mxu0 0
    %2070 = vmatpush.bf16.msra.mxu0 0
    %2071 = vmatpush.bf16.msra.mxu0 0
    %2072 = vmatpush.bf16.msra.mxu0 0
    %2073 = vmatpush.bf16.msra.mxu0 %v2036
    %2074 = vmatpush.bf16.msra.mxu0 %v2019
    %2075 = vmatmul.bf16.gmra.mxu0 %v1930
    %v2076 = vpop.f32.mrf.mxu0
    %v2077 = vadd.f32 %v1993, %v2076
    %v2078 = vpop.f32.mrf.mxu0
    %2079 = vdwg.mxu0
    %2080 = vmatpush.bf16.msra.mxu0 0
    %2081 = vmatpush.bf16.msra.mxu0 0
    %2082 = vmatpush.bf16.msra.mxu0 0
    %2083 = vmatpush.bf16.msra.mxu0 0
    %2084 = vmatpush.bf16.msra.mxu0 0
    %2085 = vmatpush.bf16.msra.mxu0 0
    %2086 = vmatpush.bf16.msra.mxu0 %v2039
    %2087 = vmatpush.bf16.msra.mxu0 %v2020
    %2088 = vmatmul.bf16.gmra.mxu0 %v1930
    %v2089 = vpop.f32.mrf.mxu0
    %v2090 = vadd.f32 %v1994, %v2089
    %v2091 = vpop.f32.mrf.mxu0
    %2092 = vdwg.mxu0
    %v2093 = vmax.f32 %v2051, 0.0
    %v2094 = vmax.f32 %v2064, 0.0
    %v2095 = vmax.f32 %v2077, 0.0
    %v2096 = vmax.f32 %v2090, 0.0
    %v2097 = vpack.c.bf16 %v2093, %v2093
    %v2098 = vpack.c.bf16 %v2094, %v2094
    %v2099 = vpack.c.bf16 %v2095, %v2095
    %v2100 = vpack.c.bf16 %v2096, %v2096
    %v2101 = vld [vmem:[%s8] sm:$0xff]
    %v2102 = vld [vmem:[%s8 + $0x8] sm:$0xff]
    %v2103 = vld [vmem:[%s8 + $0x10] sm:$0xff]
    %v2104 = vld [vmem:[%s8 + $0x18] sm:$0xf]
    %v2105 = vld [vmem:[%s8 + $0x1c] sm:$0xff]
    %v2106 = vld [vmem:[%s8 + $0x24] sm:$0xff]
    %v2107 = vld [vmem:[%s8 + $0x2c] sm:$0xff]
    %v2108 = vld [vmem:[%s8 + $0x34] sm:$0xf]
    %v2109 = vld [vmem:[%s8 + $0x38] sm:$0xff]
    %v2110 = vld [vmem:[%s8 + $0x40] sm:$0xff]
    %v2111 = vld [vmem:[%s8 + $0x48] sm:$0xff]
    %v2112 = vld [vmem:[%s8 + $0x50] sm:$0xf]
    %v2113 = vld [vmem:[%s8 + $0x54] sm:$0xff]
    %v2114 = vld [vmem:[%s8 + $0x5c] sm:$0xff]
    %v2115 = vld [vmem:[%s8 + $0x64] sm:$0xff]
    %v2116 = vld [vmem:[%s8 + $0x6c] sm:$0xf]
    %v2117 = vld [vmem:[%s8 + $0x70] sm:$0xff]
    %v2118 = vld [vmem:[%s8 + $0x78] sm:$0xff]
    %v2119 = vld [vmem:[%s8 + $0x80] sm:$0xff]
    %v2120 = vld [vmem:[%s8 + $0x88] sm:$0xf]
    %v2121 = vld [vmem:[%s8 + $0x8c] sm:$0xff]
    %v2122 = vld [vmem:[%s8 + $0x94] sm:$0xff]
    %v2123 = vld [vmem:[%s8 + $0x9c] sm:$0xff]
    %v2124 = vld [vmem:[%s8 + $0xa4] sm:$0xf]
    %v2125 = vld [vmem:[%s8 + $0xa8] sm:$0xff]
    %v2126 = vld [vmem:[%s8 + $0xb0] sm:$0xff]
    %v2127 = vld [vmem:[%s8 + $0xb8] sm:$0xff]
    %v2128 = vld [vmem:[%s8 + $0xc0] sm:$0xf]
    %v2129 = vld [vmem:[%s8 + $0xc4] sm:$0xff]
    %v2130 = vld [vmem:[%s8 + $0xcc] sm:$0xff]
    %v2131 = vld [vmem:[%s8 + $0xd4] sm:$0xff]
    %v2132 = vld [vmem:[%s8 + $0xdc] sm:$0xf]
    %v2133 = vld [vmem:[%s8 + $0xe0] sm:$0xff]
    %v2134 = vld [vmem:[%s8 + $0xe8] sm:$0xff]
    %v2135 = vld [vmem:[%s8 + $0xf0] sm:$0xff]
    %v2136 = vld [vmem:[%s8 + $0xf8] sm:$0xf]
    %v2137 = vld [vmem:[%s8 + $0xfc] sm:$0xff]
    %v2138 = vld [vmem:[%s8 + $0x104] sm:$0xff]
    %v2139 = vld [vmem:[%s8 + $0x10c] sm:$0xff]
    %v2140 = vld [vmem:[%s8 + $0x114] sm:$0xf]
    %v2141 = vld [vmem:[%s8 + $0x118] sm:$0xff]
    %v2142 = vld [vmem:[%s8 + $0x120] sm:$0xff]
    %v2143 = vld [vmem:[%s8 + $0x128] sm:$0xff]
    %v2144 = vld [vmem:[%s8 + $0x130] sm:$0xf]
    %v2145 = vld [vmem:[%s8 + $0x134] sm:$0xff]
    %v2146 = vld [vmem:[%s8 + $0x13c] sm:$0xff]
    %v2147 = vld [vmem:[%s8 + $0x144] sm:$0xff]
    %v2148 = vld [vmem:[%s8 + $0x14c] sm:$0xf]
    %v2149 = vld [vmem:[%s8 + $0x150] sm:$0xff]
    %v2150 = vld [vmem:[%s8 + $0x158] sm:$0xff]
    %v2151 = vld [vmem:[%s8 + $0x160] sm:$0xff]
    %v2152 = vld [vmem:[%s8 + $0x168] sm:$0xf]
    %v2153 = vld [vmem:[%s8 + $0x16c] sm:$0xff]
    %v2154 = vld [vmem:[%s8 + $0x174] sm:$0xff]
    %v2155 = vld [vmem:[%s8 + $0x17c] sm:$0xff]
    %v2156 = vld [vmem:[%s8 + $0x184] sm:$0xf]
    %v2157 = vld [vmem:[%s8 + $0x188] sm:$0xff]
    %v2158 = vld [vmem:[%s8 + $0x190] sm:$0xff]
    %v2159 = vld [vmem:[%s8 + $0x198] sm:$0xff]
    %v2160 = vld [vmem:[%s8 + $0x1a0] sm:$0xf]
    %v2161 = vld [vmem:[%s8 + $0x1a4] sm:$0xff]
    %v2162 = vld [vmem:[%s8 + $0x1ac] sm:$0xff]
    %v2163 = vld [vmem:[%s8 + $0x1b4] sm:$0xff]
    %v2164 = vld [vmem:[%s8 + $0x1bc] sm:$0xf]
    %v2165 = vld [vmem:[%s8 + $0x1c0] sm:$0xff]
    %v2166 = vld [vmem:[%s8 + $0x1c8] sm:$0xff]
    %v2167 = vld [vmem:[%s8 + $0x1d0] sm:$0xff]
    %v2168 = vld [vmem:[%s8 + $0x1d8] sm:$0xf]
    %v2169 = vld [vmem:[%s8 + $0x1dc] sm:$0xff]
    %v2170 = vld [vmem:[%s8 + $0x1e4] sm:$0xff]
    %v2171 = vld [vmem:[%s8 + $0x1ec] sm:$0xff]
    %v2172 = vld [vmem:[%s8 + $0x1f4] sm:$0xf]
    %v2173 = vld [vmem:[%s8 + $0x1f8] sm:$0xff]
    %v2174 = vld [vmem:[%s8 + $0x200] sm:$0xff]
    %v2175 = vld [vmem:[%s8 + $0x208] sm:$0xff]
    %v2176 = vld [vmem:[%s8 + $0x210] sm:$0xf]
    %v2177 = vld [vmem:[%s8 + $0x214] sm:$0xff]
    %v2178 = vld [vmem:[%s8 + $0x21c] sm:$0xff]
    %v2179 = vld [vmem:[%s8 + $0x224] sm:$0xff]
    %v2180 = vld [vmem:[%s8 + $0x22c] sm:$0xf]
    %v2181 = vld [vmem:[%s8 + $0x230] sm:$0xff]
    %v2182 = vld [vmem:[%s8 + $0x238] sm:$0xff]
    %v2183 = vld [vmem:[%s8 + $0x240] sm:$0xff]
    %v2184 = vld [vmem:[%s8 + $0x248] sm:$0xf]
    %v2185 = vld [vmem:[%s8 + $0x24c] sm:$0xff]
    %v2186 = vld [vmem:[%s8 + $0x254] sm:$0xff]
    %v2187 = vld [vmem:[%s8 + $0x25c] sm:$0xff]
    %v2188 = vld [vmem:[%s8 + $0x264] sm:$0xf]
    %v2189 = vld [vmem:[%s8 + $0x268] sm:$0xff]
    %v2190 = vld [vmem:[%s8 + $0x270] sm:$0xff]
    %v2191 = vld [vmem:[%s8 + $0x278] sm:$0xff]
    %v2192 = vld [vmem:[%s8 + $0x280] sm:$0xf]
    %v2193 = vld [vmem:[%s8 + $0x284] sm:$0xff]
    %v2194 = vld [vmem:[%s8 + $0x28c] sm:$0xff]
    %v2195 = vld [vmem:[%s8 + $0x294] sm:$0xff]
    %v2196 = vld [vmem:[%s8 + $0x29c] sm:$0xf]
    %v2197 = vld [vmem:[%s8 + $0x2a0] sm:$0xff]
    %v2198 = vld [vmem:[%s8 + $0x2a8] sm:$0xff]
    %v2199 = vld [vmem:[%s8 + $0x2b0] sm:$0xff]
    %v2200 = vld [vmem:[%s8 + $0x2b8] sm:$0xf]
    %v2201 = vld [vmem:[%s8 + $0x2bc] sm:$0xff]
    %v2202 = vld [vmem:[%s8 + $0x2c4] sm:$0xff]
    %v2203 = vld [vmem:[%s8 + $0x2cc] sm:$0xff]
    %v2204 = vld [vmem:[%s8 + $0x2d4] sm:$0xf]
    %v2205 = vld [vmem:[%s8 + $0x2d8] sm:$0xff]
    %v2206 = vld [vmem:[%s8 + $0x2e0] sm:$0xff]
    %v2207 = vld [vmem:[%s8 + $0x2e8] sm:$0xff]
    %v2208 = vld [vmem:[%s8 + $0x2f0] sm:$0xf]
    %v2209 = vld [vmem:[%s8 + $0x2f4] sm:$0xff]
    %v2210 = vld [vmem:[%s8 + $0x2fc] sm:$0xff]
    %v2211 = vld [vmem:[%s8 + $0x304] sm:$0xff]
    %v2212 = vld [vmem:[%s8 + $0x30c] sm:$0xf]
    %v2213 = vld [vmem:[%s8 + $0x310] sm:$0xff]
    %v2214 = vld [vmem:[%s8 + $0x318] sm:$0xff]
    %v2215 = vld [vmem:[%s8 + $0x320] sm:$0xff]
    %v2216 = vld [vmem:[%s8 + $0x328] sm:$0xf]
    %v2217 = vld [vmem:[%s8 + $0x32c] sm:$0xff]
    %v2218 = vld [vmem:[%s8 + $0x334] sm:$0xff]
    %v2219 = vld [vmem:[%s8 + $0x33c] sm:$0xff]
    %v2220 = vld [vmem:[%s8 + $0x344] sm:$0xf]
    %v2221 = vld [vmem:[%s8 + $0x348] sm:$0xff]
    %v2222 = vld [vmem:[%s8 + $0x350] sm:$0xff]
    %v2223 = vld [vmem:[%s8 + $0x358] sm:$0xff]
    %v2224 = vld [vmem:[%s8 + $0x360] sm:$0xf]
    %v2225 = vld [vmem:[%s8 + $0x364] sm:$0xff]
    %v2226 = vld [vmem:[%s8 + $0x36c] sm:$0xff]
    %v2227 = vld [vmem:[%s8 + $0x374] sm:$0xff]
    %v2228 = vld [vmem:[%s8 + $0x37c] sm:$0xf]
    %v2229 = vld [vmem:[%s8 + $0x380] sm:$0xff]
    %v2230 = vld [vmem:[%s8 + $0x388] sm:$0xff]
    %v2231 = vld [vmem:[%s8 + $0x390] sm:$0xff]
    %v2232 = vld [vmem:[%s8 + $0x398] sm:$0xf]
    %v2233 = vld [vmem:[%s8 + $0x39c] sm:$0xff]
    %v2234 = vld [vmem:[%s8 + $0x3a4] sm:$0xff]
    %v2235 = vld [vmem:[%s8 + $0x3ac] sm:$0xff]
    %v2236 = vld [vmem:[%s8 + $0x3b4] sm:$0xf]
    %v2237 = vld [vmem:[%s8 + $0x3b8] sm:$0xff]
    %v2238 = vld [vmem:[%s8 + $0x3c0] sm:$0xff]
    %v2239 = vld [vmem:[%s8 + $0x3c8] sm:$0xff]
    %v2240 = vld [vmem:[%s8 + $0x3d0] sm:$0xf]
    %v2241 = vld [vmem:[%s8 + $0x3d4] sm:$0xff]
    %v2242 = vld [vmem:[%s8 + $0x3dc] sm:$0xff]
    %v2243 = vld [vmem:[%s8 + $0x3e4] sm:$0xff]
    %v2244 = vld [vmem:[%s8 + $0x3ec] sm:$0xf]
    %v2245 = vld [vmem:[%s8 + $0x3f0] sm:$0xff]
    %v2246 = vld [vmem:[%s8 + $0x3f8] sm:$0xff]
    %v2247 = vld [vmem:[%s8 + $0x400] sm:$0xff]
    %v2248 = vld [vmem:[%s8 + $0x408] sm:$0xf]
    %v2249 = vld [vmem:[%s8 + $0x40c] sm:$0xff]
    %v2250 = vld [vmem:[%s8 + $0x414] sm:$0xff]
    %v2251 = vld [vmem:[%s8 + $0x41c] sm:$0xff]
    %v2252 = vld [vmem:[%s8 + $0x424] sm:$0xf]
    %v2253 = vld [vmem:[%s8 + $0x428] sm:$0xff]
    %v2254 = vld [vmem:[%s8 + $0x430] sm:$0xff]
    %v2255 = vld [vmem:[%s8 + $0x438] sm:$0xff]
    %v2256 = vld [vmem:[%s8 + $0x440] sm:$0xf]
    %v2257 = vld [vmem:[%s8 + $0x444] sm:$0xff]
    %v2258 = vld [vmem:[%s8 + $0x44c] sm:$0xff]
    %v2259 = vld [vmem:[%s8 + $0x454] sm:$0xff]
    %v2260 = vld [vmem:[%s8 + $0x45c] sm:$0xf]
    %v2261 = vld [vmem:[%s8 + $0x460] sm:$0xff]
    %v2262 = vld [vmem:[%s8 + $0x468] sm:$0xff]
    %v2263 = vld [vmem:[%s8 + $0x470] sm:$0xff]
    %v2264 = vld [vmem:[%s8 + $0x478] sm:$0xf]
    %v2265 = vld [vmem:[%s8 + $0x47c] sm:$0xff]
    %v2266 = vld [vmem:[%s8 + $0x484] sm:$0xff]
    %v2267 = vld [vmem:[%s8 + $0x48c] sm:$0xff]
    %v2268 = vld [vmem:[%s8 + $0x494] sm:$0xf]
    %v2269 = vld [vmem:[%s8 + $0x498] sm:$0xff]
    %v2270 = vld [vmem:[%s8 + $0x4a0] sm:$0xff]
    %v2271 = vld [vmem:[%s8 + $0x4a8] sm:$0xff]
    %v2272 = vld [vmem:[%s8 + $0x4b0] sm:$0xf]
    %v2273 = vld [vmem:[%s8 + $0x4b4] sm:$0xff]
    %v2274 = vld [vmem:[%s8 + $0x4bc] sm:$0xff]
    %v2275 = vld [vmem:[%s8 + $0x4c4] sm:$0xff]
    %v2276 = vld [vmem:[%s8 + $0x4cc] sm:$0xf]
    %v2277 = vld [vmem:[%s8 + $0x4d0] sm:$0xff]
    %v2278 = vld [vmem:[%s8 + $0x4d8] sm:$0xff]
    %v2279 = vld [vmem:[%s8 + $0x4e0] sm:$0xff]
    %v2280 = vld [vmem:[%s8 + $0x4e8] sm:$0xf]
    %v2281 = vld [vmem:[%s8 + $0x4ec] sm:$0xff]
    %v2282 = vld [vmem:[%s8 + $0x4f4] sm:$0xff]
    %v2283 = vld [vmem:[%s8 + $0x4fc] sm:$0xff]
    %v2284 = vld [vmem:[%s8 + $0x504] sm:$0xf]
    %v2285 = vld [vmem:[%s8 + $0x508] sm:$0xff]
    %v2286 = vld [vmem:[%s8 + $0x510] sm:$0xff]
    %v2287 = vld [vmem:[%s8 + $0x518] sm:$0xff]
    %v2288 = vld [vmem:[%s8 + $0x520] sm:$0xf]
    %v2289 = vld [vmem:[%s8 + $0x524] sm:$0xff]
    %v2290 = vld [vmem:[%s8 + $0x52c] sm:$0xff]
    %v2291 = vld [vmem:[%s8 + $0x534] sm:$0xff]
    %v2292 = vld [vmem:[%s8 + $0x53c] sm:$0xf]
    %v2293 = vld [vmem:[%s8 + $0x540] sm:$0xff]
    %v2294 = vld [vmem:[%s8 + $0x548] sm:$0xff]
    %v2295 = vld [vmem:[%s8 + $0x550] sm:$0xff]
    %v2296 = vld [vmem:[%s8 + $0x558] sm:$0xf]
    %v2297 = vld [vmem:[%s8 + $0x55c] sm:$0xff]
    %v2298 = vld [vmem:[%s8 + $0x564] sm:$0xff]
    %v2299 = vld [vmem:[%s8 + $0x56c] sm:$0xff]
    %v2300 = vld [vmem:[%s8 + $0x574] sm:$0xf]
    %v2301 = vld [vmem:[%s9] sm:$0x7f]
    %v2303 = vperm.slane %v2301, 0
    %v2304 = vperm.slane %v2301, 1
    %v2305 = vperm.slane %v2301, 2
    %v2306 = vperm.slane %v2301, 3
    %v2307 = vperm.slane %v2301, 4
    %v2308 = vperm.slane %v2301, 5
    %v2309 = vperm.slane %v2301, 6
    %v2517 = vunpack.c.l.b16 %v2101
    %v2518 = vunpack.c.h.b16 %v2101
    %v2519 = vunpack.c.l.b16 %v2102
    %v2520 = vunpack.c.h.b16 %v2102
    %v2521 = vunpack.c.l.b16 %v2103
    %v2522 = vunpack.c.h.b16 %v2103
    %v2523 = vunpack.c.l.b16 %v2104
    %v2524 = vunpack.c.l.b16 %v2105
    %v2525 = vunpack.c.h.b16 %v2105
    %v2526 = vunpack.c.l.b16 %v2106
    %v2527 = vunpack.c.h.b16 %v2106
    %v2528 = vunpack.c.l.b16 %v2107
    %v2529 = vunpack.c.h.b16 %v2107
    %v2530 = vunpack.c.l.b16 %v2108
    %v2531 = vunpack.c.l.b16 %v2109
    %v2532 = vunpack.c.h.b16 %v2109
    %v2533 = vunpack.c.l.b16 %v2110
    %v2534 = vunpack.c.h.b16 %v2110
    %v2535 = vunpack.c.l.b16 %v2111
    %v2536 = vunpack.c.h.b16 %v2111
    %v2537 = vunpack.c.l.b16 %v2112
    %v2538 = vunpack.c.l.b16 %v2113
    %v2539 = vunpack.c.h.b16 %v2113
    %v2540 = vunpack.c.l.b16 %v2114
    %v2541 = vunpack.c.h.b16 %v2114
    %v2542 = vunpack.c.l.b16 %v2115
    %v2543 = vunpack.c.h.b16 %v2115
    %v2544 = vunpack.c.l.b16 %v2116
    %v2545 = vunpack.c.l.b16 %v2117
    %v2546 = vunpack.c.h.b16 %v2117
    %v2547 = vunpack.c.l.b16 %v2118
    %v2548 = vunpack.c.h.b16 %v2118
    %v2549 = vunpack.c.l.b16 %v2119
    %v2550 = vunpack.c.h.b16 %v2119
    %v2551 = vunpack.c.l.b16 %v2120
    %v2552 = vunpack.c.l.b16 %v2121
    %v2553 = vunpack.c.h.b16 %v2121
    %v2554 = vunpack.c.l.b16 %v2122
    %v2555 = vunpack.c.h.b16 %v2122
    %v2556 = vunpack.c.l.b16 %v2123
    %v2557 = vunpack.c.h.b16 %v2123
    %v2558 = vunpack.c.l.b16 %v2124
    %v2559 = vunpack.c.l.b16 %v2125
    %v2560 = vunpack.c.h.b16 %v2125
    %v2561 = vunpack.c.l.b16 %v2126
    %v2562 = vunpack.c.h.b16 %v2126
    %v2563 = vunpack.c.l.b16 %v2127
    %v2564 = vunpack.c.h.b16 %v2127
    %v2565 = vunpack.c.l.b16 %v2128
    %v2566 = vunpack.c.l.b16 %v2129
    %v2567 = vunpack.c.h.b16 %v2129
    %v2568 = vunpack.c.l.b16 %v2130
    %v2569 = vunpack.c.h.b16 %v2130
    %v2570 = vunpack.c.l.b16 %v2131
    %v2571 = vunpack.c.h.b16 %v2131
    %v2572 = vunpack.c.l.b16 %v2132
    %v2573 = vunpack.c.l.b16 %v2133
    %v2574 = vunpack.c.h.b16 %v2133
    %v2575 = vunpack.c.l.b16 %v2134
    %v2576 = vunpack.c.h.b16 %v2134
    %v2577 = vunpack.c.l.b16 %v2135
    %v2578 = vunpack.c.h.b16 %v2135
    %v2579 = vunpack.c.l.b16 %v2136
    %v2580 = vunpack.c.l.b16 %v2137
    %v2581 = vunpack.c.h.b16 %v2137
    %v2582 = vunpack.c.l.b16 %v2138
    %v2583 = vunpack.c.h.b16 %v2138
    %v2584 = vunpack.c.l.b16 %v2139
    %v2585 = vunpack.c.h.b16 %v2139
    %v2586 = vunpack.c.l.b16 %v2140
    %v2587 = vunpack.c.l.b16 %v2141
    %v2588 = vunpack.c.h.b16 %v2141
    %v2589 = vunpack.c.l.b16 %v2142
    %v2590 = vunpack.c.h.b16 %v2142
    %v2591 = vunpack.c.l.b16 %v2143
    %v2592 = vunpack.c.h.b16 %v2143
    %v2593 = vunpack.c.l.b16 %v2144
    %v2594 = vunpack.c.l.b16 %v2145
    %v2595 = vunpack.c.h.b16 %v2145
    %v2596 = vunpack.c.l.b16 %v2146
    %v2597 = vunpack.c.h.b16 %v2146
    %v2598 = vunpack.c.l.b16 %v2147
    %v2599 = vunpack.c.h.b16 %v2147
    %v2600 = vunpack.c.l.b16 %v2148
    %v2601 = vunpack.c.l.b16 %v2149
    %v2602 = vunpack.c.h.b16 %v2149
    %v2603 = vunpack.c.l.b16 %v2150
    %v2604 = vunpack.c.h.b16 %v2150
    %v2605 = vunpack.c.l.b16 %v2151
    %v2606 = vunpack.c.h.b16 %v2151
    %v2607 = vunpack.c.l.b16 %v2152
    %v2608 = vunpack.c.l.b16 %v2153
    %v2609 = vunpack.c.h.b16 %v2153
    %v2610 = vunpack.c.l.b16 %v2154
    %v2611 = vunpack.c.h.b16 %v2154
    %v2612 = vunpack.c.l.b16 %v2155
    %v2613 = vunpack.c.h.b16 %v2155
    %v2614 = vunpack.c.l.b16 %v2156
    %v2615 = vunpack.c.l.b16 %v2157
    %v2616 = vunpack.c.h.b16 %v2157
    %v2617 = vunpack.c.l.b16 %v2158
    %v2618 = vunpack.c.h.b16 %v2158
    %v2619 = vunpack.c.l.b16 %v2159
    %v2620 = vunpack.c.h.b16 %v2159
    %v2621 = vunpack.c.l.b16 %v2160
    %v2622 = vunpack.c.l.b16 %v2161
    %v2623 = vunpack.c.h.b16 %v2161
    %v2624 = vunpack.c.l.b16 %v2162
    %v2625 = vunpack.c.h.b16 %v2162
    %v2626 = vunpack.c.l.b16 %v2163
    %v2627 = vunpack.c.h.b16 %v2163
    %v2628 = vunpack.c.l.b16 %v2164
    %v2629 = vunpack.c.l.b16 %v2165
    %v2630 = vunpack.c.h.b16 %v2165
    %v2631 = vunpack.c.l.b16 %v2166
    %v2632 = vunpack.c.h.b16 %v2166
    %v2633 = vunpack.c.l.b16 %v2167
    %v2634 = vunpack.c.h.b16 %v2167
    %v2635 = vunpack.c.l.b16 %v2168
    %v2636 = vunpack.c.l.b16 %v2169
    %v2637 = vunpack.c.h.b16 %v2169
    %v2638 = vunpack.c.l.b16 %v2170
    %v2639 = vunpack.c.h.b16 %v2170
    %v2640 = vunpack.c.l.b16 %v2171
    %v2641 = vunpack.c.h.b16 %v2171
    %v2642 = vunpack.c.l.b16 %v2172
    %v2643 = vunpack.c.l.b16 %v2173
    %v2644 = vunpack.c.h.b16 %v2173
    %v2645 = vunpack.c.l.b16 %v2174
    %v2646 = vunpack.c.h.b16 %v2174
    %v2647 = vunpack.c.l.b16 %v2175
    %v2648 = vunpack.c.h.b16 %v2175
    %v2649 = vunpack.c.l.b16 %v2176
    %v2650 = vunpack.c.l.b16 %v2177
    %v2651 = vunpack.c.h.b16 %v2177
    %v2652 = vunpack.c.l.b16 %v2178
    %v2653 = vunpack.c.h.b16 %v2178
    %v2654 = vunpack.c.l.b16 %v2179
    %v2655 = vunpack.c.h.b16 %v2179
    %v2656 = vunpack.c.l.b16 %v2180
    %v2657 = vunpack.c.l.b16 %v2181
    %v2658 = vunpack.c.h.b16 %v2181
    %v2659 = vunpack.c.l.b16 %v2182
    %v2660 = vunpack.c.h.b16 %v2182
    %v2661 = vunpack.c.l.b16 %v2183
    %v2662 = vunpack.c.h.b16 %v2183
    %v2663 = vunpack.c.l.b16 %v2184
    %v2664 = vunpack.c.l.b16 %v2185
    %v2665 = vunpack.c.h.b16 %v2185
    %v2666 = vunpack.c.l.b16 %v2186
    %v2667 = vunpack.c.h.b16 %v2186
    %v2668 = vunpack.c.l.b16 %v2187
    %v2669 = vunpack.c.h.b16 %v2187
    %v2670 = vunpack.c.l.b16 %v2188
    %v2671 = vunpack.c.l.b16 %v2189
    %v2672 = vunpack.c.h.b16 %v2189
    %v2673 = vunpack.c.l.b16 %v2190
    %v2674 = vunpack.c.h.b16 %v2190
    %v2675 = vunpack.c.l.b16 %v2191
    %v2676 = vunpack.c.h.b16 %v2191
    %v2677 = vunpack.c.l.b16 %v2192
    %v2678 = vunpack.c.l.b16 %v2193
    %v2679 = vunpack.c.h.b16 %v2193
    %v2680 = vunpack.c.l.b16 %v2194
    %v2681 = vunpack.c.h.b16 %v2194
    %v2682 = vunpack.c.l.b16 %v2195
    %v2683 = vunpack.c.h.b16 %v2195
    %v2684 = vunpack.c.l.b16 %v2196
    %v2685 = vunpack.c.l.b16 %v2197
    %v2686 = vunpack.c.h.b16 %v2197
    %v2687 = vunpack.c.l.b16 %v2198
    %v2688 = vunpack.c.h.b16 %v2198
    %v2689 = vunpack.c.l.b16 %v2199
    %v2690 = vunpack.c.h.b16 %v2199
    %v2691 = vunpack.c.l.b16 %v2200
    %v2692 = vunpack.c.l.b16 %v2201
    %v2693 = vunpack.c.h.b16 %v2201
    %v2694 = vunpack.c.l.b16 %v2202
    %v2695 = vunpack.c.h.b16 %v2202
    %v2696 = vunpack.c.l.b16 %v2203
    %v2697 = vunpack.c.h.b16 %v2203
    %v2698 = vunpack.c.l.b16 %v2204
    %v2699 = vunpack.c.l.b16 %v2205
    %v2700 = vunpack.c.h.b16 %v2205
    %v2701 = vunpack.c.l.b16 %v2206
    %v2702 = vunpack.c.h.b16 %v2206
    %v2703 = vunpack.c.l.b16 %v2207
    %v2704 = vunpack.c.h.b16 %v2207
    %v2705 = vunpack.c.l.b16 %v2208
    %v2706 = vunpack.c.l.b16 %v2209
    %v2707 = vunpack.c.h.b16 %v2209
    %v2708 = vunpack.c.l.b16 %v2210
    %v2709 = vunpack.c.h.b16 %v2210
    %v2710 = vunpack.c.l.b16 %v2211
    %v2711 = vunpack.c.h.b16 %v2211
    %v2712 = vunpack.c.l.b16 %v2212
    %v2713 = vunpack.c.l.b16 %v2213
    %v2714 = vunpack.c.h.b16 %v2213
    %v2715 = vunpack.c.l.b16 %v2214
    %v2716 = vunpack.c.h.b16 %v2214
    %v2717 = vunpack.c.l.b16 %v2215
    %v2718 = vunpack.c.h.b16 %v2215
    %v2719 = vunpack.c.l.b16 %v2216
    %v2720 = vunpack.c.l.b16 %v2217
    %v2721 = vunpack.c.h.b16 %v2217
    %v2722 = vunpack.c.l.b16 %v2218
    %v2723 = vunpack.c.h.b16 %v2218
    %v2724 = vunpack.c.l.b16 %v2219
    %v2725 = vunpack.c.h.b16 %v2219
    %v2726 = vunpack.c.l.b16 %v2220
    %v2727 = vunpack.c.l.b16 %v2221
    %v2728 = vunpack.c.h.b16 %v2221
    %v2729 = vunpack.c.l.b16 %v2222
    %v2730 = vunpack.c.h.b16 %v2222
    %v2731 = vunpack.c.l.b16 %v2223
    %v2732 = vunpack.c.h.b16 %v2223
    %v2733 = vunpack.c.l.b16 %v2224
    %v2734 = vunpack.c.l.b16 %v2225
    %v2735 = vunpack.c.h.b16 %v2225
    %v2736 = vunpack.c.l.b16 %v2226
    %v2737 = vunpack.c.h.b16 %v2226
    %v2738 = vunpack.c.l.b16 %v2227
    %v2739 = vunpack.c.h.b16 %v2227
    %v2740 = vunpack.c.l.b16 %v2228
    %v2741 = vunpack.c.l.b16 %v2229
    %v2742 = vunpack.c.h.b16 %v2229
    %v2743 = vunpack.c.l.b16 %v2230
    %v2744 = vunpack.c.h.b16 %v2230
    %v2745 = vunpack.c.l.b16 %v2231
    %v2746 = vunpack.c.h.b16 %v2231
    %v2747 = vunpack.c.l.b16 %v2232
    %v2748 = vunpack.c.l.b16 %v2233
    %v2749 = vunpack.c.h.b16 %v2233
    %v2750 = vunpack.c.l.b16 %v2234
    %v2751 = vunpack.c.h.b16 %v2234
    %v2752 = vunpack.c.l.b16 %v2235
    %v2753 = vunpack.c.h.b16 %v2235
    %v2754 = vunpack.c.l.b16 %v2236
    %v2755 = vunpack.c.l.b16 %v2237
    %v2756 = vunpack.c.h.b16 %v2237
    %v2757 = vunpack.c.l.b16 %v2238
    %v2758 = vunpack.c.h.b16 %v2238
    %v2759 = vunpack.c.l.b16 %v2239
    %v2760 = vunpack.c.h.b16 %v2239
    %v2761 = vunpack.c.l.b16 %v2240
    %v2762 = vunpack.c.l.b16 %v2241
    %v2763 = vunpack.c.h.b16 %v2241
    %v2764 = vunpack.c.l.b16 %v2242
    %v2765 = vunpack.c.h.b16 %v2242
    %v2766 = vunpack.c.l.b16 %v2243
    %v2767 = vunpack.c.h.b16 %v2243
    %v2768 = vunpack.c.l.b16 %v2244
    %v2769 = vunpack.c.l.b16 %v2245
    %v2770 = vunpack.c.h.b16 %v2245
    %v2771 = vunpack.c.l.b16 %v2246
    %v2772 = vunpack.c.h.b16 %v2246
    %v2773 = vunpack.c.l.b16 %v2247
    %v2774 = vunpack.c.h.b16 %v2247
    %v2775 = vunpack.c.l.b16 %v2248
    %v2776 = vunpack.c.l.b16 %v2249
    %v2777 = vunpack.c.h.b16 %v2249
    %v2778 = vunpack.c.l.b16 %v2250
    %v2779 = vunpack.c.h.b16 %v2250
    %v2780 = vunpack.c.l.b16 %v2251
    %v2781 = vunpack.c.h.b16 %v2251
    %v2782 = vunpack.c.l.b16 %v2252
    %v2783 = vunpack.c.l.b16 %v2253
    %v2784 = vunpack.c.h.b16 %v2253
    %v2785 = vunpack.c.l.b16 %v2254
    %v2786 = vunpack.c.h.b16 %v2254
    %v2787 = vunpack.c.l.b16 %v2255
    %v2788 = vunpack.c.h.b16 %v2255
    %v2789 = vunpack.c.l.b16 %v2256
    %v2790 = vunpack.c.l.b16 %v2257
    %v2791 = vunpack.c.h.b16 %v2257
    %v2792 = vunpack.c.l.b16 %v2258
    %v2793 = vunpack.c.h.b16 %v2258
    %v2794 = vunpack.c.l.b16 %v2259
    %v2795 = vunpack.c.h.b16 %v2259
    %v2796 = vunpack.c.l.b16 %v2260
    %v2797 = vunpack.c.l.b16 %v2261
    %v2798 = vunpack.c.h.b16 %v2261
    %v2799 = vunpack.c.l.b16 %v2262
    %v2800 = vunpack.c.h.b16 %v2262
    %v2801 = vunpack.c.l.b16 %v2263
    %v2802 = vunpack.c.h.b16 %v2263
    %v2803 = vunpack.c.l.b16 %v2264
    %v2804 = vunpack.c.l.b16 %v2265
    %v2805 = vunpack.c.h.b16 %v2265
    %v2806 = vunpack.c.l.b16 %v2266
    %v2807 = vunpack.c.h.b16 %v2266
    %v2808 = vunpack.c.l.b16 %v2267
    %v2809 = vunpack.c.h.b16 %v2267
    %v2810 = vunpack.c.l.b16 %v2268
    %v2811 = vunpack.c.l.b16 %v2269
    %v2812 = vunpack.c.h.b16 %v2269
    %v2813 = vunpack.c.l.b16 %v2270
    %v2814 = vunpack.c.h.b16 %v2270
    %v2815 = vunpack.c.l.b16 %v2271
    %v2816 = vunpack.c.h.b16 %v2271
    %v2817 = vunpack.c.l.b16 %v2272
    %v2818 = vunpack.c.l.b16 %v2273
    %v2819 = vunpack.c.h.b16 %v2273
    %v2820 = vunpack.c.l.b16 %v2274
    %v2821 = vunpack.c.h.b16 %v2274
    %v2822 = vunpack.c.l.b16 %v2275
    %v2823 = vunpack.c.h.b16 %v2275
    %v2824 = vunpack.c.l.b16 %v2276
    %v2825 = vunpack.c.l.b16 %v2277
    %v2826 = vunpack.c.h.b16 %v2277
    %v2827 = vunpack.c.l.b16 %v2278
    %v2828 = vunpack.c.h.b16 %v2278
    %v2829 = vunpack.c.l.b16 %v2279
    %v2830 = vunpack.c.h.b16 %v2279
    %v2831 = vunpack.c.l.b16 %v2280
    %v2832 = vunpack.c.l.b16 %v2281
    %v2833 = vunpack.c.h.b16 %v2281
    %v2834 = vunpack.c.l.b16 %v2282
    %v2835 = vunpack.c.h.b16 %v2282
    %v2836 = vunpack.c.l.b16 %v2283
    %v2837 = vunpack.c.h.b16 %v2283
    %v2838 = vunpack.c.l.b16 %v2284
    %v2839 = vunpack.c.l.b16 %v2285
    %v2840 = vunpack.c.h.b16 %v2285
    %v2841 = vunpack.c.l.b16 %v2286
    %v2842 = vunpack.c.h.b16 %v2286
    %v2843 = vunpack.c.l.b16 %v2287
    %v2844 = vunpack.c.h.b16 %v2287
    %v2845 = vunpack.c.l.b16 %v2288
    %v2846 = vunpack.c.l.b16 %v2289
    %v2847 = vunpack.c.h.b16 %v2289
    %v2848 = vunpack.c.l.b16 %v2290
    %v2849 = vunpack.c.h.b16 %v2290
    %v2850 = vunpack.c.l.b16 %v2291
    %v2851 = vunpack.c.h.b16 %v2291
    %v2852 = vunpack.c.l.b16 %v2292
    %v2853 = vunpack.c.l.b16 %v2293
    %v2854 = vunpack.c.h.b16 %v2293
    %v2855 = vunpack.c.l.b16 %v2294
    %v2856 = vunpack.c.h.b16 %v2294
    %v2857 = vunpack.c.l.b16 %v2295
    %v2858 = vunpack.c.h.b16 %v2295
    %v2859 = vunpack.c.l.b16 %v2296
    %v2860 = vunpack.c.l.b16 %v2297
    %v2861 = vunpack.c.h.b16 %v2297
    %v2862 = vunpack.c.l.b16 %v2298
    %v2863 = vunpack.c.h.b16 %v2298
    %v2864 = vunpack.c.l.b16 %v2299
    %v2865 = vunpack.c.h.b16 %v2299
    %v2866 = vunpack.c.l.b16 %v2300
    %v2867 = vpack.c.b16 %v2524, %v2517
    %v2868 = vpack.c.b16 %v2525, %v2518
    %v2869 = vpack.c.b16 %v2526, %v2519
    %v2870 = vpack.c.b16 %v2527, %v2520
    %v2871 = vpack.c.b16 %v2528, %v2521
    %v2872 = vpack.c.b16 %v2529, %v2522
    %v2873 = vpack.c.b16 %v2530, %v2523
    %v2874 = vpack.c.b16 %v2538, %v2531
    %v2875 = vpack.c.b16 %v2539, %v2532
    %v2876 = vpack.c.b16 %v2540, %v2533
    %v2877 = vpack.c.b16 %v2541, %v2534
    %v2878 = vpack.c.b16 %v2542, %v2535
    %v2879 = vpack.c.b16 %v2543, %v2536
    %v2880 = vpack.c.b16 %v2544, %v2537
    %v2881 = vpack.c.b16 %v2552, %v2545
    %v2882 = vpack.c.b16 %v2553, %v2546
    %v2883 = vpack.c.b16 %v2554, %v2547
    %v2884 = vpack.c.b16 %v2555, %v2548
    %v2885 = vpack.c.b16 %v2556, %v2549
    %v2886 = vpack.c.b16 %v2557, %v2550
    %v2887 = vpack.c.b16 %v2558, %v2551
    %v2888 = vpack.c.b16 %v2566, %v2559
    %v2889 = vpack.c.b16 %v2567, %v2560
    %v2890 = vpack.c.b16 %v2568, %v2561
    %v2891 = vpack.c.b16 %v2569, %v2562
    %v2892 = vpack.c.b16 %v2570, %v2563
    %v2893 = vpack.c.b16 %v2571, %v2564
    %v2894 = vpack.c.b16 %v2572, %v2565
    %v2895 = vpack.c.b16 %v2580, %v2573
    %v2896 = vpack.c.b16 %v2581, %v2574
    %v2897 = vpack.c.b16 %v2582, %v2575
    %v2898 = vpack.c.b16 %v2583, %v2576
    %v2899 = vpack.c.b16 %v2584, %v2577
    %v2900 = vpack.c.b16 %v2585, %v2578
    %v2901 = vpack.c.b16 %v2586, %v2579
    %v2902 = vpack.c.b16 %v2594, %v2587
    %v2903 = vpack.c.b16 %v2595, %v2588
    %v2904 = vpack.c.b16 %v2596, %v2589
    %v2905 = vpack.c.b16 %v2597, %v2590
    %v2906 = vpack.c.b16 %v2598, %v2591
    %v2907 = vpack.c.b16 %v2599, %v2592
    %v2908 = vpack.c.b16 %v2600, %v2593
    %v2909 = vpack.c.b16 %v2608, %v2601
    %v2910 = vpack.c.b16 %v2609, %v2602
    %v2911 = vpack.c.b16 %v2610, %v2603
    %v2912 = vpack.c.b16 %v2611, %v2604
    %v2913 = vpack.c.b16 %v2612, %v2605
    %v2914 = vpack.c.b16 %v2613, %v2606
    %v2915 = vpack.c.b16 %v2614, %v2607
    %v2916 = vpack.c.b16 %v2622, %v2615
    %v2917 = vpack.c.b16 %v2623, %v2616
    %v2918 = vpack.c.b16 %v2624, %v2617
    %v2919 = vpack.c.b16 %v2625, %v2618
    %v2920 = vpack.c.b16 %v2626, %v2619
    %v2921 = vpack.c.b16 %v2627, %v2620
    %v2922 = vpack.c.b16 %v2628, %v2621
    %v2923 = vpack.c.b16 %v2636, %v2629
    %v2924 = vpack.c.b16 %v2637, %v2630
    %v2925 = vpack.c.b16 %v2638, %v2631
    %v2926 = vpack.c.b16 %v2639, %v2632
    %v2927 = vpack.c.b16 %v2640, %v2633
    %v2928 = vpack.c.b16 %v2641, %v2634
    %v2929 = vpack.c.b16 %v2642, %v2635
    %v2930 = vpack.c.b16 %v2650, %v2643
    %v2931 = vpack.c.b16 %v2651, %v2644
    %v2932 = vpack.c.b16 %v2652, %v2645
    %v2933 = vpack.c.b16 %v2653, %v2646
    %v2934 = vpack.c.b16 %v2654, %v2647
    %v2935 = vpack.c.b16 %v2655, %v2648
    %v2936 = vpack.c.b16 %v2656, %v2649
    %v2937 = vpack.c.b16 %v2664, %v2657
    %v2938 = vpack.c.b16 %v2665, %v2658
    %v2939 = vpack.c.b16 %v2666, %v2659
    %v2940 = vpack.c.b16 %v2667, %v2660
    %v2941 = vpack.c.b16 %v2668, %v2661
    %v2942 = vpack.c.b16 %v2669, %v2662
    %v2943 = vpack.c.b16 %v2670, %v2663
    %v2944 = vpack.c.b16 %v2678, %v2671
    %v2945 = vpack.c.b16 %v2679, %v2672
    %v2946 = vpack.c.b16 %v2680, %v2673
    %v2947 = vpack.c.b16 %v2681, %v2674
    %v2948 = vpack.c.b16 %v2682, %v2675
    %v2949 = vpack.c.b16 %v2683, %v2676
    %v2950 = vpack.c.b16 %v2684, %v2677
    %v2951 = vpack.c.b16 %v2692, %v2685
    %v2952 = vpack.c.b16 %v2693, %v2686
    %v2953 = vpack.c.b16 %v2694, %v2687
    %v2954 = vpack.c.b16 %v2695, %v2688
    %v2955 = vpack.c.b16 %v2696, %v2689
    %v2956 = vpack.c.b16 %v2697, %v2690
    %v2957 = vpack.c.b16 %v2698, %v2691
    %v2958 = vpack.c.b16 %v2706, %v2699
    %v2959 = vpack.c.b16 %v2707, %v2700
    %v2960 = vpack.c.b16 %v2708, %v2701
    %v2961 = vpack.c.b16 %v2709, %v2702
    %v2962 = vpack.c.b16 %v2710, %v2703
    %v2963 = vpack.c.b16 %v2711, %v2704
    %v2964 = vpack.c.b16 %v2712, %v2705
    %v2965 = vpack.c.b16 %v2720, %v2713
    %v2966 = vpack.c.b16 %v2721, %v2714
    %v2967 = vpack.c.b16 %v2722, %v2715
    %v2968 = vpack.c.b16 %v2723, %v2716
    %v2969 = vpack.c.b16 %v2724, %v2717
    %v2970 = vpack.c.b16 %v2725, %v2718
    %v2971 = vpack.c.b16 %v2726, %v2719
    %v2972 = vpack.c.b16 %v2734, %v2727
    %v2973 = vpack.c.b16 %v2735, %v2728
    %v2974 = vpack.c.b16 %v2736, %v2729
    %v2975 = vpack.c.b16 %v2737, %v2730
    %v2976 = vpack.c.b16 %v2738, %v2731
    %v2977 = vpack.c.b16 %v2739, %v2732
    %v2978 = vpack.c.b16 %v2740, %v2733
    %v2979 = vpack.c.b16 %v2748, %v2741
    %v2980 = vpack.c.b16 %v2749, %v2742
    %v2981 = vpack.c.b16 %v2750, %v2743
    %v2982 = vpack.c.b16 %v2751, %v2744
    %v2983 = vpack.c.b16 %v2752, %v2745
    %v2984 = vpack.c.b16 %v2753, %v2746
    %v2985 = vpack.c.b16 %v2754, %v2747
    %v2986 = vpack.c.b16 %v2762, %v2755
    %v2987 = vpack.c.b16 %v2763, %v2756
    %v2988 = vpack.c.b16 %v2764, %v2757
    %v2989 = vpack.c.b16 %v2765, %v2758
    %v2990 = vpack.c.b16 %v2766, %v2759
    %v2991 = vpack.c.b16 %v2767, %v2760
    %v2992 = vpack.c.b16 %v2768, %v2761
    %v2993 = vpack.c.b16 %v2776, %v2769
    %v2994 = vpack.c.b16 %v2777, %v2770
    %v2995 = vpack.c.b16 %v2778, %v2771
    %v2996 = vpack.c.b16 %v2779, %v2772
    %v2997 = vpack.c.b16 %v2780, %v2773
    %v2998 = vpack.c.b16 %v2781, %v2774
    %v2999 = vpack.c.b16 %v2782, %v2775
    %v3000 = vpack.c.b16 %v2790, %v2783
    %v3001 = vpack.c.b16 %v2791, %v2784
    %v3002 = vpack.c.b16 %v2792, %v2785
    %v3003 = vpack.c.b16 %v2793, %v2786
    %v3004 = vpack.c.b16 %v2794, %v2787
    %v3005 = vpack.c.b16 %v2795, %v2788
    %v3006 = vpack.c.b16 %v2796, %v2789
    %v3007 = vpack.c.b16 %v2804, %v2797
    %v3008 = vpack.c.b16 %v2805, %v2798
    %v3009 = vpack.c.b16 %v2806, %v2799
    %v3010 = vpack.c.b16 %v2807, %v2800
    %v3011 = vpack.c.b16 %v2808, %v2801
    %v3012 = vpack.c.b16 %v2809, %v2802
    %v3013 = vpack.c.b16 %v2810, %v2803
    %v3014 = vpack.c.b16 %v2818, %v2811
    %v3015 = vpack.c.b16 %v2819, %v2812
    %v3016 = vpack.c.b16 %v2820, %v2813
    %v3017 = vpack.c.b16 %v2821, %v2814
    %v3018 = vpack.c.b16 %v2822, %v2815
    %v3019 = vpack.c.b16 %v2823, %v2816
    %v3020 = vpack.c.b16 %v2824, %v2817
    %v3021 = vpack.c.b16 %v2832, %v2825
    %v3022 = vpack.c.b16 %v2833, %v2826
    %v3023 = vpack.c.b16 %v2834, %v2827
    %v3024 = vpack.c.b16 %v2835, %v2828
    %v3025 = vpack.c.b16 %v2836, %v2829
    %v3026 = vpack.c.b16 %v2837, %v2830
    %v3027 = vpack.c.b16 %v2838, %v2831
    %v3028 = vpack.c.b16 %v2846, %v2839
    %v3029 = vpack.c.b16 %v2847, %v2840
    %v3030 = vpack.c.b16 %v2848, %v2841
    %v3031 = vpack.c.b16 %v2849, %v2842
    %v3032 = vpack.c.b16 %v2850, %v2843
    %v3033 = vpack.c.b16 %v2851, %v2844
    %v3034 = vpack.c.b16 %v2852, %v2845
    %v3035 = vpack.c.b16 %v2860, %v2853
    %v3036 = vpack.c.b16 %v2861, %v2854
    %v3037 = vpack.c.b16 %v2862, %v2855
    %v3038 = vpack.c.b16 %v2863, %v2856
    %v3039 = vpack.c.b16 %v2864, %v2857
    %v3040 = vpack.c.b16 %v2865, %v2858
    %v3041 = vpack.c.b16 %v2866, %v2859
    %v3218 = vsel %vm1266, %v2100, 0
    %3220 = vmatpush.bf16.msra.mxu0 %v2916
    %3221 = vmatpush.bf16.msra.mxu0 %v2909
    %3222 = vmatpush.bf16.msra.mxu0 %v2902
    %3223 = vmatpush.bf16.msra.mxu0 %v2895
    %3224 = vmatpush.bf16.msra.mxu0 %v2888
    %3225 = vmatpush.bf16.msra.mxu0 %v2881
    %3226 = vmatpush.bf16.msra.mxu0 %v2874
    %3227 = vmatpush.bf16.msra.mxu0 %v2867
    %3228 = vmatmul.bf16.gmra.mxu0 %v2097
    %v3229 = vpop.f32.mrf.mxu0
    %v3230 = vadd.f32 %v2303, %v3229
    %v3231 = vpop.f32.mrf.mxu0
    %3232 = vdwg.mxu0
    %3233 = vmatpush.bf16.msra.mxu0 %v2972
    %3234 = vmatpush.bf16.msra.mxu0 %v2965
    %3235 = vmatpush.bf16.msra.mxu0 %v2958
    %3236 = vmatpush.bf16.msra.mxu0 %v2951
    %3237 = vmatpush.bf16.msra.mxu0 %v2944
    %3238 = vmatpush.bf16.msra.mxu0 %v2937
    %3239 = vmatpush.bf16.msra.mxu0 %v2930
    %3240 = vmatpush.bf16.msra.mxu0 %v2923
    %3241 = vmatmul.bf16.gmra.mxu0 %v2098
    %v3242 = vpop.f32.mrf.mxu0
    %v3243 = vadd.f32 %v3230, %v3242
    %v3244 = vpop.f32.mrf.mxu0
    %3245 = vdwg.mxu0
    %3246 = vmatpush.bf16.msra.mxu0 %v3028
    %3247 = vmatpush.bf16.msra.mxu0 %v3021
    %3248 = vmatpush.bf16.msra.mxu0 %v3014
    %3249 = vmatpush.bf16.msra.mxu0 %v3007
    %3250 = vmatpush.bf16.msra.mxu0 %v3000
    %3251 = vmatpush.bf16.msra.mxu0 %v2993
    %3252 = vmatpush.bf16.msra.mxu0 %v2986
    %3253 = vmatpush.bf16.msra.mxu0 %v2979
    %3254 = vmatmul.bf16.gmra.mxu0 %v2099
    %v3255 = vpop.f32.mrf.mxu0
    %v3256 = vadd.f32 %v3243, %v3255
    %v3257 = vpop.f32.mrf.mxu0
    %3258 = vdwg.mxu0
    %3259 = vmatpush.bf16.msra.mxu0 0
    %3260 = vmatpush.bf16.msra.mxu0 0
    %3261 = vmatpush.bf16.msra.mxu0 0
    %3262 = vmatpush.bf16.msra.mxu0 0
    %3263 = vmatpush.bf16.msra.mxu0 0
    %3264 = vmatpush.bf16.msra.mxu0 0
    %3265 = vmatpush.bf16.msra.mxu0 0
    %3266 = vmatpush.bf16.msra.mxu0 %v3035
    %3267 = vmatmul.bf16.gmra.mxu0 %v3218
    %v3268 = vpop.f32.mrf.mxu0
    %v3269 = vadd.f32 %v3256, %v3268
    %v3270 = vpop.f32.mrf.mxu0
    %3271 = vdwg.mxu0
    %3272 = vmatpush.bf16.msra.mxu0 %v2917
    %3273 = vmatpush.bf16.msra.mxu0 %v2910
    %3274 = vmatpush.bf16.msra.mxu0 %v2903
    %3275 = vmatpush.bf16.msra.mxu0 %v2896
    %3276 = vmatpush.bf16.msra.mxu0 %v2889
    %3277 = vmatpush.bf16.msra.mxu0 %v2882
    %3278 = vmatpush.bf16.msra.mxu0 %v2875
    %3279 = vmatpush.bf16.msra.mxu0 %v2868
    %3280 = vmatmul.bf16.gmra.mxu0 %v2097
    %v3281 = vpop.f32.mrf.mxu0
    %v3282 = vadd.f32 %v2304, %v3281
    %v3283 = vpop.f32.mrf.mxu0
    %3284 = vdwg.mxu0
    %3285 = vmatpush.bf16.msra.mxu0 %v2973
    %3286 = vmatpush.bf16.msra.mxu0 %v2966
    %3287 = vmatpush.bf16.msra.mxu0 %v2959
    %3288 = vmatpush.bf16.msra.mxu0 %v2952
    %3289 = vmatpush.bf16.msra.mxu0 %v2945
    %3290 = vmatpush.bf16.msra.mxu0 %v2938
    %3291 = vmatpush.bf16.msra.mxu0 %v2931
    %3292 = vmatpush.bf16.msra.mxu0 %v2924
    %3293 = vmatmul.bf16.gmra.mxu0 %v2098
    %v3294 = vpop.f32.mrf.mxu0
    %v3295 = vadd.f32 %v3282, %v3294
    %v3296 = vpop.f32.mrf.mxu0
    %3297 = vdwg.mxu0
    %3298 = vmatpush.bf16.msra.mxu0 %v3029
    %3299 = vmatpush.bf16.msra.mxu0 %v3022
    %3300 = vmatpush.bf16.msra.mxu0 %v3015
    %3301 = vmatpush.bf16.msra.mxu0 %v3008
    %3302 = vmatpush.bf16.msra.mxu0 %v3001
    %3303 = vmatpush.bf16.msra.mxu0 %v2994
    %3304 = vmatpush.bf16.msra.mxu0 %v2987
    %3305 = vmatpush.bf16.msra.mxu0 %v2980
    %3306 = vmatmul.bf16.gmra.mxu0 %v2099
    %v3307 = vpop.f32.mrf.mxu0
    %v3308 = vadd.f32 %v3295, %v3307
    %v3309 = vpop.f32.mrf.mxu0
    %3310 = vdwg.mxu0
    %3311 = vmatpush.bf16.msra.mxu0 0
    %3312 = vmatpush.bf16.msra.mxu0 0
    %3313 = vmatpush.bf16.msra.mxu0 0
    %3314 = vmatpush.bf16.msra.mxu0 0
    %3315 = vmatpush.bf16.msra.mxu0 0
    %3316 = vmatpush.bf16.msra.mxu0 0
    %3317 = vmatpush.bf16.msra.mxu0 0
    %3318 = vmatpush.bf16.msra.mxu0 %v3036
    %3319 = vmatmul.bf16.gmra.mxu0 %v3218
    %v3320 = vpop.f32.mrf.mxu0
    %v3321 = vadd.f32 %v3308, %v3320
    %v3322 = vpop.f32.mrf.mxu0
    %3323 = vdwg.mxu0
    %3324 = vmatpush.bf16.msra.mxu0 %v2918
    %3325 = vmatpush.bf16.msra.mxu0 %v2911
    %3326 = vmatpush.bf16.msra.mxu0 %v2904
    %3327 = vmatpush.bf16.msra.mxu0 %v2897
    %3328 = vmatpush.bf16.msra.mxu0 %v2890
    %3329 = vmatpush.bf16.msra.mxu0 %v2883
    %3330 = vmatpush.bf16.msra.mxu0 %v2876
    %3331 = vmatpush.bf16.msra.mxu0 %v2869
    %3332 = vmatmul.bf16.gmra.mxu0 %v2097
    %v3333 = vpop.f32.mrf.mxu0
    %v3334 = vadd.f32 %v2305, %v3333
    %v3335 = vpop.f32.mrf.mxu0
    %3336 = vdwg.mxu0
    %3337 = vmatpush.bf16.msra.mxu0 %v2974
    %3338 = vmatpush.bf16.msra.mxu0 %v2967
    %3339 = vmatpush.bf16.msra.mxu0 %v2960
    %3340 = vmatpush.bf16.msra.mxu0 %v2953
    %3341 = vmatpush.bf16.msra.mxu0 %v2946
    %3342 = vmatpush.bf16.msra.mxu0 %v2939
    %3343 = vmatpush.bf16.msra.mxu0 %v2932
    %3344 = vmatpush.bf16.msra.mxu0 %v2925
    %3345 = vmatmul.bf16.gmra.mxu0 %v2098
    %v3346 = vpop.f32.mrf.mxu0
    %v3347 = vadd.f32 %v3334, %v3346
    %v3348 = vpop.f32.mrf.mxu0
    %3349 = vdwg.mxu0
    %3350 = vmatpush.bf16.msra.mxu0 %v3030
    %3351 = vmatpush.bf16.msra.mxu0 %v3023
    %3352 = vmatpush.bf16.msra.mxu0 %v3016
    %3353 = vmatpush.bf16.msra.mxu0 %v3009
    %3354 = vmatpush.bf16.msra.mxu0 %v3002
    %3355 = vmatpush.bf16.msra.mxu0 %v2995
    %3356 = vmatpush.bf16.msra.mxu0 %v2988
    %3357 = vmatpush.bf16.msra.mxu0 %v2981
    %3358 = vmatmul.bf16.gmra.mxu0 %v2099
    %v3359 = vpop.f32.mrf.mxu0
    %v3360 = vadd.f32 %v3347, %v3359
    %v3361 = vpop.f32.mrf.mxu0
    %3362 = vdwg.mxu0
    %3363 = vmatpush.bf16.msra.mxu0 0
    %3364 = vmatpush.bf16.msra.mxu0 0
    %3365 = vmatpush.bf16.msra.mxu0 0
    %3366 = vmatpush.bf16.msra.mxu0 0
    %3367 = vmatpush.bf16.msra.mxu0 0
    %3368 = vmatpush.bf16.msra.mxu0 0
    %3369 = vmatpush.bf16.msra.mxu0 0
    %3370 = vmatpush.bf16.msra.mxu0 %v3037
    %3371 = vmatmul.bf16.gmra.mxu0 %v3218
    %v3372 = vpop.f32.mrf.mxu0
    %v3373 = vadd.f32 %v3360, %v3372
    %v3374 = vpop.f32.mrf.mxu0
    %3375 = vdwg.mxu0
    %3376 = vmatpush.bf16.msra.mxu0 %v2919
    %3377 = vmatpush.bf16.msra.mxu0 %v2912
    %3378 = vmatpush.bf16.msra.mxu0 %v2905
    %3379 = vmatpush.bf16.msra.mxu0 %v2898
    %3380 = vmatpush.bf16.msra.mxu0 %v2891
    %3381 = vmatpush.bf16.msra.mxu0 %v2884
    %3382 = vmatpush.bf16.msra.mxu0 %v2877
    %3383 = vmatpush.bf16.msra.mxu0 %v2870
    %3384 = vmatmul.bf16.gmra.mxu0 %v2097
    %v3385 = vpop.f32.mrf.mxu0
    %v3386 = vadd.f32 %v2306, %v3385
    %v3387 = vpop.f32.mrf.mxu0
    %3388 = vdwg.mxu0
    %3389 = vmatpush.bf16.msra.mxu0 %v2975
    %3390 = vmatpush.bf16.msra.mxu0 %v2968
    %3391 = vmatpush.bf16.msra.mxu0 %v2961
    %3392 = vmatpush.bf16.msra.mxu0 %v2954
    %3393 = vmatpush.bf16.msra.mxu0 %v2947
    %3394 = vmatpush.bf16.msra.mxu0 %v2940
    %3395 = vmatpush.bf16.msra.mxu0 %v2933
    %3396 = vmatpush.bf16.msra.mxu0 %v2926
    %3397 = vmatmul.bf16.gmra.mxu0 %v2098
    %v3398 = vpop.f32.mrf.mxu0
    %v3399 = vadd.f32 %v3386, %v3398
    %v3400 = vpop.f32.mrf.mxu0
    %3401 = vdwg.mxu0
    %3402 = vmatpush.bf16.msra.mxu0 %v3031
    %3403 = vmatpush.bf16.msra.mxu0 %v3024
    %3404 = vmatpush.bf16.msra.mxu0 %v3017
    %3405 = vmatpush.bf16.msra.mxu0 %v3010
    %3406 = vmatpush.bf16.msra.mxu0 %v3003
    %3407 = vmatpush.bf16.msra.mxu0 %v2996
    %3408 = vmatpush.bf16.msra.mxu0 %v2989
    %3409 = vmatpush.bf16.msra.mxu0 %v2982
    %3410 = vmatmul.bf16.gmra.mxu0 %v2099
    %v3411 = vpop.f32.mrf.mxu0
    %v3412 = vadd.f32 %v3399, %v3411
    %v3413 = vpop.f32.mrf.mxu0
    %3414 = vdwg.mxu0
    %3415 = vmatpush.bf16.msra.mxu0 0
    %3416 = vmatpush.bf16.msra.mxu0 0
    %3417 = vmatpush.bf16.msra.mxu0 0
    %3418 = vmatpush.bf16.msra.mxu0 0
    %3419 = vmatpush.bf16.msra.mxu0 0
    %3420 = vmatpush.bf16.msra.mxu0 0
    %3421 = vmatpush.bf16.msra.mxu0 0
    %3422 = vmatpush.bf16.msra.mxu0 %v3038
    %3423 = vmatmul.bf16.gmra.mxu0 %v3218
    %v3424 = vpop.f32.mrf.mxu0
    %v3425 = vadd.f32 %v3412, %v3424
    %v3426 = vpop.f32.mrf.mxu0
    %3427 = vdwg.mxu0
    %3428 = vmatpush.bf16.msra.mxu0 %v2920
    %3429 = vmatpush.bf16.msra.mxu0 %v2913
    %3430 = vmatpush.bf16.msra.mxu0 %v2906
    %3431 = vmatpush.bf16.msra.mxu0 %v2899
    %3432 = vmatpush.bf16.msra.mxu0 %v2892
    %3433 = vmatpush.bf16.msra.mxu0 %v2885
    %3434 = vmatpush.bf16.msra.mxu0 %v2878
    %3435 = vmatpush.bf16.msra.mxu0 %v2871
    %3436 = vmatmul.bf16.gmra.mxu0 %v2097
    %v3437 = vpop.f32.mrf.mxu0
    %v3438 = vadd.f32 %v2307, %v3437
    %v3439 = vpop.f32.mrf.mxu0
    %3440 = vdwg.mxu0
    %3441 = vmatpush.bf16.msra.mxu0 %v2976
    %3442 = vmatpush.bf16.msra.mxu0 %v2969
    %3443 = vmatpush.bf16.msra.mxu0 %v2962
    %3444 = vmatpush.bf16.msra.mxu0 %v2955
    %3445 = vmatpush.bf16.msra.mxu0 %v2948
    %3446 = vmatpush.bf16.msra.mxu0 %v2941
    %3447 = vmatpush.bf16.msra.mxu0 %v2934
    %3448 = vmatpush.bf16.msra.mxu0 %v2927
    %3449 = vmatmul.bf16.gmra.mxu0 %v2098
    %v3450 = vpop.f32.mrf.mxu0
    %v3451 = vadd.f32 %v3438, %v3450
    %v3452 = vpop.f32.mrf.mxu0
    %3453 = vdwg.mxu0
    %3454 = vmatpush.bf16.msra.mxu0 %v3032
    %3455 = vmatpush.bf16.msra.mxu0 %v3025
    %3456 = vmatpush.bf16.msra.mxu0 %v3018
    %3457 = vmatpush.bf16.msra.mxu0 %v3011
    %3458 = vmatpush.bf16.msra.mxu0 %v3004
    %3459 = vmatpush.bf16.msra.mxu0 %v2997
    %3460 = vmatpush.bf16.msra.mxu0 %v2990
    %3461 = vmatpush.bf16.msra.mxu0 %v2983
    %3462 = vmatmul.bf16.gmra.mxu0 %v2099
    %v3463 = vpop.f32.mrf.mxu0
    %v3464 = vadd.f32 %v3451, %v3463
    %v3465 = vpop.f32.mrf.mxu0
    %3466 = vdwg.mxu0
    %3467 = vmatpush.bf16.msra.mxu0 0
    %3468 = vmatpush.bf16.msra.mxu0 0
    %3469 = vmatpush.bf16.msra.mxu0 0
    %3470 = vmatpush.bf16.msra.mxu0 0
    %3471 = vmatpush.bf16.msra.mxu0 0
    %3472 = vmatpush.bf16.msra.mxu0 0
    %3473 = vmatpush.bf16.msra.mxu0 0
    %3474 = vmatpush.bf16.msra.mxu0 %v3039
    %3475 = vmatmul.bf16.gmra.mxu0 %v3218
    %v3476 = vpop.f32.mrf.mxu0
    %v3477 = vadd.f32 %v3464, %v3476
    %v3478 = vpop.f32.mrf.mxu0
    %3479 = vdwg.mxu0
    %3480 = vmatpush.bf16.msra.mxu0 %v2921
    %3481 = vmatpush.bf16.msra.mxu0 %v2914
    %3482 = vmatpush.bf16.msra.mxu0 %v2907
    %3483 = vmatpush.bf16.msra.mxu0 %v2900
    %3484 = vmatpush.bf16.msra.mxu0 %v2893
    %3485 = vmatpush.bf16.msra.mxu0 %v2886
    %3486 = vmatpush.bf16.msra.mxu0 %v2879
    %3487 = vmatpush.bf16.msra.mxu0 %v2872
    %3488 = vmatmul.bf16.gmra.mxu0 %v2097
    %v3489 = vpop.f32.mrf.mxu0
    %v3490 = vadd.f32 %v2308, %v3489
    %v3491 = vpop.f32.mrf.mxu0
    %3492 = vdwg.mxu0
    %3493 = vmatpush.bf16.msra.mxu0 %v2977
    %3494 = vmatpush.bf16.msra.mxu0 %v2970
    %3495 = vmatpush.bf16.msra.mxu0 %v2963
    %3496 = vmatpush.bf16.msra.mxu0 %v2956
    %3497 = vmatpush.bf16.msra.mxu0 %v2949
    %3498 = vmatpush.bf16.msra.mxu0 %v2942
    %3499 = vmatpush.bf16.msra.mxu0 %v2935
    %3500 = vmatpush.bf16.msra.mxu0 %v2928
    %3501 = vmatmul.bf16.gmra.mxu0 %v2098
    %v3502 = vpop.f32.mrf.mxu0
    %v3503 = vadd.f32 %v3490, %v3502
    %v3504 = vpop.f32.mrf.mxu0
    %3505 = vdwg.mxu0
    %3506 = vmatpush.bf16.msra.mxu0 %v3033
    %3507 = vmatpush.bf16.msra.mxu0 %v3026
    %3508 = vmatpush.bf16.msra.mxu0 %v3019
    %3509 = vmatpush.bf16.msra.mxu0 %v3012
    %3510 = vmatpush.bf16.msra.mxu0 %v3005
    %3511 = vmatpush.bf16.msra.mxu0 %v2998
    %3512 = vmatpush.bf16.msra.mxu0 %v2991
    %3513 = vmatpush.bf16.msra.mxu0 %v2984
    %3514 = vmatmul.bf16.gmra.mxu0 %v2099
    %v3515 = vpop.f32.mrf.mxu0
    %v3516 = vadd.f32 %v3503, %v3515
    %v3517 = vpop.f32.mrf.mxu0
    %3518 = vdwg.mxu0
    %3519 = vmatpush.bf16.msra.mxu0 0
    %3520 = vmatpush.bf16.msra.mxu0 0
    %3521 = vmatpush.bf16.msra.mxu0 0
    %3522 = vmatpush.bf16.msra.mxu0 0
    %3523 = vmatpush.bf16.msra.mxu0 0
    %3524 = vmatpush.bf16.msra.mxu0 0
    %3525 = vmatpush.bf16.msra.mxu0 0
    %3526 = vmatpush.bf16.msra.mxu0 %v3040
    %3527 = vmatmul.bf16.gmra.mxu0 %v3218
    %v3528 = vpop.f32.mrf.mxu0
    %v3529 = vadd.f32 %v3516, %v3528
    %v3530 = vpop.f32.mrf.mxu0
    %3531 = vdwg.mxu0
    %3532 = vmatpush.bf16.msra.mxu0 %v2922
    %3533 = vmatpush.bf16.msra.mxu0 %v2915
    %3534 = vmatpush.bf16.msra.mxu0 %v2908
    %3535 = vmatpush.bf16.msra.mxu0 %v2901
    %3536 = vmatpush.bf16.msra.mxu0 %v2894
    %3537 = vmatpush.bf16.msra.mxu0 %v2887
    %3538 = vmatpush.bf16.msra.mxu0 %v2880
    %3539 = vmatpush.bf16.msra.mxu0 %v2873
    %3540 = vmatmul.bf16.gmra.mxu0 %v2097
    %v3541 = vpop.f32.mrf.mxu0
    %v3542 = vadd.f32 %v2309, %v3541
    %v3543 = vpop.f32.mrf.mxu0
    %3544 = vdwg.mxu0
    %3545 = vmatpush.bf16.msra.mxu0 %v2978
    %3546 = vmatpush.bf16.msra.mxu0 %v2971
    %3547 = vmatpush.bf16.msra.mxu0 %v2964
    %3548 = vmatpush.bf16.msra.mxu0 %v2957
    %3549 = vmatpush.bf16.msra.mxu0 %v2950
    %3550 = vmatpush.bf16.msra.mxu0 %v2943
    %3551 = vmatpush.bf16.msra.mxu0 %v2936
    %3552 = vmatpush.bf16.msra.mxu0 %v2929
    %3553 = vmatmul.bf16.gmra.mxu0 %v2098
    %v3554 = vpop.f32.mrf.mxu0
    %v3555 = vadd.f32 %v3542, %v3554
    %v3556 = vpop.f32.mrf.mxu0
    %3557 = vdwg.mxu0
    %3558 = vmatpush.bf16.msra.mxu0 %v3034
    %3559 = vmatpush.bf16.msra.mxu0 %v3027
    %3560 = vmatpush.bf16.msra.mxu0 %v3020
    %3561 = vmatpush.bf16.msra.mxu0 %v3013
    %3562 = vmatpush.bf16.msra.mxu0 %v3006
    %3563 = vmatpush.bf16.msra.mxu0 %v2999
    %3564 = vmatpush.bf16.msra.mxu0 %v2992
    %3565 = vmatpush.bf16.msra.mxu0 %v2985
    %3566 = vmatmul.bf16.gmra.mxu0 %v2099
    %v3567 = vpop.f32.mrf.mxu0
    %v3568 = vadd.f32 %v3555, %v3567
    %v3569 = vpop.f32.mrf.mxu0
    %3570 = vdwg.mxu0
    %3571 = vmatpush.bf16.msra.mxu0 0
    %3572 = vmatpush.bf16.msra.mxu0 0
    %3573 = vmatpush.bf16.msra.mxu0 0
    %3574 = vmatpush.bf16.msra.mxu0 0
    %3575 = vmatpush.bf16.msra.mxu0 0
    %3576 = vmatpush.bf16.msra.mxu0 0
    %3577 = vmatpush.bf16.msra.mxu0 0
    %3578 = vmatpush.bf16.msra.mxu0 %v3041
    %3579 = vmatmul.bf16.gmra.mxu0 %v3218
    %v3580 = vpop.f32.mrf.mxu0
    %v3581 = vadd.f32 %v3568, %v3580
    %v3582 = vpop.f32.mrf.mxu0
    %3583 = vdwg.mxu0
    %v3584 = vmul.f32 %v3269, 0.5
    %v3585 = vmul.f32 %v3321, 0.5
    %v3586 = vmul.f32 %v3373, 0.5
    %v3587 = vmul.f32 %v3425, 0.5
    %v3588 = vmul.f32 %v3477, 0.5
    %v3589 = vmul.f32 %v3529, 0.5
    %v3590 = vmul.f32 %v3581, 0.5
    %v3591 = vtanh.pop %v3584
    %v3592 = vtanh.pop %v3585
    %v3593 = vtanh.pop %v3586
    %v3594 = vtanh.pop %v3587
    %v3595 = vtanh.pop %v3588
    %v3596 = vtanh.pop %v3589
    %v3597 = vtanh.pop %v3590
    %v3598 = vmul.f32 %v3591, 0.5
    %v3599 = vmul.f32 %v3592, 0.5
    %v3600 = vmul.f32 %v3593, 0.5
    %v3601 = vmul.f32 %v3594, 0.5
    %v3602 = vmul.f32 %v3595, 0.5
    %v3603 = vmul.f32 %v3596, 0.5
    %v3604 = vmul.f32 %v3597, 0.5
    %v3605 = vadd.f32 %v3598, 0.5
    %v3606 = vadd.f32 %v3599, 0.5
    %v3607 = vadd.f32 %v3600, 0.5
    %v3608 = vadd.f32 %v3601, 0.5
    %v3609 = vadd.f32 %v3602, 0.5
    %v3610 = vadd.f32 %v3603, 0.5
    %v3611 = vadd.f32 %v3604, 0.5
    %v3612 = vpack.c.bf16 %v3606, %v3605
    %v3613 = vpack.c.bf16 %v3608, %v3607
    %v3614 = vpack.c.bf16 %v3610, %v3609
    %v3615 = vpack.c.bf16 %v3611, %v3611
    %3616 = vst [vmem:[#allocation2] sm:$0xff] %v3612
    %3617 = vst [vmem:[#allocation2 + $0x8] sm:$0xff] %v3613
    %3618 = vst [vmem:[#allocation2 + $0x10] sm:$0xff] %v3614
    %vm3619 = vcmask 125952
    %3620 = vst.msk [vmem:[#allocation2 + $0x18] sm:$0xf] %vm3619, %v3615
    %3622 = vrot.lane.b32.xlu0 %v1980, 40
    %v3623 = vpop.permute.xlu0 %3622
    %vm3625 = vcmask 326656
    %v3626 = vsel %vm3625, %v1898, %v3623
    %vm3627 = vcmask 408576
    %v3628 = vsel %vm3627, %v3626, 0.0
    %3629 = vst [vmem:[#allocation4] sm:$0xff] %v3628
    // Predicated region
    $region58: #{_vae_forward_padded.1} parent=1 // pred_check
      _
    $region59: #{_vae_forward_padded.1} parent=1 // pred_check_branch
      %3631 = sbr.rel (0) target = $region61
    $region60: #{_vae_forward_padded.1} parent=1 // pred_region
      %3633 = vsyncadd [#allocation3], 0
      %s3635 = sshll.u32 [#allocation2], 4
      %s3636 = int_to_ptr.vmem [resolvable:$true] %s3635
      %s3637 = sshll.u32 %s14, 4
      %s3638 = int_to_ptr.hbm [resolvable:$true] %s3637
      %3640 = dma.vmem_to_hbm [thread:$0]  %s3636, 448, %s3638, [#allocation3]
    $region61: #{_vae_forward_padded.1} parent=1 // pred_fallthru
      _
    // Predicated region
    $region62: #{_vae_forward_padded.1} parent=1 // pred_check
      _
    $region63: #{_vae_forward_padded.1} parent=1 // pred_check_branch
      %3642 = sbr.rel (0) target = $region65
    $region64: #{_vae_forward_padded.1} parent=1 // pred_region
      %3644 = vsyncadd [#allocation5], 0
      %s3646 = sshll.u32 [#allocation4], 4
      %s3647 = int_to_ptr.vmem [resolvable:$true] %s3646
      %s3648 = sshll.u32 %s15, 4
      %s3649 = int_to_ptr.hbm [resolvable:$true] %s3648
      %3651 = dma.vmem_to_hbm [thread:$0]  %s3647, 128, %s3649, [#allocation5]
    $region65: #{_vae_forward_padded.1} parent=1 // pred_fallthru
      _
    // Predicated region
    $region66: #{_vae_forward_padded.1} parent=1 // pred_check
      _
    $region67: #{_vae_forward_padded.1} parent=1 // pred_check_branch
      %3653 = sbr.rel (0) target = $region69
    $region68: #{_vae_forward_padded.1} parent=1 // pred_region
      %3655 = dma.done [#allocation3], 448
    $region69: #{_vae_forward_padded.1} parent=1 // pred_fallthru
      _
    // Predicated region
    $region70: #{_vae_forward_padded.1} parent=1 // pred_check
      _
    $region71: #{_vae_forward_padded.1} parent=1 // pred_check_branch
      %3657 = sbr.rel (0) target = $region73
    $region72: #{_vae_forward_padded.1} parent=1 // pred_region
      %3659 = dma.done [#allocation5], 128
    $region73: #{_vae_forward_padded.1} parent=1 // pred_fallthru
      _
    %3660 = vsyncpa [#allocation3], 1
    %3661 = vsyncpa [#allocation5], 1

</llo_original>
